<compile_context>
chip_gen: v6e
topology: v6e:2x2x1
jax: 0.10.0
libtpu: 0.0.40
codegen_flags: <defaults>
</compile_context>

<pallas_src>
import jax
import jax.numpy as jnp
from jax import lax
from jax.experimental import pallas as pl
from jax.experimental.pallas import tpu as pltpu

EPS = 1e-5  # BatchNorm2d default eps
VMEM_LIMIT = 32 * 1024 * 1024  # explicit VMEM budget (safe on v5e/v6e/v7x)


def _round_up(x, m):
    return (x + m - 1) // m * m


# ----------------------------- Pallas kernels ------------------------------ #

def conv_stats_kernel(x_ref, w_ref, z_ref, stats_ref):
    """3x3 complex conv (stacked-real form) as 9 shifted bf16 matmuls + BN partial stats.

    x_ref:     (1, H+2, W+2, Cp)  bf16   padded NHWC tile, channels = [re | im | 0-pad]
    w_ref:     (9, Cp, Cp)        bf16   per-tap block weight [[wr, wi], [-wi, wr]]
    z_ref:     (H*W, Cp)          f32    conv output (f32 accumulator, lane-dense)
    stats_ref: (1, 2, Cp)         f32    row0 = per-channel sum, row1 = sum of squares
    """
    hp, wp, cpi = x_ref.shape[1], x_ref.shape[2], x_ref.shape[3]
    h, w = hp - 2, wp - 2

    z_ref[...] = jnp.zeros_like(z_ref)
    for t in range(9):                      # static unroll over the 9 taps
        dy, dx = divmod(t, 3)
        xs = x_ref[0, dy:dy + h, dx:dx + w, :].reshape(h * w, cpi)
        z_ref[...] += jnp.dot(xs, w_ref[t], preferred_element_type=jnp.float32)

    acc = z_ref[...]
    stats_ref[0, 0:1, :] = jnp.sum(acc, axis=0, keepdims=True)
    stats_ref[0, 1:2, :] = jnp.sum(acc * acc, axis=0, keepdims=True)


def bn_relu_kernel(z_ref, sb_ref, y_ref):
    """Apply per-channel BN (precomputed scale/bias) + ReLU."""
    y = z_ref[...] * sb_ref[0:1, :] + sb_ref[1:2, :]
    y_ref[...] = jnp.maximum(y, 0.0).astype(y_ref.dtype)


def bn_add_relu_kernel(z_ref, sb_ref, id_ref, o_ref):
    """Apply per-channel BN + residual identity + ReLU."""
    y = z_ref[...] * sb_ref[0:1, :] + sb_ref[1:2, :] + id_ref[...]
    o_ref[...] = jnp.maximum(y, 0.0)


# --------------------------- pallas_call wrappers --------------------------- #

def conv_stats_call(x_pad, w_blk, h, w):
    """x_pad: (N, H+2, W+2, Cp) bf16, w_blk: (9, Cp, Cp) bf16 -> z (N*H*W, Cp) f32, stats."""
    n, hp, wp, cp = x_pad.shape
    hw = h * w
    return pl.pallas_call(
        conv_stats_kernel,
        out_shape=(jax.ShapeDtypeStruct((n * hw, cp), jnp.float32),
                   jax.ShapeDtypeStruct((n, 2, cp), jnp.float32)),
        grid=(n,),
        in_specs=[pl.BlockSpec((1, hp, wp, cp), lambda i: (i, 0, 0, 0)),
                  pl.BlockSpec((9, cp, cp), lambda i: (0, 0, 0))],   # weights resident
        out_specs=(pl.BlockSpec((hw, cp), lambda i: (i, 0)),
                   pl.BlockSpec((1, 2, cp), lambda i: (i, 0, 0))),
        compiler_params=pltpu.CompilerParams(
            dimension_semantics=("parallel",),
            vmem_limit_bytes=VMEM_LIMIT),
    )(x_pad, w_blk)


def bn_relu_call(z, sb, out_dtype, tile_m):
    m, cp = z.shape
    return pl.pallas_call(
        bn_relu_kernel,
        out_shape=jax.ShapeDtypeStruct((m, cp), out_dtype),
        grid=(m // tile_m,),
        in_specs=[pl.BlockSpec((tile_m, cp), lambda i: (i, 0)),
                  pl.BlockSpec((2, cp), lambda i: (0, 0))],
        out_specs=pl.BlockSpec((tile_m, cp), lambda i: (i, 0)),
        compiler_params=pltpu.CompilerParams(
            dimension_semantics=("parallel",),
            vmem_limit_bytes=VMEM_LIMIT),
    )(z, sb)


def bn_add_relu_call(z, sb, identity, tile_m):
    m, cp = z.shape
    return pl.pallas_call(
        bn_add_relu_kernel,
        out_shape=jax.ShapeDtypeStruct((m, cp), jnp.float32),
        grid=(m // tile_m,),
        in_specs=[pl.BlockSpec((tile_m, cp), lambda i: (i, 0)),
                  pl.BlockSpec((2, cp), lambda i: (0, 0)),
                  pl.BlockSpec((tile_m, cp), lambda i: (i, 0))],
        out_specs=pl.BlockSpec((tile_m, cp), lambda i: (i, 0)),
        compiler_params=pltpu.CompilerParams(
            dimension_semantics=("parallel",),
            vmem_limit_bytes=VMEM_LIMIT),
    )(z, sb, identity)


# ------------------------------- JAX glue ----------------------------------- #

def build_block_weight(w_r, w_i, c_in, c_out, cp):
    """(Cout, Cin, 3, 3) real/imag -> (9, Cp, Cp) bf16 per-tap block [[wr, wi], [-wi, wr]]."""
    wr = jnp.transpose(w_r, (2, 3, 1, 0)).reshape(9, c_in, c_out).astype(jnp.float32)
    wi = jnp.transpose(w_i, (2, 3, 1, 0)).reshape(9, c_in, c_out).astype(jnp.float32)
    top = jnp.concatenate([wr, wi], axis=2)        # rows 0:Cin      -> [wr | wi]
    bot = jnp.concatenate([-wi, wr], axis=2)       # rows Cin:2Cin   -> [-wi | wr]
    blk = jnp.concatenate([top, bot], axis=1)      # (9, 2Cin, 2Cout)
    blk = jnp.pad(blk, ((0, 0), (0, cp - 2 * c_in), (0, cp - 2 * c_out)))
    return blk.astype(jnp.bfloat16)


def bn_scale_bias(stats, m):
    """Reduce per-tile (sum, sumsq) -> per-channel (scale, bias) for z*scale + bias."""
    s = jnp.sum(stats, axis=0)                     # (2, Cp), f32
    mean = s[0] / float(m)
    var = jnp.maximum(s[1] / float(m) - mean * mean, 0.0)   # biased variance
    scale = lax.rsqrt(var + EPS)
    bias = -mean * scale
    return jnp.stack([scale, bias], axis=0)        # (2, Cp)


def complex_basic_block_forward(x_r_nchw, x_i_nchw, params, stride=1):
    """Forward matching ComplexBasicBlockTensorParallel (bias=False, downsample=None)."""
    assert stride == 1, "stride!=1 needs a downsample module (not implemented)"
    n, c, h, w = x_r_nchw.shape
    c_out = params["weight1r"].shape[0]
    assert params["weight1r"].shape[1] == c
    assert c_out == c, "downsample=None requires in_channels == out_channels"
    cp = _round_up(2 * c, 128)                     # lane-dense stacked channel width
    m, hw = n * h * w, h * w

    # NHWC, stack [re | im] channels, pad channels to Cp.
    xr = jnp.transpose(x_r_nchw, (0, 2, 3, 1)).astype(jnp.float32)
    xi = jnp.transpose(x_i_nchw, (0, 2, 3, 1)).astype(jnp.float32)
    x_st = jnp.concatenate([xr, xi], axis=-1)                            # (N,H,W,2C) f32
    x_stp = jnp.pad(x_st, ((0, 0), (0, 0), (0, 0), (0, cp - 2 * c)))     # (N,H,W,Cp) f32
    x_in = jnp.pad(x_stp, ((0, 0), (1, 1), (1, 1), (0, 0))).astype(jnp.bfloat16)

    w1 = build_block_weight(params["weight1r"], params["weight1i"], c, c, cp)
    w2 = build_block_weight(params["weight2r"], params["weight2i"], c, c, cp)

    # ---- conv1 (+ BN partial stats), then BN1 + ReLU ----
    z1, st1 = conv_stats_call(x_in, w1, h, w)
    sb1 = bn_scale_bias(st1, m)
    y1 = bn_relu_call(z1, sb1, jnp.bfloat16, hw)                          # (M, Cp) = [yr|yi|0]

    # ---- conv2 (+ stats), then BN2 + identity + ReLU ----
    y1_pad = jnp.pad(y1.reshape(n, h, w, cp), ((0, 0), (1, 1), (1, 1), (0, 0)))
    z2, st2 = conv_stats_call(y1_pad, w2, h, w)
    sb2 = bn_scale_bias(st2, m)
    identity = x_stp.reshape(m, cp)                                       # f32 [xr|xi|0]
    out = bn_add_relu_call(z2, sb2, identity, hw)                         # (M, Cp) f32

    out4 = out.reshape(n, h, w, cp)
    out_r = jnp.transpose(out4[..., 0:c], (0, 3, 1, 2))                   # back to NCHW
    out_i = jnp.transpose(out4[..., c:2 * c], (0, 3, 1, 2))
    return out_r, out_i


# ------------------------- pure-JAX reference (check) ------------------------ #

def _conv_ref(x_nhwc, w_oihw, stride):
    w_hwio = jnp.transpose(w_oihw, (2, 3, 1, 0))
    return lax.conv_general_dilated(x_nhwc, w_hwio, (stride, stride),
                                    padding=((1, 1), (1, 1)),
                                    dimension_numbers=("NHWC", "HWIO", "NHWC"))


def _bn_ref(z):
    mean = jnp.mean(z, axis=(0, 1, 2), keepdims=True)
    var = jnp.mean((z - mean) ** 2, axis=(0, 1, 2), keepdims=True)
    return (z - mean) * lax.rsqrt(var + EPS)


def reference_forward(x_r_nchw, x_i_nchw, params, stride=1):
    xr = jnp.transpose(x_r_nchw, (0, 2, 3, 1)).astype(jnp.float32)
    xi = jnp.transpose(x_i_nchw, (0, 2, 3, 1)).astype(jnp.float32)
    re1 = _conv_ref(xr, params["weight1r"], stride) - _conv_ref(xi, params["weight1i"], stride)
    im1 = _conv_ref(xr, params["weight1i"], stride) + _conv_ref(xi, params["weight1r"], stride)
    yr = jnp.maximum(_bn_ref(re1), 0.0)
    yi = jnp.maximum(_bn_ref(im1), 0.0)
    re2 = _conv_ref(yr, params["weight2r"], 1) - _conv_ref(yi, params["weight2i"], 1)
    im2 = _conv_ref(yr, params["weight2i"], 1) + _conv_ref(yi, params["weight2r"], 1)
    out_r = jnp.maximum(_bn_ref(re2) + xr, 0.0)
    out_i = jnp.maximum(_bn_ref(im2) + xi, 0.0)
    return (jnp.transpose(out_r, (0, 3, 1, 2)), jnp.transpose(out_i, (0, 3, 1, 2)))


# ---------------------------------- main ------------------------------------ #

def init_params(key, in_channels, out_channels):
    # kaiming_normal_(nonlinearity='relu'): std = sqrt(2 / fan_in), fan_in = Cin*3*3
    ks = jax.random.split(key, 4)

    def kaiming(k, cout, cin):
        std = jnp.sqrt(2.0 / (cin * 9))
        return jax.random.normal(k, (cout, cin, 3, 3), jnp.float32) * std

    return {
        "weight1r": kaiming(ks[0], out_channels, in_channels),
        "weight1i": kaiming(ks[1], out_channels, in_channels),
        "weight2r": kaiming(ks[2], out_channels, out_channels),
        "weight2i": kaiming(ks[3], out_channels, out_channels),
    }


if __name__ == "__main__":
    key = jax.random.PRNGKey(0)
    k_xr, k_xi, k_w = jax.random.split(key, 3)

    batch, channels, spatial = 2, 4, 16
    x_r = jax.random.normal(k_xr, (batch, channels, spatial, spatial), jnp.float32)
    x_i = jax.random.normal(k_xi, (batch, channels, spatial, spatial), jnp.float32)
    params = init_params(k_w, channels, channels)

    out_r, out_i = complex_basic_block_forward(x_r, x_i, params, stride=1)
    jax.block_until_ready((out_r, out_i))

    ref_r, ref_i = reference_forward(x_r, x_i, params, stride=1)
    assert out_r.shape == (batch, channels, spatial, spatial)
    assert out_i.shape == (batch, channels, spatial, spatial)
    # Tolerance reflects bf16 MXU operands (f32 accumulation); reference conv is full f32.
    assert jnp.allclose(out_r, ref_r, atol=5e-2, rtol=5e-2)
    assert jnp.allclose(out_i, ref_i, atol=5e-2, rtol=5e-2)

    print("KERNEL_OK")
</pallas_src>

<mosaic_0001>
module attributes {stable_mosaic.version = 11 : i64} {
  func.func @conv_stats_kernel(%arg0: i32, %arg1: memref<1x18x18x128xbf16, #tpu.memory_space<vmem>>, %arg2: memref<9x128x128xbf16, #tpu.memory_space<vmem>>, %arg3: memref<256x128xf32, #tpu.memory_space<vmem>>, %arg4: memref<1x2x128xf32, #tpu.memory_space<vmem>>) attributes {dimension_semantics = [#tpu.dimension_semantics<parallel>], iteration_bounds = array<i64: 2>, scalar_prefetch = 0 : i64, scratch_operands = 0 : i64, tpu.core_type = #tpu.core_type<tc>, window_params = [{transform_indices = @transform_0, window_bounds = array<i64: 1, 18, 18, 128>}, {pipeline_mode = #tpu.pipeline_mode<synchronous>, transform_indices = @transform_1, window_bounds = array<i64: 9, 128, 128>}, {transform_indices = @transform_2, window_bounds = array<i64: 256, 128>}, {transform_indices = @transform_3, window_bounds = array<i64: 1, 2, 128>}]} {
    %cst = arith.constant 0.000000e+00 : f32
    %0 = vector.broadcast %cst : f32 to vector<256x128xf32>
    %c0 = arith.constant 0 : index
    %c0_0 = arith.constant 0 : index
    %1 = vector.load %arg3[%c0, %c0_0] : memref<256x128xf32, #tpu.memory_space<vmem>>, vector<256x128xf32>
    tpu.vector_store %arg3[%c0, %c0_0], %0 {strides = array<i32>} : memref<256x128xf32, #tpu.memory_space<vmem>>, vector<256x128xf32>,
    %c0_1 = arith.constant 0 : index
    %c0_2 = arith.constant 0 : index
    %c0_3 = arith.constant 0 : index
    %c0_4 = arith.constant 0 : index
    %2 = vector.load %arg1[%c0_1, %c0_2, %c0_3, %c0_4] : memref<1x18x18x128xbf16, #tpu.memory_space<vmem>>, vector<1x16x16x128xbf16>
    %3 = vector.shape_cast %2 : vector<1x16x16x128xbf16> to vector<16x16x128xbf16>
    %4 = vector.shape_cast %3 : vector<16x16x128xbf16> to vector<256x128xbf16>
    %c0_5 = arith.constant 0 : index
    %c0_6 = arith.constant 0 : index
    %5 = vector.load %arg3[%c0_5, %c0_6] : memref<256x128xf32, #tpu.memory_space<vmem>>, vector<256x128xf32>
    %c0_7 = arith.constant 0 : index
    %c0_8 = arith.constant 0 : index
    %c0_9 = arith.constant 0 : index
    %6 = vector.load %arg2[%c0_7, %c0_8, %c0_9] : memref<9x128x128xbf16, #tpu.memory_space<vmem>>, vector<1x128x128xbf16>
    %7 = vector.shape_cast %6 : vector<1x128x128xbf16> to vector<128x128xbf16>
    %cst_10 = arith.constant dense<0.000000e+00> : vector<256x128xf32>
    %8 = tpu.matmul %4, %7, %cst_10 {dimension_numbers = #tpu.dot_dimension_numbers<[1], [0], [0], [1], [0, 0, 1, 1], [], []>} : vector<256x128xbf16>, vector<128x128xbf16>, vector<256x128xf32> -> vector<256x128xf32>
    %9 = arith.addf %5, %8 : vector<256x128xf32>
    %c0_11 = arith.constant 0 : index
    %c0_12 = arith.constant 0 : index
    %10 = vector.load %arg3[%c0_11, %c0_12] : memref<256x128xf32, #tpu.memory_space<vmem>>, vector<256x128xf32>
    tpu.vector_store %arg3[%c0_11, %c0_12], %9 {strides = array<i32>} : memref<256x128xf32, #tpu.memory_space<vmem>>, vector<256x128xf32>,
    %c0_13 = arith.constant 0 : index
    %c0_14 = arith.constant 0 : index
    %c1 = arith.constant 1 : index
    %c0_15 = arith.constant 0 : index
    %11 = vector.load %arg1[%c0_13, %c0_14, %c1, %c0_15] : memref<1x18x18x128xbf16, #tpu.memory_space<vmem>>, vector<1x16x16x128xbf16>
    %12 = vector.shape_cast %11 : vector<1x16x16x128xbf16> to vector<16x16x128xbf16>
    %13 = vector.shape_cast %12 : vector<16x16x128xbf16> to vector<256x128xbf16>
    %c0_16 = arith.constant 0 : index
    %c0_17 = arith.constant 0 : index
    %14 = vector.load %arg3[%c0_16, %c0_17] : memref<256x128xf32, #tpu.memory_space<vmem>>, vector<256x128xf32>
    %c1_18 = arith.constant 1 : index
    %c0_19 = arith.constant 0 : index
    %c0_20 = arith.constant 0 : index
    %15 = vector.load %arg2[%c1_18, %c0_19, %c0_20] : memref<9x128x128xbf16, #tpu.memory_space<vmem>>, vector<1x128x128xbf16>
    %16 = vector.shape_cast %15 : vector<1x128x128xbf16> to vector<128x128xbf16>
    %cst_21 = arith.constant dense<0.000000e+00> : vector<256x128xf32>
    %17 = tpu.matmul %13, %16, %cst_21 {dimension_numbers = #tpu.dot_dimension_numbers<[1], [0], [0], [1], [0, 0, 1, 1], [], []>} : vector<256x128xbf16>, vector<128x128xbf16>, vector<256x128xf32> -> vector<256x128xf32>
    %18 = arith.addf %14, %17 : vector<256x128xf32>
    %c0_22 = arith.constant 0 : index
    %c0_23 = arith.constant 0 : index
    %19 = vector.load %arg3[%c0_22, %c0_23] : memref<256x128xf32, #tpu.memory_space<vmem>>, vector<256x128xf32>
    tpu.vector_store %arg3[%c0_22, %c0_23], %18 {strides = array<i32>} : memref<256x128xf32, #tpu.memory_space<vmem>>, vector<256x128xf32>,
    %c0_24 = arith.constant 0 : index
    %c0_25 = arith.constant 0 : index
    %c2 = arith.constant 2 : index
    %c0_26 = arith.constant 0 : index
    %20 = vector.load %arg1[%c0_24, %c0_25, %c2, %c0_26] : memref<1x18x18x128xbf16, #tpu.memory_space<vmem>>, vector<1x16x16x128xbf16>
    %21 = vector.shape_cast %20 : vector<1x16x16x128xbf16> to vector<16x16x128xbf16>
    %22 = vector.shape_cast %21 : vector<16x16x128xbf16> to vector<256x128xbf16>
    %c0_27 = arith.constant 0 : index
    %c0_28 = arith.constant 0 : index
    %23 = vector.load %arg3[%c0_27, %c0_28] : memref<256x128xf32, #tpu.memory_space<vmem>>, vector<256x128xf32>
    %c2_29 = arith.constant 2 : index
    %c0_30 = arith.constant 0 : index
    %c0_31 = arith.constant 0 : index
    %24 = vector.load %arg2[%c2_29, %c0_30, %c0_31] : memref<9x128x128xbf16, #tpu.memory_space<vmem>>, vector<1x128x128xbf16>
    %25 = vector.shape_cast %24 : vector<1x128x128xbf16> to vector<128x128xbf16>
    %cst_32 = arith.constant dense<0.000000e+00> : vector<256x128xf32>
    %26 = tpu.matmul %22, %25, %cst_32 {dimension_numbers = #tpu.dot_dimension_numbers<[1], [0], [0], [1], [0, 0, 1, 1], [], []>} : vector<256x128xbf16>, vector<128x128xbf16>, vector<256x128xf32> -> vector<256x128xf32>
    %27 = arith.addf %23, %26 : vector<256x128xf32>
    %c0_33 = arith.constant 0 : index
    %c0_34 = arith.constant 0 : index
    %28 = vector.load %arg3[%c0_33, %c0_34] : memref<256x128xf32, #tpu.memory_space<vmem>>, vector<256x128xf32>
    tpu.vector_store %arg3[%c0_33, %c0_34], %27 {strides = array<i32>} : memref<256x128xf32, #tpu.memory_space<vmem>>, vector<256x128xf32>,
    %c0_35 = arith.constant 0 : index
    %c1_36 = arith.constant 1 : index
    %c0_37 = arith.constant 0 : index
    %c0_38 = arith.constant 0 : index
    %29 = vector.load %arg1[%c0_35, %c1_36, %c0_37, %c0_38] : memref<1x18x18x128xbf16, #tpu.memory_space<vmem>>, vector<1x16x16x128xbf16>
    %30 = vector.shape_cast %29 : vector<1x16x16x128xbf16> to vector<16x16x128xbf16>
    %31 = vector.shape_cast %30 : vector<16x16x128xbf16> to vector<256x128xbf16>
    %c0_39 = arith.constant 0 : index
    %c0_40 = arith.constant 0 : index
    %32 = vector.load %arg3[%c0_39, %c0_40] : memref<256x128xf32, #tpu.memory_space<vmem>>, vector<256x128xf32>
    %c3 = arith.constant 3 : index
    %c0_41 = arith.constant 0 : index
    %c0_42 = arith.constant 0 : index
    %33 = vector.load %arg2[%c3, %c0_41, %c0_42] : memref<9x128x128xbf16, #tpu.memory_space<vmem>>, vector<1x128x128xbf16>
    %34 = vector.shape_cast %33 : vector<1x128x128xbf16> to vector<128x128xbf16>
    %cst_43 = arith.constant dense<0.000000e+00> : vector<256x128xf32>
    %35 = tpu.matmul %31, %34, %cst_43 {dimension_numbers = #tpu.dot_dimension_numbers<[1], [0], [0], [1], [0, 0, 1, 1], [], []>} : vector<256x128xbf16>, vector<128x128xbf16>, vector<256x128xf32> -> vector<256x128xf32>
    %36 = arith.addf %32, %35 : vector<256x128xf32>
    %c0_44 = arith.constant 0 : index
    %c0_45 = arith.constant 0 : index
    %37 = vector.load %arg3[%c0_44, %c0_45] : memref<256x128xf32, #tpu.memory_space<vmem>>, vector<256x128xf32>
    tpu.vector_store %arg3[%c0_44, %c0_45], %36 {strides = array<i32>} : memref<256x128xf32, #tpu.memory_space<vmem>>, vector<256x128xf32>,
    %c0_46 = arith.constant 0 : index
    %c1_47 = arith.constant 1 : index
    %c1_48 = arith.constant 1 : index
    %c0_49 = arith.constant 0 : index
    %38 = vector.load %arg1[%c0_46, %c1_47, %c1_48, %c0_49] : memref<1x18x18x128xbf16, #tpu.memory_space<vmem>>, vector<1x16x16x128xbf16>
    %39 = vector.shape_cast %38 : vector<1x16x16x128xbf16> to vector<16x16x128xbf16>
    %40 = vector.shape_cast %39 : vector<16x16x128xbf16> to vector<256x128xbf16>
    %c0_50 = arith.constant 0 : index
    %c0_51 = arith.constant 0 : index
    %41 = vector.load %arg3[%c0_50, %c0_51] : memref<256x128xf32, #tpu.memory_space<vmem>>, vector<256x128xf32>
    %c4 = arith.constant 4 : index
    %c0_52 = arith.constant 0 : index
    %c0_53 = arith.constant 0 : index
    %42 = vector.load %arg2[%c4, %c0_52, %c0_53] : memref<9x128x128xbf16, #tpu.memory_space<vmem>>, vector<1x128x128xbf16>
    %43 = vector.shape_cast %42 : vector<1x128x128xbf16> to vector<128x128xbf16>
    %cst_54 = arith.constant dense<0.000000e+00> : vector<256x128xf32>
    %44 = tpu.matmul %40, %43, %cst_54 {dimension_numbers = #tpu.dot_dimension_numbers<[1], [0], [0], [1], [0, 0, 1, 1], [], []>} : vector<256x128xbf16>, vector<128x128xbf16>, vector<256x128xf32> -> vector<256x128xf32>
    %45 = arith.addf %41, %44 : vector<256x128xf32>
    %c0_55 = arith.constant 0 : index
    %c0_56 = arith.constant 0 : index
    %46 = vector.load %arg3[%c0_55, %c0_56] : memref<256x128xf32, #tpu.memory_space<vmem>>, vector<256x128xf32>
    tpu.vector_store %arg3[%c0_55, %c0_56], %45 {strides = array<i32>} : memref<256x128xf32, #tpu.memory_space<vmem>>, vector<256x128xf32>,
    %c0_57 = arith.constant 0 : index
    %c1_58 = arith.constant 1 : index
    %c2_59 = arith.constant 2 : index
    %c0_60 = arith.constant 0 : index
    %47 = vector.load %arg1[%c0_57, %c1_58, %c2_59, %c0_60] : memref<1x18x18x128xbf16, #tpu.memory_space<vmem>>, vector<1x16x16x128xbf16>
    %48 = vector.shape_cast %47 : vector<1x16x16x128xbf16> to vector<16x16x128xbf16>
    %49 = vector.shape_cast %48 : vector<16x16x128xbf16> to vector<256x128xbf16>
    %c0_61 = arith.constant 0 : index
    %c0_62 = arith.constant 0 : index
    %50 = vector.load %arg3[%c0_61, %c0_62] : memref<256x128xf32, #tpu.memory_space<vmem>>, vector<256x128xf32>
    %c5 = arith.constant 5 : index
    %c0_63 = arith.constant 0 : index
    %c0_64 = arith.constant 0 : index
    %51 = vector.load %arg2[%c5, %c0_63, %c0_64] : memref<9x128x128xbf16, #tpu.memory_space<vmem>>, vector<1x128x128xbf16>
    %52 = vector.shape_cast %51 : vector<1x128x128xbf16> to vector<128x128xbf16>
    %cst_65 = arith.constant dense<0.000000e+00> : vector<256x128xf32>
    %53 = tpu.matmul %49, %52, %cst_65 {dimension_numbers = #tpu.dot_dimension_numbers<[1], [0], [0], [1], [0, 0, 1, 1], [], []>} : vector<256x128xbf16>, vector<128x128xbf16>, vector<256x128xf32> -> vector<256x128xf32>
    %54 = arith.addf %50, %53 : vector<256x128xf32>
    %c0_66 = arith.constant 0 : index
    %c0_67 = arith.constant 0 : index
    %55 = vector.load %arg3[%c0_66, %c0_67] : memref<256x128xf32, #tpu.memory_space<vmem>>, vector<256x128xf32>
    tpu.vector_store %arg3[%c0_66, %c0_67], %54 {strides = array<i32>} : memref<256x128xf32, #tpu.memory_space<vmem>>, vector<256x128xf32>,
    %c0_68 = arith.constant 0 : index
    %c2_69 = arith.constant 2 : index
    %c0_70 = arith.constant 0 : index
    %c0_71 = arith.constant 0 : index
    %56 = vector.load %arg1[%c0_68, %c2_69, %c0_70, %c0_71] : memref<1x18x18x128xbf16, #tpu.memory_space<vmem>>, vector<1x16x16x128xbf16>
    %57 = vector.shape_cast %56 : vector<1x16x16x128xbf16> to vector<16x16x128xbf16>
    %58 = vector.shape_cast %57 : vector<16x16x128xbf16> to vector<256x128xbf16>
    %c0_72 = arith.constant 0 : index
    %c0_73 = arith.constant 0 : index
    %59 = vector.load %arg3[%c0_72, %c0_73] : memref<256x128xf32, #tpu.memory_space<vmem>>, vector<256x128xf32>
    %c6 = arith.constant 6 : index
    %c0_74 = arith.constant 0 : index
    %c0_75 = arith.constant 0 : index
    %60 = vector.load %arg2[%c6, %c0_74, %c0_75] : memref<9x128x128xbf16, #tpu.memory_space<vmem>>, vector<1x128x128xbf16>
    %61 = vector.shape_cast %60 : vector<1x128x128xbf16> to vector<128x128xbf16>
    %cst_76 = arith.constant dense<0.000000e+00> : vector<256x128xf32>
    %62 = tpu.matmul %58, %61, %cst_76 {dimension_numbers = #tpu.dot_dimension_numbers<[1], [0], [0], [1], [0, 0, 1, 1], [], []>} : vector<256x128xbf16>, vector<128x128xbf16>, vector<256x128xf32> -> vector<256x128xf32>
    %63 = arith.addf %59, %62 : vector<256x128xf32>
    %c0_77 = arith.constant 0 : index
    %c0_78 = arith.constant 0 : index
    %64 = vector.load %arg3[%c0_77, %c0_78] : memref<256x128xf32, #tpu.memory_space<vmem>>, vector<256x128xf32>
    tpu.vector_store %arg3[%c0_77, %c0_78], %63 {strides = array<i32>} : memref<256x128xf32, #tpu.memory_space<vmem>>, vector<256x128xf32>,
    %c0_79 = arith.constant 0 : index
    %c2_80 = arith.constant 2 : index
    %c1_81 = arith.constant 1 : index
    %c0_82 = arith.constant 0 : index
    %65 = vector.load %arg1[%c0_79, %c2_80, %c1_81, %c0_82] : memref<1x18x18x128xbf16, #tpu.memory_space<vmem>>, vector<1x16x16x128xbf16>
    %66 = vector.shape_cast %65 : vector<1x16x16x128xbf16> to vector<16x16x128xbf16>
    %67 = vector.shape_cast %66 : vector<16x16x128xbf16> to vector<256x128xbf16>
    %c0_83 = arith.constant 0 : index
    %c0_84 = arith.constant 0 : index
    %68 = vector.load %arg3[%c0_83, %c0_84] : memref<256x128xf32, #tpu.memory_space<vmem>>, vector<256x128xf32>
    %c7 = arith.constant 7 : index
    %c0_85 = arith.constant 0 : index
    %c0_86 = arith.constant 0 : index
    %69 = vector.load %arg2[%c7, %c0_85, %c0_86] : memref<9x128x128xbf16, #tpu.memory_space<vmem>>, vector<1x128x128xbf16>
    %70 = vector.shape_cast %69 : vector<1x128x128xbf16> to vector<128x128xbf16>
    %cst_87 = arith.constant dense<0.000000e+00> : vector<256x128xf32>
    %71 = tpu.matmul %67, %70, %cst_87 {dimension_numbers = #tpu.dot_dimension_numbers<[1], [0], [0], [1], [0, 0, 1, 1], [], []>} : vector<256x128xbf16>, vector<128x128xbf16>, vector<256x128xf32> -> vector<256x128xf32>
    %72 = arith.addf %68, %71 : vector<256x128xf32>
    %c0_88 = arith.constant 0 : index
    %c0_89 = arith.constant 0 : index
    %73 = vector.load %arg3[%c0_88, %c0_89] : memref<256x128xf32, #tpu.memory_space<vmem>>, vector<256x128xf32>
    tpu.vector_store %arg3[%c0_88, %c0_89], %72 {strides = array<i32>} : memref<256x128xf32, #tpu.memory_space<vmem>>, vector<256x128xf32>,
    %c0_90 = arith.constant 0 : index
    %c2_91 = arith.constant 2 : index
    %c2_92 = arith.constant 2 : index
    %c0_93 = arith.constant 0 : index
    %74 = vector.load %arg1[%c0_90, %c2_91, %c2_92, %c0_93] : memref<1x18x18x128xbf16, #tpu.memory_space<vmem>>, vector<1x16x16x128xbf16>
    %75 = vector.shape_cast %74 : vector<1x16x16x128xbf16> to vector<16x16x128xbf16>
    %76 = vector.shape_cast %75 : vector<16x16x128xbf16> to vector<256x128xbf16>
    %c0_94 = arith.constant 0 : index
    %c0_95 = arith.constant 0 : index
    %77 = vector.load %arg3[%c0_94, %c0_95] : memref<256x128xf32, #tpu.memory_space<vmem>>, vector<256x128xf32>
    %c8 = arith.constant 8 : index
    %c0_96 = arith.constant 0 : index
    %c0_97 = arith.constant 0 : index
    %78 = vector.load %arg2[%c8, %c0_96, %c0_97] : memref<9x128x128xbf16, #tpu.memory_space<vmem>>, vector<1x128x128xbf16>
    %79 = vector.shape_cast %78 : vector<1x128x128xbf16> to vector<128x128xbf16>
    %cst_98 = arith.constant dense<0.000000e+00> : vector<256x128xf32>
    %80 = tpu.matmul %76, %79, %cst_98 {dimension_numbers = #tpu.dot_dimension_numbers<[1], [0], [0], [1], [0, 0, 1, 1], [], []>} : vector<256x128xbf16>, vector<128x128xbf16>, vector<256x128xf32> -> vector<256x128xf32>
    %81 = arith.addf %77, %80 : vector<256x128xf32>
    %c0_99 = arith.constant 0 : index
    %c0_100 = arith.constant 0 : index
    %82 = vector.load %arg3[%c0_99, %c0_100] : memref<256x128xf32, #tpu.memory_space<vmem>>, vector<256x128xf32>
    tpu.vector_store %arg3[%c0_99, %c0_100], %81 {strides = array<i32>} : memref<256x128xf32, #tpu.memory_space<vmem>>, vector<256x128xf32>,
    %c0_101 = arith.constant 0 : index
    %c0_102 = arith.constant 0 : index
    %83 = vector.load %arg3[%c0_101, %c0_102] : memref<256x128xf32, #tpu.memory_space<vmem>>, vector<256x128xf32>
    %cst_103 = arith.constant dense<0.000000e+00> : vector<128xf32>
    %84 = vector.multi_reduction <add>, %83, %cst_103 [0] : vector<256x128xf32> to vector<128xf32>
    %85 = vector.shape_cast %84 : vector<128xf32> to vector<1x128xf32>
    %c0_104 = arith.constant 0 : index
    %c0_105 = arith.constant 0 : index
    %c0_106 = arith.constant 0 : index
    %86 = vector.load %arg4[%c0_104, %c0_105, %c0_106] : memref<1x2x128xf32, #tpu.memory_space<vmem>>, vector<1x1x128xf32>
    %87 = vector.shape_cast %86 : vector<1x1x128xf32> to vector<1x128xf32>
    %88 = vector.shape_cast %85 : vector<1x128xf32> to vector<1x1x128xf32>
    tpu.vector_store %arg4[%c0_104, %c0_105, %c0_106], %88 {strides = array<i32>} : memref<1x2x128xf32, #tpu.memory_space<vmem>>, vector<1x1x128xf32>,
    %89 = arith.mulf %83, %83 : vector<256x128xf32>
    %cst_107 = arith.constant dense<0.000000e+00> : vector<128xf32>
    %90 = vector.multi_reduction <add>, %89, %cst_107 [0] : vector<256x128xf32> to vector<128xf32>
    %91 = vector.shape_cast %90 : vector<128xf32> to vector<1x128xf32>
    %c0_108 = arith.constant 0 : index
    %c1_109 = arith.constant 1 : index
    %c0_110 = arith.constant 0 : index
    %92 = vector.load %arg4[%c0_108, %c1_109, %c0_110] : memref<1x2x128xf32, #tpu.memory_space<vmem>>, vector<1x1x128xf32>
    %93 = vector.shape_cast %92 : vector<1x1x128xf32> to vector<1x128xf32>
    %94 = vector.shape_cast %91 : vector<1x128xf32> to vector<1x1x128xf32>
    tpu.vector_store %arg4[%c0_108, %c1_109, %c0_110], %94 {strides = array<i32>} : memref<1x2x128xf32, #tpu.memory_space<vmem>>, vector<1x1x128xf32>,
    return
  }
  func.func @transform_0(%arg0: i32) -> (i32, i32, i32, i32) {
    %c0_i32 = arith.constant 0 : i32
    %c0_i32_0 = arith.constant 0 : i32
    %c0_i32_1 = arith.constant 0 : i32
    %c0_i32_2 = arith.constant 0 : i32
    return %arg0, %c0_i32, %c0_i32_0, %c0_i32_1 : i32, i32, i32, i32
  }
  func.func @transform_1(%arg0: i32) -> (i32, i32, i32) {
    %c0_i32 = arith.constant 0 : i32
    %c0_i32_0 = arith.constant 0 : i32
    %c0_i32_1 = arith.constant 0 : i32
    %c0_i32_2 = arith.constant 0 : i32
    return %c0_i32, %c0_i32_0, %c0_i32_1 : i32, i32, i32
  }
  func.func @transform_2(%arg0: i32) -> (i32, i32) {
    %c0_i32 = arith.constant 0 : i32
    %c0_i32_0 = arith.constant 0 : i32
    return %arg0, %c0_i32 : i32, i32
  }
  func.func @transform_3(%arg0: i32) -> (i32, i32, i32) {
    %c0_i32 = arith.constant 0 : i32
    %c0_i32_0 = arith.constant 0 : i32
    %c0_i32_1 = arith.constant 0 : i32
    return %arg0, %c0_i32, %c0_i32_0 : i32, i32, i32
  }
}

</mosaic_0001>

<llo_original>
// kernel: tpu_custom_call.1
$region0: #{tpu_custom_call.1}
  #allocation0 [shape = 'u32[]', space=smem, size = 0x4, offset = 0x4, fixed_abs, tag = 'smem constant byte address 0x4 - core index']
  #allocation1 [shape = 'u32[144,128]{1,0:T(1,128)}', space=vmem, size = 0x12000, scoped, tag = 'internal scratch']
  %s0 = inlined_call_operand.vmem [shape: bf16[2,18,18,128], index: 0, kind: input, shape index: {}]
  %s1 = inlined_call_operand.vmem [shape: bf16[9,128,128], index: 1, kind: input, shape index: {}]
  %s2 = inlined_call_operand.hbm [shape: f32[512,128], index: 2, kind: output, shape index: {0}]
  %s3 = inlined_call_operand.hbm [shape: f32[2,2,128], index: 3, kind: output, shape index: {1}]
  %4 = xla_tuple %s2, %s3
  %s5 = sld [smem:[#allocation0]]
  $region49: #{tpu_custom_call.1} parent=0
    _
  %s7 = ssub.s32 1, %s5
  %s8 = scalar_select 0, %s7, %s5
  $region1: #{tpu_custom_call.1} parent=0
    #allocation2 [shape = 'u8[262144]{0}', space=vmem, size = 0x40000, scoped, tag = 'output window, operand 0']
    #allocation3 [shape = 's32[2]{0}', space=sflag, size = 0x8, scoped, tag = 'scoped memory for tpu_custom_call.1']
    #allocation4 [shape = 'u8[2048]{0}', space=vmem, size = 0x800, scoped, tag = 'output window, operand 1']
    #allocation5 [shape = 's32[2]{0}', space=sflag, size = 0x8, scoped, tag = 'scoped memory for tpu_custom_call.1']
    %9 = vsyncpa [#allocation3], 0
    %s10 = scalar_lea.sflag [#allocation3], 1
    %11 = vsyncpa %s10, 0
    %12 = vsyncpa [#allocation5], 0
    %s13 = scalar_lea.sflag [#allocation5], 1
    %14 = vsyncpa %s13, 0
    loop: start=0, step=1, limit=4
    $region2: #{tpu_custom_call.1} parent=1 // loop_pre_header
      _
    $region3: #{tpu_custom_call.1} parent=1 // loop_header
      %s16 = sphi 0, %s20
      %p17 = scmp.ge.s32.totalorder %s16, 4
      %s26 = sphi 0, %s28
      %s29 = sphi 0, %s26
      %s30 = sphi 0, %s29
      %s46 = sphi 0, %s30
      %s50 = sphi 0, %s50
      %s52 = sphi 0, %s50
      %s53 = sphi 0, %s52
      %s67 = sphi 0, %s53
      %s73 = sphi 0, %s75
      %s76 = sphi 0, %s73
      %s77 = sphi 0, %s76
      %s93 = sphi 0, %s77
      %s99 = sphi 0, %s101
      %s102 = sphi 0, %s99
      %s103 = sphi 0, %s102
      %s119 = sphi 0, %s103
    $region4: #{tpu_custom_call.1} parent=1 // loop_header_branch
      %19 = sbr.rel (%p17) target = $region8
    $region5: #{tpu_custom_call.1} parent=1 // loop_body
      %s21 = ssub.s32 %s16, 1
      %s22 = ssub.s32 %s16, 2
      %s23 = sadd.s32 %s16, 1
      %s24 = ssub.s32 %s16, %s23
      %p25 = scmp.eq.s32.totalorder %s24, 0
      %s27 = sadd.s32 %s26, 1
      %s28 = scalar_select %p25, %s26, %s27
      %p31 = pneg %p25
      %p32 = scmp.eq.s32.totalorder %s16, 1
      %p33 = por %p31, %p32
      %p34 = scmp.ne.s32.totalorder %s26, %s29
      %p35 = scmp.eq.s32.totalorder %s16, 0
      %p36 = por %p34, %p35
      %p37 = scmp.ne.s32.totalorder %s26, %s29
      %p38 = scmp.eq.s32.totalorder %s21, 1
      %p39 = por %p37, %p38
      %p40 = scmp.ne.s32.totalorder %s29, %s30
      %p41 = scmp.eq.s32.totalorder %s21, 0
      %p42 = por %p40, %p41
      %p43 = scmp.ne.s32.totalorder %s29, %s30
      %p44 = scmp.eq.s32.totalorder %s22, 1
      %p45 = por %p43, %p44
      %p47 = scmp.ne.s32.totalorder %s30, %s46
      %p48 = scmp.eq.s32.totalorder %s22, 0
      %p49 = por %p47, %p48
      %s51 = sadd.s32 %s50, 1
      %p54 = scmp.eq.s32.totalorder %s16, 1
      %p55 = scmp.ne.s32.totalorder %s50, %s52
      %p56 = scmp.eq.s32.totalorder %s16, 0
      %p57 = por %p55, %p56
      %p58 = scmp.ne.s32.totalorder %s50, %s52
      %p59 = scmp.eq.s32.totalorder %s21, 1
      %p60 = por %p58, %p59
      %p61 = scmp.ne.s32.totalorder %s52, %s53
      %p62 = scmp.eq.s32.totalorder %s21, 0
      %p63 = por %p61, %p62
      %p64 = scmp.ne.s32.totalorder %s52, %s53
      %p65 = scmp.eq.s32.totalorder %s22, 1
      %p66 = por %p64, %p65
      %p68 = scmp.ne.s32.totalorder %s53, %s67
      %p69 = scmp.eq.s32.totalorder %s22, 0
      %p70 = por %p68, %p69
      %s71 = ssub.s32 %s16, %s23
      %p72 = scmp.eq.s32.totalorder %s71, 0
      %s74 = sadd.s32 %s73, 1
      %s75 = scalar_select %p72, %s73, %s74
      %p78 = pneg %p72
      %p79 = scmp.eq.s32.totalorder %s16, 1
      %p80 = por %p78, %p79
      %p81 = scmp.ne.s32.totalorder %s73, %s76
      %p82 = scmp.eq.s32.totalorder %s16, 0
      %p83 = por %p81, %p82
      %p84 = scmp.ne.s32.totalorder %s73, %s76
      %p85 = scmp.eq.s32.totalorder %s21, 1
      %p86 = por %p84, %p85
      %p87 = scmp.ne.s32.totalorder %s76, %s77
      %p88 = scmp.eq.s32.totalorder %s21, 0
      %p89 = por %p87, %p88
      %p90 = scmp.ne.s32.totalorder %s76, %s77
      %p91 = scmp.eq.s32.totalorder %s22, 1
      %p92 = por %p90, %p91
      %p94 = scmp.ne.s32.totalorder %s77, %s93
      %p95 = scmp.eq.s32.totalorder %s22, 0
      %p96 = por %p94, %p95
      %s97 = ssub.s32 %s16, %s23
      %p98 = scmp.eq.s32.totalorder %s97, 0
      %s100 = sadd.s32 %s99, 1
      %s101 = scalar_select %p98, %s99, %s100
      %p104 = pneg %p98
      %p105 = scmp.eq.s32.totalorder %s16, 1
      %p106 = por %p104, %p105
      %p107 = scmp.ne.s32.totalorder %s99, %s102
      %p108 = scmp.eq.s32.totalorder %s16, 0
      %p109 = por %p107, %p108
      %p110 = scmp.ne.s32.totalorder %s99, %s102
      %p111 = scmp.eq.s32.totalorder %s21, 1
      %p112 = por %p110, %p111
      %p113 = scmp.ne.s32.totalorder %s102, %s103
      %p114 = scmp.eq.s32.totalorder %s21, 0
      %p115 = por %p113, %p114
      %p116 = scmp.ne.s32.totalorder %s102, %s103
      %p117 = scmp.eq.s32.totalorder %s22, 1
      %p118 = por %p116, %p117
      %p120 = scmp.ne.s32.totalorder %s103, %s119
      %p121 = scmp.eq.s32.totalorder %s22, 0
      %p122 = por %p120, %p121
      %p123 = scmp.le.s32.totalorder 1, %s16
      %p124 = scmp.lt.s32.totalorder %s16, 3
      %p125 = pnand %p123, %p124
      %p126 = pneg %p125
      // Predicated region
      $region9: #{tpu_custom_call.1} parent=5 // pred_check
        _
      $region10: #{tpu_custom_call.1} parent=5 // pred_check_branch
        %128 = sbr.rel (%p125) target = $region12
      $region11: #{tpu_custom_call.1} parent=5 // pred_region
        %s129 = ssub.s32 %s16, 1
        // Predicated region
        $region13: #{tpu_custom_call.1} parent=11 // pred_check
          %p130 = pneg %p63
        $region14: #{tpu_custom_call.1} parent=11 // pred_check_branch
          %132 = sbr.rel (%p130) target = $region16
        $region15: #{tpu_custom_call.1} parent=11 // pred_region
          _
        $region16: #{tpu_custom_call.1} parent=11 // pred_fallthru
          _
      $region12: #{tpu_custom_call.1} parent=5 // pred_fallthru
        _
      %p133 = scmp.lt.s32.totalorder %s16, 2
      // Predicated region
      $region17: #{tpu_custom_call.1} parent=5 // pred_check
        %p134 = pneg %p133
      $region18: #{tpu_custom_call.1} parent=5 // pred_check_branch
        %136 = sbr.rel (%p134) target = $region20
      $region19: #{tpu_custom_call.1} parent=5 // pred_region
        // Predicated region
        $region21: #{tpu_custom_call.1} parent=19 // pred_check
          %p137 = pneg %p36
        $region22: #{tpu_custom_call.1} parent=19 // pred_check_branch
          %139 = sbr.rel (%p137) target = $region24
        $region23: #{tpu_custom_call.1} parent=19 // pred_region
          %p140 = scmp.lt.s32.totalorder %s16, 1
          %s141 = scalar_select %p140, %s16, 1
          %s142 = smul.addr %s141, 54
          %s143 = smul.addr %s142, 4
          %s144 = scalar_lea.vmem %s0, %s143
        $region24: #{tpu_custom_call.1} parent=19 // pred_fallthru
          _
      $region20: #{tpu_custom_call.1} parent=5 // pred_fallthru
        _
      %p145 = scmp.le.s32.totalorder 1, %s16
      %p146 = scmp.lt.s32.totalorder %s16, 3
      %p147 = pnand %p145, %p146
      %p148 = pneg %p147
      // Predicated region
      $region25: #{tpu_custom_call.1} parent=5 // pred_check
        _
      $region26: #{tpu_custom_call.1} parent=5 // pred_check_branch
        %150 = sbr.rel (%p147) target = $region28
      $region27: #{tpu_custom_call.1} parent=5 // pred_region
        %s151 = ssub.s32 %s16, 1
        %p152 = scmp.lt.s32.totalorder %s21, 1
        %s153 = scalar_select %p152, %s21, 1
        %s154 = smul.addr %s153, 54
        %s155 = smul.addr %s154, 4
        %s156 = scalar_lea.vmem %s0, %s155
        %p157 = pneg %p42
        %p158 = pneg %p39
        %p159 = pneg %p63
        %p160 = pneg %p60
        %p161 = pneg %p89
        %p162 = pneg %p86
        %s163 = sand.u32 %s76, 1
        %s164 = scalar_lea.sflag [#allocation3], %s163
        %s165 = sand.u32 %s76, 1
        %s166 = smul.addr %s165, 256
        %s167 = scalar_lea.vmem [#allocation2], %s166
        %p168 = pneg %p115
        %p169 = pneg %p112
        %s170 = sand.u32 %s102, 1
        %s171 = scalar_lea.sflag [#allocation5], %s170
        %s172 = sand.u32 %s102, 1
        %s173 = smul.addr %s172, 2
        %s174 = scalar_lea.vmem [#allocation4], %s173
        %p175 = scmp.lt.s32.totalorder %s21, 1
        %s176 = scalar_select %p175, %s21, 1
        %s177 = smul.addr %s176, 54
        %s178 = smul.addr %s177, 4
        %s179 = scalar_lea.vmem %s0, %s178
        %s180 = smul.u32 32, %s21
        %182 = vst [vmem:[%s167] sm:$0xff] 0.0
        %183 = vst [vmem:[%s167 + $0x8] sm:$0xff] 0.0
        %184 = vst [vmem:[%s167 + $0x10] sm:$0xff] 0.0
        %185 = vst [vmem:[%s167 + $0x18] sm:$0xff] 0.0
        %186 = vst [vmem:[%s167 + $0x20] sm:$0xff] 0.0
        %187 = vst [vmem:[%s167 + $0x28] sm:$0xff] 0.0
        %188 = vst [vmem:[%s167 + $0x30] sm:$0xff] 0.0
        %189 = vst [vmem:[%s167 + $0x38] sm:$0xff] 0.0
        %190 = vst [vmem:[%s167 + $0x40] sm:$0xff] 0.0
        %191 = vst [vmem:[%s167 + $0x48] sm:$0xff] 0.0
        %192 = vst [vmem:[%s167 + $0x50] sm:$0xff] 0.0
        %193 = vst [vmem:[%s167 + $0x58] sm:$0xff] 0.0
        %194 = vst [vmem:[%s167 + $0x60] sm:$0xff] 0.0
        %195 = vst [vmem:[%s167 + $0x68] sm:$0xff] 0.0
        %196 = vst [vmem:[%s167 + $0x70] sm:$0xff] 0.0
        %197 = vst [vmem:[%s167 + $0x78] sm:$0xff] 0.0
        %198 = vst [vmem:[%s167 + $0x80] sm:$0xff] 0.0
        %199 = vst [vmem:[%s167 + $0x88] sm:$0xff] 0.0
        %200 = vst [vmem:[%s167 + $0x90] sm:$0xff] 0.0
        %201 = vst [vmem:[%s167 + $0x98] sm:$0xff] 0.0
        %202 = vst [vmem:[%s167 + $0xa0] sm:$0xff] 0.0
        %203 = vst [vmem:[%s167 + $0xa8] sm:$0xff] 0.0
        %204 = vst [vmem:[%s167 + $0xb0] sm:$0xff] 0.0
        %205 = vst [vmem:[%s167 + $0xb8] sm:$0xff] 0.0
        %206 = vst [vmem:[%s167 + $0xc0] sm:$0xff] 0.0
        %207 = vst [vmem:[%s167 + $0xc8] sm:$0xff] 0.0
        %208 = vst [vmem:[%s167 + $0xd0] sm:$0xff] 0.0
        %209 = vst [vmem:[%s167 + $0xd8] sm:$0xff] 0.0
        %210 = vst [vmem:[%s167 + $0xe0] sm:$0xff] 0.0
        %211 = vst [vmem:[%s167 + $0xe8] sm:$0xff] 0.0
        %212 = vst [vmem:[%s167 + $0xf0] sm:$0xff] 0.0
        %213 = vst [vmem:[%s167 + $0xf8] sm:$0xff] 0.0
        %v214 = vld [vmem:[%s179] sm:$0xf]
        %v215 = vld [vmem:[%s179 + $0x4] sm:$0xf]
        %v216 = vld [vmem:[%s179 + $0xc] sm:$0xf]
        %v217 = vld [vmem:[%s179 + $0x10] sm:$0xf]
        %v218 = vld [vmem:[%s179 + $0x18] sm:$0xf]
        %v219 = vld [vmem:[%s179 + $0x1c] sm:$0xf]
        %v220 = vld [vmem:[%s179 + $0x24] sm:$0xf]
        %v221 = vld [vmem:[%s179 + $0x28] sm:$0xf]
        %v222 = vld [vmem:[%s179 + $0x30] sm:$0xf]
        %v223 = vld [vmem:[%s179 + $0x34] sm:$0xf]
        %v224 = vld [vmem:[%s179 + $0x3c] sm:$0xf]
        %v225 = vld [vmem:[%s179 + $0x40] sm:$0xf]
        %v226 = vld [vmem:[%s179 + $0x48] sm:$0xf]
        %v227 = vld [vmem:[%s179 + $0x4c] sm:$0xf]
        %v228 = vld [vmem:[%s179 + $0x54] sm:$0xf]
        %v229 = vld [vmem:[%s179 + $0x58] sm:$0xf]
        %v230 = vld [vmem:[%s179 + $0x60] sm:$0xf]
        %v231 = vld [vmem:[%s179 + $0x64] sm:$0xf]
        %v232 = vld [vmem:[%s179 + $0x6c] sm:$0xf]
        %v233 = vld [vmem:[%s179 + $0x70] sm:$0xf]
        %v234 = vld [vmem:[%s179 + $0x78] sm:$0xf]
        %v235 = vld [vmem:[%s179 + $0x7c] sm:$0xf]
        %v236 = vld [vmem:[%s179 + $0x84] sm:$0xf]
        %v237 = vld [vmem:[%s179 + $0x88] sm:$0xf]
        %v238 = vld [vmem:[%s179 + $0x90] sm:$0xf]
        %v239 = vld [vmem:[%s179 + $0x94] sm:$0xf]
        %v240 = vld [vmem:[%s179 + $0x9c] sm:$0xf]
        %v241 = vld [vmem:[%s179 + $0xa0] sm:$0xf]
        %v242 = vld [vmem:[%s179 + $0xa8] sm:$0xf]
        %v243 = vld [vmem:[%s179 + $0xac] sm:$0xf]
        %v244 = vld [vmem:[%s179 + $0xb4] sm:$0xf]
        %v245 = vld [vmem:[%s179 + $0xb8] sm:$0xf]
        %v246 = vld [vmem:[%s167] sm:$0xff]
        %v247 = vld [vmem:[%s167 + $0x8] sm:$0xff]
        %v248 = vld [vmem:[%s167 + $0x10] sm:$0xff]
        %v249 = vld [vmem:[%s167 + $0x18] sm:$0xff]
        %v250 = vld [vmem:[%s167 + $0x20] sm:$0xff]
        %v251 = vld [vmem:[%s167 + $0x28] sm:$0xff]
        %v252 = vld [vmem:[%s167 + $0x30] sm:$0xff]
        %v253 = vld [vmem:[%s167 + $0x38] sm:$0xff]
        %v254 = vld [vmem:[%s167 + $0x40] sm:$0xff]
        %v255 = vld [vmem:[%s167 + $0x48] sm:$0xff]
        %v256 = vld [vmem:[%s167 + $0x50] sm:$0xff]
        %v257 = vld [vmem:[%s167 + $0x58] sm:$0xff]
        %v258 = vld [vmem:[%s167 + $0x60] sm:$0xff]
        %v259 = vld [vmem:[%s167 + $0x68] sm:$0xff]
        %v260 = vld [vmem:[%s167 + $0x70] sm:$0xff]
        %v261 = vld [vmem:[%s167 + $0x78] sm:$0xff]
        %v262 = vld [vmem:[%s167 + $0x80] sm:$0xff]
        %v263 = vld [vmem:[%s167 + $0x88] sm:$0xff]
        %v264 = vld [vmem:[%s167 + $0x90] sm:$0xff]
        %v265 = vld [vmem:[%s167 + $0x98] sm:$0xff]
        %v266 = vld [vmem:[%s167 + $0xa0] sm:$0xff]
        %v267 = vld [vmem:[%s167 + $0xa8] sm:$0xff]
        %v268 = vld [vmem:[%s167 + $0xb0] sm:$0xff]
        %v269 = vld [vmem:[%s167 + $0xb8] sm:$0xff]
        %v270 = vld [vmem:[%s167 + $0xc0] sm:$0xff]
        %v271 = vld [vmem:[%s167 + $0xc8] sm:$0xff]
        %v272 = vld [vmem:[%s167 + $0xd0] sm:$0xff]
        %v273 = vld [vmem:[%s167 + $0xd8] sm:$0xff]
        %v274 = vld [vmem:[%s167 + $0xe0] sm:$0xff]
        %v275 = vld [vmem:[%s167 + $0xe8] sm:$0xff]
        %v276 = vld [vmem:[%s167 + $0xf0] sm:$0xff]
        %v277 = vld [vmem:[%s167 + $0xf8] sm:$0xff]
        %v278 = vld [vmem:[%s1] sm:$0xf]
        %v279 = vld [vmem:[%s1 + $0x4] sm:$0xf]
        %v280 = vld [vmem:[%s1 + $0x8] sm:$0xf]
        %v281 = vld [vmem:[%s1 + $0xc] sm:$0xf]
        %v282 = vld [vmem:[%s1 + $0x10] sm:$0xf]
        %v283 = vld [vmem:[%s1 + $0x14] sm:$0xf]
        %v284 = vld [vmem:[%s1 + $0x18] sm:$0xf]
        %v285 = vld [vmem:[%s1 + $0x1c] sm:$0xf]
        %v286 = vld [vmem:[%s1 + $0x20] sm:$0xf]
        %v287 = vld [vmem:[%s1 + $0x24] sm:$0xf]
        %v288 = vld [vmem:[%s1 + $0x28] sm:$0xf]
        %v289 = vld [vmem:[%s1 + $0x2c] sm:$0xf]
        %v290 = vld [vmem:[%s1 + $0x30] sm:$0xf]
        %v291 = vld [vmem:[%s1 + $0x34] sm:$0xf]
        %v292 = vld [vmem:[%s1 + $0x38] sm:$0xf]
        %v293 = vld [vmem:[%s1 + $0x3c] sm:$0xf]
        %v326 = vunpack.c.l.b16 %v214
        %v327 = vunpack.c.l.b16 %v215
        %v328 = vunpack.c.l.b16 %v216
        %v329 = vunpack.c.l.b16 %v217
        %v330 = vunpack.c.l.b16 %v218
        %v331 = vunpack.c.l.b16 %v219
        %v332 = vunpack.c.l.b16 %v220
        %v333 = vunpack.c.l.b16 %v221
        %v334 = vunpack.c.l.b16 %v222
        %v335 = vunpack.c.l.b16 %v223
        %v336 = vunpack.c.l.b16 %v224
        %v337 = vunpack.c.l.b16 %v225
        %v338 = vunpack.c.l.b16 %v226
        %v339 = vunpack.c.l.b16 %v227
        %v340 = vunpack.c.l.b16 %v228
        %v341 = vunpack.c.l.b16 %v229
        %v342 = vunpack.c.l.b16 %v230
        %v343 = vunpack.c.l.b16 %v231
        %v344 = vunpack.c.l.b16 %v232
        %v345 = vunpack.c.l.b16 %v233
        %v346 = vunpack.c.l.b16 %v234
        %v347 = vunpack.c.l.b16 %v235
        %v348 = vunpack.c.l.b16 %v236
        %v349 = vunpack.c.l.b16 %v237
        %v350 = vunpack.c.l.b16 %v238
        %v351 = vunpack.c.l.b16 %v239
        %v352 = vunpack.c.l.b16 %v240
        %v353 = vunpack.c.l.b16 %v241
        %v354 = vunpack.c.l.b16 %v242
        %v355 = vunpack.c.l.b16 %v243
        %v356 = vunpack.c.l.b16 %v244
        %v357 = vunpack.c.l.b16 %v245
        %v358 = vpack.c.b16 %v327, %v326
        %v359 = vpack.c.b16 %v329, %v328
        %v360 = vpack.c.b16 %v331, %v330
        %v361 = vpack.c.b16 %v333, %v332
        %v362 = vpack.c.b16 %v335, %v334
        %v363 = vpack.c.b16 %v337, %v336
        %v364 = vpack.c.b16 %v339, %v338
        %v365 = vpack.c.b16 %v341, %v340
        %v366 = vpack.c.b16 %v343, %v342
        %v367 = vpack.c.b16 %v345, %v344
        %v368 = vpack.c.b16 %v347, %v346
        %v369 = vpack.c.b16 %v349, %v348
        %v370 = vpack.c.b16 %v351, %v350
        %v371 = vpack.c.b16 %v353, %v352
        %v372 = vpack.c.b16 %v355, %v354
        %v373 = vpack.c.b16 %v357, %v356
        %v406 = vunpack.c.l.b16 %v278
        %v407 = vunpack.c.l.b16 %v279
        %v408 = vunpack.c.l.b16 %v280
        %v409 = vunpack.c.l.b16 %v281
        %v410 = vunpack.c.l.b16 %v282
        %v411 = vunpack.c.l.b16 %v283
        %v412 = vunpack.c.l.b16 %v284
        %v413 = vunpack.c.l.b16 %v285
        %v414 = vunpack.c.l.b16 %v286
        %v415 = vunpack.c.l.b16 %v287
        %v416 = vunpack.c.l.b16 %v288
        %v417 = vunpack.c.l.b16 %v289
        %v418 = vunpack.c.l.b16 %v290
        %v419 = vunpack.c.l.b16 %v291
        %v420 = vunpack.c.l.b16 %v292
        %v421 = vunpack.c.l.b16 %v293
        %v422 = vpack.c.b16 %v407, %v406
        %v423 = vpack.c.b16 %v409, %v408
        %v424 = vpack.c.b16 %v411, %v410
        %v425 = vpack.c.b16 %v413, %v412
        %v426 = vpack.c.b16 %v415, %v414
        %v427 = vpack.c.b16 %v417, %v416
        %v428 = vpack.c.b16 %v419, %v418
        %v429 = vpack.c.b16 %v421, %v420
        %438 = vmatprep.subr.bf16.mxu0 0
        %439 = vmatpush1.bf16.msra.mxu0 %v429
        %440 = vmatprep.subr.bf16.mxu0 0
        %441 = vmatpush1.bf16.msra.mxu0 %v428
        %442 = vmatprep.subr.bf16.mxu0 0
        %443 = vmatpush1.bf16.msra.mxu0 %v427
        %444 = vmatprep.subr.bf16.mxu0 0
        %445 = vmatpush1.bf16.msra.mxu0 %v426
        %446 = vmatprep.subr.bf16.mxu0 0
        %447 = vmatpush1.bf16.msra.mxu0 %v425
        %448 = vmatprep.subr.bf16.mxu0 0
        %449 = vmatpush1.bf16.msra.mxu0 %v424
        %450 = vmatprep.subr.bf16.mxu0 0
        %451 = vmatpush1.bf16.msra.mxu0 %v423
        %452 = vmatprep.subr.bf16.mxu0 0
        %453 = vmatpush1.bf16.msra.mxu0 %v422
        %454 = vmatprep.subr.bf16.mxu0 0
        %455 = vmatpush2.bf16.msra.mxu0 0
        %456 = vmatprep.subr.bf16.mxu0 0
        %457 = vmatpush2.bf16.msra.mxu0 0
        %458 = vmatprep.subr.bf16.mxu0 0
        %459 = vmatpush2.bf16.msra.mxu0 0
        %460 = vmatprep.subr.bf16.mxu0 0
        %461 = vmatpush2.bf16.msra.mxu0 0
        %462 = vmatprep.subr.bf16.mxu0 0
        %463 = vmatpush2.bf16.msra.mxu0 0
        %464 = vmatprep.subr.bf16.mxu0 0
        %465 = vmatpush2.bf16.msra.mxu0 0
        %466 = vmatprep.subr.bf16.mxu0 0
        %467 = vmatpush2.bf16.msra.mxu0 0
        %468 = vmatprep.subr.bf16.mxu0 0
        %469 = vmatpush2.bf16.msra.mxu0 0
        %470 = vmatprep.mubr.bf16.mxu0 0
        %471 = vmatmul.mubr.bf16.gmra.mxu0 %v358
        %v472 = vpop.f32.mrf.mxu0
        %v473 = vadd.f32 0.0, %v472
        %v474 = vpop.f32.mrf.mxu0
        %v475 = vpop.f32.mrf.mxu0
        %v476 = vadd.f32 0.0, %v475
        %v477 = vpop.f32.mrf.mxu0
        %478 = vmatprep.mubr.bf16.mxu0 0
        %479 = vmatmul.mubr.bf16.gmra.mxu0 %v359
        %v480 = vpop.f32.mrf.mxu0
        %v481 = vadd.f32 0.0, %v480
        %v482 = vpop.f32.mrf.mxu0
        %v483 = vpop.f32.mrf.mxu0
        %v484 = vadd.f32 0.0, %v483
        %v485 = vpop.f32.mrf.mxu0
        %486 = vmatprep.mubr.bf16.mxu0 0
        %487 = vmatmul.mubr.bf16.gmra.mxu0 %v360
        %v488 = vpop.f32.mrf.mxu0
        %v489 = vadd.f32 0.0, %v488
        %v490 = vpop.f32.mrf.mxu0
        %v491 = vpop.f32.mrf.mxu0
        %v492 = vadd.f32 0.0, %v491
        %v493 = vpop.f32.mrf.mxu0
        %494 = vmatprep.mubr.bf16.mxu0 0
        %495 = vmatmul.mubr.bf16.gmra.mxu0 %v361
        %v496 = vpop.f32.mrf.mxu0
        %v497 = vadd.f32 0.0, %v496
        %v498 = vpop.f32.mrf.mxu0
        %v499 = vpop.f32.mrf.mxu0
        %v500 = vadd.f32 0.0, %v499
        %v501 = vpop.f32.mrf.mxu0
        %502 = vmatprep.mubr.bf16.mxu0 0
        %503 = vmatmul.mubr.bf16.gmra.mxu0 %v362
        %v504 = vpop.f32.mrf.mxu0
        %v505 = vadd.f32 0.0, %v504
        %v506 = vpop.f32.mrf.mxu0
        %v507 = vpop.f32.mrf.mxu0
        %v508 = vadd.f32 0.0, %v507
        %v509 = vpop.f32.mrf.mxu0
        %510 = vmatprep.mubr.bf16.mxu0 0
        %511 = vmatmul.mubr.bf16.gmra.mxu0 %v363
        %v512 = vpop.f32.mrf.mxu0
        %v513 = vadd.f32 0.0, %v512
        %v514 = vpop.f32.mrf.mxu0
        %v515 = vpop.f32.mrf.mxu0
        %v516 = vadd.f32 0.0, %v515
        %v517 = vpop.f32.mrf.mxu0
        %518 = vmatprep.mubr.bf16.mxu0 0
        %519 = vmatmul.mubr.bf16.gmra.mxu0 %v364
        %v520 = vpop.f32.mrf.mxu0
        %v521 = vadd.f32 0.0, %v520
        %v522 = vpop.f32.mrf.mxu0
        %v523 = vpop.f32.mrf.mxu0
        %v524 = vadd.f32 0.0, %v523
        %v525 = vpop.f32.mrf.mxu0
        %526 = vmatprep.mubr.bf16.mxu0 0
        %527 = vmatmul.mubr.bf16.gmra.mxu0 %v365
        %v528 = vpop.f32.mrf.mxu0
        %v529 = vadd.f32 0.0, %v528
        %v530 = vpop.f32.mrf.mxu0
        %v531 = vpop.f32.mrf.mxu0
        %v532 = vadd.f32 0.0, %v531
        %v533 = vpop.f32.mrf.mxu0
        %534 = vmatprep.mubr.bf16.mxu0 0
        %535 = vmatmul.mubr.bf16.gmra.mxu0 %v366
        %v536 = vpop.f32.mrf.mxu0
        %v537 = vadd.f32 0.0, %v536
        %v538 = vpop.f32.mrf.mxu0
        %v539 = vpop.f32.mrf.mxu0
        %v540 = vadd.f32 0.0, %v539
        %v541 = vpop.f32.mrf.mxu0
        %542 = vmatprep.mubr.bf16.mxu0 0
        %543 = vmatmul.mubr.bf16.gmra.mxu0 %v367
        %v544 = vpop.f32.mrf.mxu0
        %v545 = vadd.f32 0.0, %v544
        %v546 = vpop.f32.mrf.mxu0
        %v547 = vpop.f32.mrf.mxu0
        %v548 = vadd.f32 0.0, %v547
        %v549 = vpop.f32.mrf.mxu0
        %550 = vmatprep.mubr.bf16.mxu0 0
        %551 = vmatmul.mubr.bf16.gmra.mxu0 %v368
        %v552 = vpop.f32.mrf.mxu0
        %v553 = vadd.f32 0.0, %v552
        %v554 = vpop.f32.mrf.mxu0
        %v555 = vpop.f32.mrf.mxu0
        %v556 = vadd.f32 0.0, %v555
        %v557 = vpop.f32.mrf.mxu0
        %558 = vmatprep.mubr.bf16.mxu0 0
        %559 = vmatmul.mubr.bf16.gmra.mxu0 %v369
        %v560 = vpop.f32.mrf.mxu0
        %v561 = vadd.f32 0.0, %v560
        %v562 = vpop.f32.mrf.mxu0
        %v563 = vpop.f32.mrf.mxu0
        %v564 = vadd.f32 0.0, %v563
        %v565 = vpop.f32.mrf.mxu0
        %566 = vmatprep.mubr.bf16.mxu0 0
        %567 = vmatmul.mubr.bf16.gmra.mxu0 %v370
        %v568 = vpop.f32.mrf.mxu0
        %v569 = vadd.f32 0.0, %v568
        %v570 = vpop.f32.mrf.mxu0
        %v571 = vpop.f32.mrf.mxu0
        %v572 = vadd.f32 0.0, %v571
        %v573 = vpop.f32.mrf.mxu0
        %574 = vmatprep.mubr.bf16.mxu0 0
        %575 = vmatmul.mubr.bf16.gmra.mxu0 %v371
        %v576 = vpop.f32.mrf.mxu0
        %v577 = vadd.f32 0.0, %v576
        %v578 = vpop.f32.mrf.mxu0
        %v579 = vpop.f32.mrf.mxu0
        %v580 = vadd.f32 0.0, %v579
        %v581 = vpop.f32.mrf.mxu0
        %582 = vmatprep.mubr.bf16.mxu0 0
        %583 = vmatmul.mubr.bf16.gmra.mxu0 %v372
        %v584 = vpop.f32.mrf.mxu0
        %v585 = vadd.f32 0.0, %v584
        %v586 = vpop.f32.mrf.mxu0
        %v587 = vpop.f32.mrf.mxu0
        %v588 = vadd.f32 0.0, %v587
        %v589 = vpop.f32.mrf.mxu0
        %590 = vmatprep.mubr.bf16.mxu0 0
        %591 = vmatmul.mubr.bf16.gmra.mxu0 %v373
        %v592 = vpop.f32.mrf.mxu0
        %v593 = vadd.f32 0.0, %v592
        %v594 = vpop.f32.mrf.mxu0
        %v595 = vpop.f32.mrf.mxu0
        %v596 = vadd.f32 0.0, %v595
        %v597 = vpop.f32.mrf.mxu0
        %598 = vdwg.mxu0
        %v599 = vadd.f32 %v246, %v473
        %v600 = vadd.f32 %v247, %v476
        %v601 = vadd.f32 %v248, %v481
        %v602 = vadd.f32 %v249, %v484
        %v603 = vadd.f32 %v250, %v489
        %v604 = vadd.f32 %v251, %v492
        %v605 = vadd.f32 %v252, %v497
        %v606 = vadd.f32 %v253, %v500
        %v607 = vadd.f32 %v254, %v505
        %v608 = vadd.f32 %v255, %v508
        %v609 = vadd.f32 %v256, %v513
        %v610 = vadd.f32 %v257, %v516
        %v611 = vadd.f32 %v258, %v521
        %v612 = vadd.f32 %v259, %v524
        %v613 = vadd.f32 %v260, %v529
        %v614 = vadd.f32 %v261, %v532
        %v615 = vadd.f32 %v262, %v537
        %v616 = vadd.f32 %v263, %v540
        %v617 = vadd.f32 %v264, %v545
        %v618 = vadd.f32 %v265, %v548
        %v619 = vadd.f32 %v266, %v553
        %v620 = vadd.f32 %v267, %v556
        %v621 = vadd.f32 %v268, %v561
        %v622 = vadd.f32 %v269, %v564
        %v623 = vadd.f32 %v270, %v569
        %v624 = vadd.f32 %v271, %v572
        %v625 = vadd.f32 %v272, %v577
        %v626 = vadd.f32 %v273, %v580
        %v627 = vadd.f32 %v274, %v585
        %v628 = vadd.f32 %v275, %v588
        %v629 = vadd.f32 %v276, %v593
        %v630 = vadd.f32 %v277, %v596
        %631 = vst [vmem:[%s167] sm:$0xff] %v599
        %632 = vst [vmem:[%s167 + $0x8] sm:$0xff] %v600
        %633 = vst [vmem:[%s167 + $0x10] sm:$0xff] %v601
        %634 = vst [vmem:[%s167 + $0x18] sm:$0xff] %v602
        %635 = vst [vmem:[%s167 + $0x20] sm:$0xff] %v603
        %636 = vst [vmem:[%s167 + $0x28] sm:$0xff] %v604
        %637 = vst [vmem:[%s167 + $0x30] sm:$0xff] %v605
        %638 = vst [vmem:[%s167 + $0x38] sm:$0xff] %v606
        %639 = vst [vmem:[%s167 + $0x40] sm:$0xff] %v607
        %640 = vst [vmem:[%s167 + $0x48] sm:$0xff] %v608
        %641 = vst [vmem:[%s167 + $0x50] sm:$0xff] %v609
        %642 = vst [vmem:[%s167 + $0x58] sm:$0xff] %v610
        %643 = vst [vmem:[%s167 + $0x60] sm:$0xff] %v611
        %644 = vst [vmem:[%s167 + $0x68] sm:$0xff] %v612
        %645 = vst [vmem:[%s167 + $0x70] sm:$0xff] %v613
        %646 = vst [vmem:[%s167 + $0x78] sm:$0xff] %v614
        %647 = vst [vmem:[%s167 + $0x80] sm:$0xff] %v615
        %648 = vst [vmem:[%s167 + $0x88] sm:$0xff] %v616
        %649 = vst [vmem:[%s167 + $0x90] sm:$0xff] %v617
        %650 = vst [vmem:[%s167 + $0x98] sm:$0xff] %v618
        %651 = vst [vmem:[%s167 + $0xa0] sm:$0xff] %v619
        %652 = vst [vmem:[%s167 + $0xa8] sm:$0xff] %v620
        %653 = vst [vmem:[%s167 + $0xb0] sm:$0xff] %v621
        %654 = vst [vmem:[%s167 + $0xb8] sm:$0xff] %v622
        %655 = vst [vmem:[%s167 + $0xc0] sm:$0xff] %v623
        %656 = vst [vmem:[%s167 + $0xc8] sm:$0xff] %v624
        %657 = vst [vmem:[%s167 + $0xd0] sm:$0xff] %v625
        %658 = vst [vmem:[%s167 + $0xd8] sm:$0xff] %v626
        %659 = vst [vmem:[%s167 + $0xe0] sm:$0xff] %v627
        %660 = vst [vmem:[%s167 + $0xe8] sm:$0xff] %v628
        %661 = vst [vmem:[%s167 + $0xf0] sm:$0xff] %v629
        %662 = vst [vmem:[%s167 + $0xf8] sm:$0xff] %v630
        %v663 = vld [vmem:[%s179] sm:$0xf]
        %v664 = vld [vmem:[%s179 + $0x4] sm:$0xf]
        %v665 = vld [vmem:[%s179 + $0x8] sm:$0x1]
        %v666 = vld [vmem:[%s179 + $0xc] sm:$0xf]
        %v667 = vld [vmem:[%s179 + $0x10] sm:$0xf]
        %v668 = vld [vmem:[%s179 + $0x14] sm:$0x1]
        %v669 = vld [vmem:[%s179 + $0x18] sm:$0xf]
        %v670 = vld [vmem:[%s179 + $0x1c] sm:$0xf]
        %v671 = vld [vmem:[%s179 + $0x20] sm:$0x1]
        %v672 = vld [vmem:[%s179 + $0x24] sm:$0xf]
        %v673 = vld [vmem:[%s179 + $0x28] sm:$0xf]
        %v674 = vld [vmem:[%s179 + $0x2c] sm:$0x1]
        %v675 = vld [vmem:[%s179 + $0x30] sm:$0xf]
        %v676 = vld [vmem:[%s179 + $0x34] sm:$0xf]
        %v677 = vld [vmem:[%s179 + $0x38] sm:$0x1]
        %v678 = vld [vmem:[%s179 + $0x3c] sm:$0xf]
        %v679 = vld [vmem:[%s179 + $0x40] sm:$0xf]
        %v680 = vld [vmem:[%s179 + $0x44] sm:$0x1]
        %v681 = vld [vmem:[%s179 + $0x48] sm:$0xf]
        %v682 = vld [vmem:[%s179 + $0x4c] sm:$0xf]
        %v683 = vld [vmem:[%s179 + $0x50] sm:$0x1]
        %v684 = vld [vmem:[%s179 + $0x54] sm:$0xf]
        %v685 = vld [vmem:[%s179 + $0x58] sm:$0xf]
        %v686 = vld [vmem:[%s179 + $0x5c] sm:$0x1]
        %v687 = vld [vmem:[%s179 + $0x60] sm:$0xf]
        %v688 = vld [vmem:[%s179 + $0x64] sm:$0xf]
        %v689 = vld [vmem:[%s179 + $0x68] sm:$0x1]
        %v690 = vld [vmem:[%s179 + $0x6c] sm:$0xf]
        %v691 = vld [vmem:[%s179 + $0x70] sm:$0xf]
        %v692 = vld [vmem:[%s179 + $0x74] sm:$0x1]
        %v693 = vld [vmem:[%s179 + $0x78] sm:$0xf]
        %v694 = vld [vmem:[%s179 + $0x7c] sm:$0xf]
        %v695 = vld [vmem:[%s179 + $0x80] sm:$0x1]
        %v696 = vld [vmem:[%s179 + $0x84] sm:$0xf]
        %v697 = vld [vmem:[%s179 + $0x88] sm:$0xf]
        %v698 = vld [vmem:[%s179 + $0x8c] sm:$0x1]
        %v699 = vld [vmem:[%s179 + $0x90] sm:$0xf]
        %v700 = vld [vmem:[%s179 + $0x94] sm:$0xf]
        %v701 = vld [vmem:[%s179 + $0x98] sm:$0x1]
        %v702 = vld [vmem:[%s179 + $0x9c] sm:$0xf]
        %v703 = vld [vmem:[%s179 + $0xa0] sm:$0xf]
        %v704 = vld [vmem:[%s179 + $0xa4] sm:$0x1]
        %v705 = vld [vmem:[%s179 + $0xa8] sm:$0xf]
        %v706 = vld [vmem:[%s179 + $0xac] sm:$0xf]
        %v707 = vld [vmem:[%s179 + $0xb0] sm:$0x1]
        %v708 = vld [vmem:[%s179 + $0xb4] sm:$0xf]
        %v709 = vld [vmem:[%s179 + $0xb8] sm:$0xf]
        %v710 = vld [vmem:[%s179 + $0xbc] sm:$0x1]
        %vm711 = vsmask.f32 3328
        %vm712 = vsmask.f32 7440
        %vm713 = vmor %vm711, %vm712
        %v715 = vshrl.u32 %v663, 16
        %v717 = vrot.slane %v715, 4
        %v718 = vshll.u32 %v663, 16
        %v720 = vrot.slane %v718, 5
        %v721 = vor.u32 %v717, %v720
        %v722 = vrot.slane %v721, 4
        %v724 = vshll.u32 %v664, 16
        %v726 = vrot.slane %v724, 5
        %v727 = vsel %vm713, %v722, %v726
        %v728 = vshrl.u32 %v664, 16
        %v730 = vrot.slane %v728, 4
        %v731 = vor.u32 %v730, %v726
        %v732 = vrot.slane %v731, 4
        %v734 = vshll.u32 %v665, 16
        %v736 = vrot.slane %v734, 5
        %v737 = vsel %vm713, %v732, %v736
        %v739 = vshrl.u32 %v666, 16
        %v741 = vrot.slane %v739, 4
        %v742 = vshll.u32 %v666, 16
        %v744 = vrot.slane %v742, 5
        %v745 = vor.u32 %v741, %v744
        %v746 = vrot.slane %v745, 4
        %v748 = vshll.u32 %v667, 16
        %v750 = vrot.slane %v748, 5
        %v751 = vsel %vm713, %v746, %v750
        %v752 = vshrl.u32 %v667, 16
        %v754 = vrot.slane %v752, 4
        %v755 = vor.u32 %v754, %v750
        %v756 = vrot.slane %v755, 4
        %v758 = vshll.u32 %v668, 16
        %v760 = vrot.slane %v758, 5
        %v761 = vsel %vm713, %v756, %v760
        %v763 = vshrl.u32 %v669, 16
        %v765 = vrot.slane %v763, 4
        %v766 = vshll.u32 %v669, 16
        %v768 = vrot.slane %v766, 5
        %v769 = vor.u32 %v765, %v768
        %v770 = vrot.slane %v769, 4
        %v772 = vshll.u32 %v670, 16
        %v774 = vrot.slane %v772, 5
        %v775 = vsel %vm713, %v770, %v774
        %v776 = vshrl.u32 %v670, 16
        %v778 = vrot.slane %v776, 4
        %v779 = vor.u32 %v778, %v774
        %v780 = vrot.slane %v779, 4
        %v782 = vshll.u32 %v671, 16
        %v784 = vrot.slane %v782, 5
        %v785 = vsel %vm713, %v780, %v784
        %v787 = vshrl.u32 %v672, 16
        %v789 = vrot.slane %v787, 4
        %v790 = vshll.u32 %v672, 16
        %v792 = vrot.slane %v790, 5
        %v793 = vor.u32 %v789, %v792
        %v794 = vrot.slane %v793, 4
        %v796 = vshll.u32 %v673, 16
        %v798 = vrot.slane %v796, 5
        %v799 = vsel %vm713, %v794, %v798
        %v800 = vshrl.u32 %v673, 16
        %v802 = vrot.slane %v800, 4
        %v803 = vor.u32 %v802, %v798
        %v804 = vrot.slane %v803, 4
        %v806 = vshll.u32 %v674, 16
        %v808 = vrot.slane %v806, 5
        %v809 = vsel %vm713, %v804, %v808
        %v811 = vshrl.u32 %v675, 16
        %v813 = vrot.slane %v811, 4
        %v814 = vshll.u32 %v675, 16
        %v816 = vrot.slane %v814, 5
        %v817 = vor.u32 %v813, %v816
        %v818 = vrot.slane %v817, 4
        %v820 = vshll.u32 %v676, 16
        %v822 = vrot.slane %v820, 5
        %v823 = vsel %vm713, %v818, %v822
        %v824 = vshrl.u32 %v676, 16
        %v826 = vrot.slane %v824, 4
        %v827 = vor.u32 %v826, %v822
        %v828 = vrot.slane %v827, 4
        %v830 = vshll.u32 %v677, 16
        %v832 = vrot.slane %v830, 5
        %v833 = vsel %vm713, %v828, %v832
        %v835 = vshrl.u32 %v678, 16
        %v837 = vrot.slane %v835, 4
        %v838 = vshll.u32 %v678, 16
        %v840 = vrot.slane %v838, 5
        %v841 = vor.u32 %v837, %v840
        %v842 = vrot.slane %v841, 4
        %v844 = vshll.u32 %v679, 16
        %v846 = vrot.slane %v844, 5
        %v847 = vsel %vm713, %v842, %v846
        %v848 = vshrl.u32 %v679, 16
        %v850 = vrot.slane %v848, 4
        %v851 = vor.u32 %v850, %v846
        %v852 = vrot.slane %v851, 4
        %v854 = vshll.u32 %v680, 16
        %v856 = vrot.slane %v854, 5
        %v857 = vsel %vm713, %v852, %v856
        %v859 = vshrl.u32 %v681, 16
        %v861 = vrot.slane %v859, 4
        %v862 = vshll.u32 %v681, 16
        %v864 = vrot.slane %v862, 5
        %v865 = vor.u32 %v861, %v864
        %v866 = vrot.slane %v865, 4
        %v868 = vshll.u32 %v682, 16
        %v870 = vrot.slane %v868, 5
        %v871 = vsel %vm713, %v866, %v870
        %v872 = vshrl.u32 %v682, 16
        %v874 = vrot.slane %v872, 4
        %v875 = vor.u32 %v874, %v870
        %v876 = vrot.slane %v875, 4
        %v878 = vshll.u32 %v683, 16
        %v880 = vrot.slane %v878, 5
        %v881 = vsel %vm713, %v876, %v880
        %v883 = vshrl.u32 %v684, 16
        %v885 = vrot.slane %v883, 4
        %v886 = vshll.u32 %v684, 16
        %v888 = vrot.slane %v886, 5
        %v889 = vor.u32 %v885, %v888
        %v890 = vrot.slane %v889, 4
        %v892 = vshll.u32 %v685, 16
        %v894 = vrot.slane %v892, 5
        %v895 = vsel %vm713, %v890, %v894
        %v896 = vshrl.u32 %v685, 16
        %v898 = vrot.slane %v896, 4
        %v899 = vor.u32 %v898, %v894
        %v900 = vrot.slane %v899, 4
        %v902 = vshll.u32 %v686, 16
        %v904 = vrot.slane %v902, 5
        %v905 = vsel %vm713, %v900, %v904
        %v907 = vshrl.u32 %v687, 16
        %v909 = vrot.slane %v907, 4
        %v910 = vshll.u32 %v687, 16
        %v912 = vrot.slane %v910, 5
        %v913 = vor.u32 %v909, %v912
        %v914 = vrot.slane %v913, 4
        %v916 = vshll.u32 %v688, 16
        %v918 = vrot.slane %v916, 5
        %v919 = vsel %vm713, %v914, %v918
        %v920 = vshrl.u32 %v688, 16
        %v922 = vrot.slane %v920, 4
        %v923 = vor.u32 %v922, %v918
        %v924 = vrot.slane %v923, 4
        %v926 = vshll.u32 %v689, 16
        %v928 = vrot.slane %v926, 5
        %v929 = vsel %vm713, %v924, %v928
        %v931 = vshrl.u32 %v690, 16
        %v933 = vrot.slane %v931, 4
        %v934 = vshll.u32 %v690, 16
        %v936 = vrot.slane %v934, 5
        %v937 = vor.u32 %v933, %v936
        %v938 = vrot.slane %v937, 4
        %v940 = vshll.u32 %v691, 16
        %v942 = vrot.slane %v940, 5
        %v943 = vsel %vm713, %v938, %v942
        %v944 = vshrl.u32 %v691, 16
        %v946 = vrot.slane %v944, 4
        %v947 = vor.u32 %v946, %v942
        %v948 = vrot.slane %v947, 4
        %v950 = vshll.u32 %v692, 16
        %v952 = vrot.slane %v950, 5
        %v953 = vsel %vm713, %v948, %v952
        %v955 = vshrl.u32 %v693, 16
        %v957 = vrot.slane %v955, 4
        %v958 = vshll.u32 %v693, 16
        %v960 = vrot.slane %v958, 5
        %v961 = vor.u32 %v957, %v960
        %v962 = vrot.slane %v961, 4
        %v964 = vshll.u32 %v694, 16
        %v966 = vrot.slane %v964, 5
        %v967 = vsel %vm713, %v962, %v966
        %v968 = vshrl.u32 %v694, 16
        %v970 = vrot.slane %v968, 4
        %v971 = vor.u32 %v970, %v966
        %v972 = vrot.slane %v971, 4
        %v974 = vshll.u32 %v695, 16
        %v976 = vrot.slane %v974, 5
        %v977 = vsel %vm713, %v972, %v976
        %v979 = vshrl.u32 %v696, 16
        %v981 = vrot.slane %v979, 4
        %v982 = vshll.u32 %v696, 16
        %v984 = vrot.slane %v982, 5
        %v985 = vor.u32 %v981, %v984
        %v986 = vrot.slane %v985, 4
        %v988 = vshll.u32 %v697, 16
        %v990 = vrot.slane %v988, 5
        %v991 = vsel %vm713, %v986, %v990
        %v992 = vshrl.u32 %v697, 16
        %v994 = vrot.slane %v992, 4
        %v995 = vor.u32 %v994, %v990
        %v996 = vrot.slane %v995, 4
        %v998 = vshll.u32 %v698, 16
        %v1000 = vrot.slane %v998, 5
        %v1001 = vsel %vm713, %v996, %v1000
        %v1003 = vshrl.u32 %v699, 16
        %v1005 = vrot.slane %v1003, 4
        %v1006 = vshll.u32 %v699, 16
        %v1008 = vrot.slane %v1006, 5
        %v1009 = vor.u32 %v1005, %v1008
        %v1010 = vrot.slane %v1009, 4
        %v1012 = vshll.u32 %v700, 16
        %v1014 = vrot.slane %v1012, 5
        %v1015 = vsel %vm713, %v1010, %v1014
        %v1016 = vshrl.u32 %v700, 16
        %v1018 = vrot.slane %v1016, 4
        %v1019 = vor.u32 %v1018, %v1014
        %v1020 = vrot.slane %v1019, 4
        %v1022 = vshll.u32 %v701, 16
        %v1024 = vrot.slane %v1022, 5
        %v1025 = vsel %vm713, %v1020, %v1024
        %v1027 = vshrl.u32 %v702, 16
        %v1029 = vrot.slane %v1027, 4
        %v1030 = vshll.u32 %v702, 16
        %v1032 = vrot.slane %v1030, 5
        %v1033 = vor.u32 %v1029, %v1032
        %v1034 = vrot.slane %v1033, 4
        %v1036 = vshll.u32 %v703, 16
        %v1038 = vrot.slane %v1036, 5
        %v1039 = vsel %vm713, %v1034, %v1038
        %v1040 = vshrl.u32 %v703, 16
        %v1042 = vrot.slane %v1040, 4
        %v1043 = vor.u32 %v1042, %v1038
        %v1044 = vrot.slane %v1043, 4
        %v1046 = vshll.u32 %v704, 16
        %v1048 = vrot.slane %v1046, 5
        %v1049 = vsel %vm713, %v1044, %v1048
        %v1051 = vshrl.u32 %v705, 16
        %v1053 = vrot.slane %v1051, 4
        %v1054 = vshll.u32 %v705, 16
        %v1056 = vrot.slane %v1054, 5
        %v1057 = vor.u32 %v1053, %v1056
        %v1058 = vrot.slane %v1057, 4
        %v1060 = vshll.u32 %v706, 16
        %v1062 = vrot.slane %v1060, 5
        %v1063 = vsel %vm713, %v1058, %v1062
        %v1064 = vshrl.u32 %v706, 16
        %v1066 = vrot.slane %v1064, 4
        %v1067 = vor.u32 %v1066, %v1062
        %v1068 = vrot.slane %v1067, 4
        %v1070 = vshll.u32 %v707, 16
        %v1072 = vrot.slane %v1070, 5
        %v1073 = vsel %vm713, %v1068, %v1072
        %v1075 = vshrl.u32 %v708, 16
        %v1077 = vrot.slane %v1075, 4
        %v1078 = vshll.u32 %v708, 16
        %v1080 = vrot.slane %v1078, 5
        %v1081 = vor.u32 %v1077, %v1080
        %v1082 = vrot.slane %v1081, 4
        %v1084 = vshll.u32 %v709, 16
        %v1086 = vrot.slane %v1084, 5
        %v1087 = vsel %vm713, %v1082, %v1086
        %v1088 = vshrl.u32 %v709, 16
        %v1090 = vrot.slane %v1088, 4
        %v1091 = vor.u32 %v1090, %v1086
        %v1092 = vrot.slane %v1091, 4
        %v1094 = vshll.u32 %v710, 16
        %v1096 = vrot.slane %v1094, 5
        %v1097 = vsel %vm713, %v1092, %v1096
        %v1098 = vld [vmem:[%s167] sm:$0xff]
        %v1099 = vld [vmem:[%s167 + $0x8] sm:$0xff]
        %v1100 = vld [vmem:[%s167 + $0x10] sm:$0xff]
        %v1101 = vld [vmem:[%s167 + $0x18] sm:$0xff]
        %v1102 = vld [vmem:[%s167 + $0x20] sm:$0xff]
        %v1103 = vld [vmem:[%s167 + $0x28] sm:$0xff]
        %v1104 = vld [vmem:[%s167 + $0x30] sm:$0xff]
        %v1105 = vld [vmem:[%s167 + $0x38] sm:$0xff]
        %v1106 = vld [vmem:[%s167 + $0x40] sm:$0xff]
        %v1107 = vld [vmem:[%s167 + $0x48] sm:$0xff]
        %v1108 = vld [vmem:[%s167 + $0x50] sm:$0xff]
        %v1109 = vld [vmem:[%s167 + $0x58] sm:$0xff]
        %v1110 = vld [vmem:[%s167 + $0x60] sm:$0xff]
        %v1111 = vld [vmem:[%s167 + $0x68] sm:$0xff]
        %v1112 = vld [vmem:[%s167 + $0x70] sm:$0xff]
        %v1113 = vld [vmem:[%s167 + $0x78] sm:$0xff]
        %v1114 = vld [vmem:[%s167 + $0x80] sm:$0xff]
        %v1115 = vld [vmem:[%s167 + $0x88] sm:$0xff]
        %v1116 = vld [vmem:[%s167 + $0x90] sm:$0xff]
        %v1117 = vld [vmem:[%s167 + $0x98] sm:$0xff]
        %v1118 = vld [vmem:[%s167 + $0xa0] sm:$0xff]
        %v1119 = vld [vmem:[%s167 + $0xa8] sm:$0xff]
        %v1120 = vld [vmem:[%s167 + $0xb0] sm:$0xff]
        %v1121 = vld [vmem:[%s167 + $0xb8] sm:$0xff]
        %v1122 = vld [vmem:[%s167 + $0xc0] sm:$0xff]
        %v1123 = vld [vmem:[%s167 + $0xc8] sm:$0xff]
        %v1124 = vld [vmem:[%s167 + $0xd0] sm:$0xff]
        %v1125 = vld [vmem:[%s167 + $0xd8] sm:$0xff]
        %v1126 = vld [vmem:[%s167 + $0xe0] sm:$0xff]
        %v1127 = vld [vmem:[%s167 + $0xe8] sm:$0xff]
        %v1128 = vld [vmem:[%s167 + $0xf0] sm:$0xff]
        %v1129 = vld [vmem:[%s167 + $0xf8] sm:$0xff]
        %s1130 = scalar_lea.vmem %s1, 64
        %v1131 = vld [vmem:[%s1130] sm:$0xf]
        %v1132 = vld [vmem:[%s1130 + $0x4] sm:$0xf]
        %v1133 = vld [vmem:[%s1130 + $0x8] sm:$0xf]
        %v1134 = vld [vmem:[%s1130 + $0xc] sm:$0xf]
        %v1135 = vld [vmem:[%s1130 + $0x10] sm:$0xf]
        %v1136 = vld [vmem:[%s1130 + $0x14] sm:$0xf]
        %v1137 = vld [vmem:[%s1130 + $0x18] sm:$0xf]
        %v1138 = vld [vmem:[%s1130 + $0x1c] sm:$0xf]
        %v1139 = vld [vmem:[%s1130 + $0x20] sm:$0xf]
        %v1140 = vld [vmem:[%s1130 + $0x24] sm:$0xf]
        %v1141 = vld [vmem:[%s1130 + $0x28] sm:$0xf]
        %v1142 = vld [vmem:[%s1130 + $0x2c] sm:$0xf]
        %v1143 = vld [vmem:[%s1130 + $0x30] sm:$0xf]
        %v1144 = vld [vmem:[%s1130 + $0x34] sm:$0xf]
        %v1145 = vld [vmem:[%s1130 + $0x38] sm:$0xf]
        %v1146 = vld [vmem:[%s1130 + $0x3c] sm:$0xf]
        %v1147 = vunpack.c.l.b16 %v727
        %v1148 = vunpack.c.l.b16 %v737
        %v1149 = vunpack.c.l.b16 %v751
        %v1150 = vunpack.c.l.b16 %v761
        %v1151 = vunpack.c.l.b16 %v775
        %v1152 = vunpack.c.l.b16 %v785
        %v1153 = vunpack.c.l.b16 %v799
        %v1154 = vunpack.c.l.b16 %v809
        %v1155 = vunpack.c.l.b16 %v823
        %v1156 = vunpack.c.l.b16 %v833
        %v1157 = vunpack.c.l.b16 %v847
        %v1158 = vunpack.c.l.b16 %v857
        %v1159 = vunpack.c.l.b16 %v871
        %v1160 = vunpack.c.l.b16 %v881
        %v1161 = vunpack.c.l.b16 %v895
        %v1162 = vunpack.c.l.b16 %v905
        %v1163 = vunpack.c.l.b16 %v919
        %v1164 = vunpack.c.l.b16 %v929
        %v1165 = vunpack.c.l.b16 %v943
        %v1166 = vunpack.c.l.b16 %v953
        %v1167 = vunpack.c.l.b16 %v967
        %v1168 = vunpack.c.l.b16 %v977
        %v1169 = vunpack.c.l.b16 %v991
        %v1170 = vunpack.c.l.b16 %v1001
        %v1171 = vunpack.c.l.b16 %v1015
        %v1172 = vunpack.c.l.b16 %v1025
        %v1173 = vunpack.c.l.b16 %v1039
        %v1174 = vunpack.c.l.b16 %v1049
        %v1175 = vunpack.c.l.b16 %v1063
        %v1176 = vunpack.c.l.b16 %v1073
        %v1177 = vunpack.c.l.b16 %v1087
        %v1178 = vunpack.c.l.b16 %v1097
        %v1179 = vpack.c.b16 %v1148, %v1147
        %v1180 = vpack.c.b16 %v1150, %v1149
        %v1181 = vpack.c.b16 %v1152, %v1151
        %v1182 = vpack.c.b16 %v1154, %v1153
        %v1183 = vpack.c.b16 %v1156, %v1155
        %v1184 = vpack.c.b16 %v1158, %v1157
        %v1185 = vpack.c.b16 %v1160, %v1159
        %v1186 = vpack.c.b16 %v1162, %v1161
        %v1187 = vpack.c.b16 %v1164, %v1163
        %v1188 = vpack.c.b16 %v1166, %v1165
        %v1189 = vpack.c.b16 %v1168, %v1167
        %v1190 = vpack.c.b16 %v1170, %v1169
        %v1191 = vpack.c.b16 %v1172, %v1171
        %v1192 = vpack.c.b16 %v1174, %v1173
        %v1193 = vpack.c.b16 %v1176, %v1175
        %v1194 = vpack.c.b16 %v1178, %v1177
        %v1227 = vunpack.c.l.b16 %v1131
        %v1228 = vunpack.c.l.b16 %v1132
        %v1229 = vunpack.c.l.b16 %v1133
        %v1230 = vunpack.c.l.b16 %v1134
        %v1231 = vunpack.c.l.b16 %v1135
        %v1232 = vunpack.c.l.b16 %v1136
        %v1233 = vunpack.c.l.b16 %v1137
        %v1234 = vunpack.c.l.b16 %v1138
        %v1235 = vunpack.c.l.b16 %v1139
        %v1236 = vunpack.c.l.b16 %v1140
        %v1237 = vunpack.c.l.b16 %v1141
        %v1238 = vunpack.c.l.b16 %v1142
        %v1239 = vunpack.c.l.b16 %v1143
        %v1240 = vunpack.c.l.b16 %v1144
        %v1241 = vunpack.c.l.b16 %v1145
        %v1242 = vunpack.c.l.b16 %v1146
        %v1243 = vpack.c.b16 %v1228, %v1227
        %v1244 = vpack.c.b16 %v1230, %v1229
        %v1245 = vpack.c.b16 %v1232, %v1231
        %v1246 = vpack.c.b16 %v1234, %v1233
        %v1247 = vpack.c.b16 %v1236, %v1235
        %v1248 = vpack.c.b16 %v1238, %v1237
        %v1249 = vpack.c.b16 %v1240, %v1239
        %v1250 = vpack.c.b16 %v1242, %v1241
        %1259 = vmatprep.subr.bf16.mxu0 0
        %1260 = vmatpush1.bf16.msra.mxu0 %v1250
        %1261 = vmatprep.subr.bf16.mxu0 0
        %1262 = vmatpush1.bf16.msra.mxu0 %v1249
        %1263 = vmatprep.subr.bf16.mxu0 0
        %1264 = vmatpush1.bf16.msra.mxu0 %v1248
        %1265 = vmatprep.subr.bf16.mxu0 0
        %1266 = vmatpush1.bf16.msra.mxu0 %v1247
        %1267 = vmatprep.subr.bf16.mxu0 0
        %1268 = vmatpush1.bf16.msra.mxu0 %v1246
        %1269 = vmatprep.subr.bf16.mxu0 0
        %1270 = vmatpush1.bf16.msra.mxu0 %v1245
        %1271 = vmatprep.subr.bf16.mxu0 0
        %1272 = vmatpush1.bf16.msra.mxu0 %v1244
        %1273 = vmatprep.subr.bf16.mxu0 0
        %1274 = vmatpush1.bf16.msra.mxu0 %v1243
        %1275 = vmatprep.subr.bf16.mxu0 0
        %1276 = vmatpush2.bf16.msra.mxu0 0
        %1277 = vmatprep.subr.bf16.mxu0 0
        %1278 = vmatpush2.bf16.msra.mxu0 0
        %1279 = vmatprep.subr.bf16.mxu0 0
        %1280 = vmatpush2.bf16.msra.mxu0 0
        %1281 = vmatprep.subr.bf16.mxu0 0
        %1282 = vmatpush2.bf16.msra.mxu0 0
        %1283 = vmatprep.subr.bf16.mxu0 0
        %1284 = vmatpush2.bf16.msra.mxu0 0
        %1285 = vmatprep.subr.bf16.mxu0 0
        %1286 = vmatpush2.bf16.msra.mxu0 0
        %1287 = vmatprep.subr.bf16.mxu0 0
        %1288 = vmatpush2.bf16.msra.mxu0 0
        %1289 = vmatprep.subr.bf16.mxu0 0
        %1290 = vmatpush2.bf16.msra.mxu0 0
        %1291 = vmatprep.mubr.bf16.mxu0 0
        %1292 = vmatmul.mubr.bf16.gmra.mxu0 %v1179
        %v1293 = vpop.f32.mrf.mxu0
        %v1294 = vadd.f32 0.0, %v1293
        %v1295 = vpop.f32.mrf.mxu0
        %v1296 = vpop.f32.mrf.mxu0
        %v1297 = vadd.f32 0.0, %v1296
        %v1298 = vpop.f32.mrf.mxu0
        %1299 = vmatprep.mubr.bf16.mxu0 0
        %1300 = vmatmul.mubr.bf16.gmra.mxu0 %v1180
        %v1301 = vpop.f32.mrf.mxu0
        %v1302 = vadd.f32 0.0, %v1301
        %v1303 = vpop.f32.mrf.mxu0
        %v1304 = vpop.f32.mrf.mxu0
        %v1305 = vadd.f32 0.0, %v1304
        %v1306 = vpop.f32.mrf.mxu0
        %1307 = vmatprep.mubr.bf16.mxu0 0
        %1308 = vmatmul.mubr.bf16.gmra.mxu0 %v1181
        %v1309 = vpop.f32.mrf.mxu0
        %v1310 = vadd.f32 0.0, %v1309
        %v1311 = vpop.f32.mrf.mxu0
        %v1312 = vpop.f32.mrf.mxu0
        %v1313 = vadd.f32 0.0, %v1312
        %v1314 = vpop.f32.mrf.mxu0
        %1315 = vmatprep.mubr.bf16.mxu0 0
        %1316 = vmatmul.mubr.bf16.gmra.mxu0 %v1182
        %v1317 = vpop.f32.mrf.mxu0
        %v1318 = vadd.f32 0.0, %v1317
        %v1319 = vpop.f32.mrf.mxu0
        %v1320 = vpop.f32.mrf.mxu0
        %v1321 = vadd.f32 0.0, %v1320
        %v1322 = vpop.f32.mrf.mxu0
        %1323 = vmatprep.mubr.bf16.mxu0 0
        %1324 = vmatmul.mubr.bf16.gmra.mxu0 %v1183
        %v1325 = vpop.f32.mrf.mxu0
        %v1326 = vadd.f32 0.0, %v1325
        %v1327 = vpop.f32.mrf.mxu0
        %v1328 = vpop.f32.mrf.mxu0
        %v1329 = vadd.f32 0.0, %v1328
        %v1330 = vpop.f32.mrf.mxu0
        %1331 = vmatprep.mubr.bf16.mxu0 0
        %1332 = vmatmul.mubr.bf16.gmra.mxu0 %v1184
        %v1333 = vpop.f32.mrf.mxu0
        %v1334 = vadd.f32 0.0, %v1333
        %v1335 = vpop.f32.mrf.mxu0
        %v1336 = vpop.f32.mrf.mxu0
        %v1337 = vadd.f32 0.0, %v1336
        %v1338 = vpop.f32.mrf.mxu0
        %1339 = vmatprep.mubr.bf16.mxu0 0
        %1340 = vmatmul.mubr.bf16.gmra.mxu0 %v1185
        %v1341 = vpop.f32.mrf.mxu0
        %v1342 = vadd.f32 0.0, %v1341
        %v1343 = vpop.f32.mrf.mxu0
        %v1344 = vpop.f32.mrf.mxu0
        %v1345 = vadd.f32 0.0, %v1344
        %v1346 = vpop.f32.mrf.mxu0
        %1347 = vmatprep.mubr.bf16.mxu0 0
        %1348 = vmatmul.mubr.bf16.gmra.mxu0 %v1186
        %v1349 = vpop.f32.mrf.mxu0
        %v1350 = vadd.f32 0.0, %v1349
        %v1351 = vpop.f32.mrf.mxu0
        %v1352 = vpop.f32.mrf.mxu0
        %v1353 = vadd.f32 0.0, %v1352
        %v1354 = vpop.f32.mrf.mxu0
        %1355 = vmatprep.mubr.bf16.mxu0 0
        %1356 = vmatmul.mubr.bf16.gmra.mxu0 %v1187
        %v1357 = vpop.f32.mrf.mxu0
        %v1358 = vadd.f32 0.0, %v1357
        %v1359 = vpop.f32.mrf.mxu0
        %v1360 = vpop.f32.mrf.mxu0
        %v1361 = vadd.f32 0.0, %v1360
        %v1362 = vpop.f32.mrf.mxu0
        %1363 = vmatprep.mubr.bf16.mxu0 0
        %1364 = vmatmul.mubr.bf16.gmra.mxu0 %v1188
        %v1365 = vpop.f32.mrf.mxu0
        %v1366 = vadd.f32 0.0, %v1365
        %v1367 = vpop.f32.mrf.mxu0
        %v1368 = vpop.f32.mrf.mxu0
        %v1369 = vadd.f32 0.0, %v1368
        %v1370 = vpop.f32.mrf.mxu0
        %1371 = vmatprep.mubr.bf16.mxu0 0
        %1372 = vmatmul.mubr.bf16.gmra.mxu0 %v1189
        %v1373 = vpop.f32.mrf.mxu0
        %v1374 = vadd.f32 0.0, %v1373
        %v1375 = vpop.f32.mrf.mxu0
        %v1376 = vpop.f32.mrf.mxu0
        %v1377 = vadd.f32 0.0, %v1376
        %v1378 = vpop.f32.mrf.mxu0
        %1379 = vmatprep.mubr.bf16.mxu0 0
        %1380 = vmatmul.mubr.bf16.gmra.mxu0 %v1190
        %v1381 = vpop.f32.mrf.mxu0
        %v1382 = vadd.f32 0.0, %v1381
        %v1383 = vpop.f32.mrf.mxu0
        %v1384 = vpop.f32.mrf.mxu0
        %v1385 = vadd.f32 0.0, %v1384
        %v1386 = vpop.f32.mrf.mxu0
        %1387 = vmatprep.mubr.bf16.mxu0 0
        %1388 = vmatmul.mubr.bf16.gmra.mxu0 %v1191
        %v1389 = vpop.f32.mrf.mxu0
        %v1390 = vadd.f32 0.0, %v1389
        %v1391 = vpop.f32.mrf.mxu0
        %v1392 = vpop.f32.mrf.mxu0
        %v1393 = vadd.f32 0.0, %v1392
        %v1394 = vpop.f32.mrf.mxu0
        %1395 = vmatprep.mubr.bf16.mxu0 0
        %1396 = vmatmul.mubr.bf16.gmra.mxu0 %v1192
        %v1397 = vpop.f32.mrf.mxu0
        %v1398 = vadd.f32 0.0, %v1397
        %v1399 = vpop.f32.mrf.mxu0
        %v1400 = vpop.f32.mrf.mxu0
        %v1401 = vadd.f32 0.0, %v1400
        %v1402 = vpop.f32.mrf.mxu0
        %1403 = vmatprep.mubr.bf16.mxu0 0
        %1404 = vmatmul.mubr.bf16.gmra.mxu0 %v1193
        %v1405 = vpop.f32.mrf.mxu0
        %v1406 = vadd.f32 0.0, %v1405
        %v1407 = vpop.f32.mrf.mxu0
        %v1408 = vpop.f32.mrf.mxu0
        %v1409 = vadd.f32 0.0, %v1408
        %v1410 = vpop.f32.mrf.mxu0
        %1411 = vmatprep.mubr.bf16.mxu0 0
        %1412 = vmatmul.mubr.bf16.gmra.mxu0 %v1194
        %v1413 = vpop.f32.mrf.mxu0
        %v1414 = vadd.f32 0.0, %v1413
        %v1415 = vpop.f32.mrf.mxu0
        %v1416 = vpop.f32.mrf.mxu0
        %v1417 = vadd.f32 0.0, %v1416
        %v1418 = vpop.f32.mrf.mxu0
        %1419 = vdwg.mxu0
        %v1420 = vadd.f32 %v1098, %v1294
        %v1421 = vadd.f32 %v1099, %v1297
        %v1422 = vadd.f32 %v1100, %v1302
        %v1423 = vadd.f32 %v1101, %v1305
        %v1424 = vadd.f32 %v1102, %v1310
        %v1425 = vadd.f32 %v1103, %v1313
        %v1426 = vadd.f32 %v1104, %v1318
        %v1427 = vadd.f32 %v1105, %v1321
        %v1428 = vadd.f32 %v1106, %v1326
        %v1429 = vadd.f32 %v1107, %v1329
        %v1430 = vadd.f32 %v1108, %v1334
        %v1431 = vadd.f32 %v1109, %v1337
        %v1432 = vadd.f32 %v1110, %v1342
        %v1433 = vadd.f32 %v1111, %v1345
        %v1434 = vadd.f32 %v1112, %v1350
        %v1435 = vadd.f32 %v1113, %v1353
        %v1436 = vadd.f32 %v1114, %v1358
        %v1437 = vadd.f32 %v1115, %v1361
        %v1438 = vadd.f32 %v1116, %v1366
        %v1439 = vadd.f32 %v1117, %v1369
        %v1440 = vadd.f32 %v1118, %v1374
        %v1441 = vadd.f32 %v1119, %v1377
        %v1442 = vadd.f32 %v1120, %v1382
        %v1443 = vadd.f32 %v1121, %v1385
        %v1444 = vadd.f32 %v1122, %v1390
        %v1445 = vadd.f32 %v1123, %v1393
        %v1446 = vadd.f32 %v1124, %v1398
        %v1447 = vadd.f32 %v1125, %v1401
        %v1448 = vadd.f32 %v1126, %v1406
        %v1449 = vadd.f32 %v1127, %v1409
        %v1450 = vadd.f32 %v1128, %v1414
        %v1451 = vadd.f32 %v1129, %v1417
        %1452 = vst [vmem:[%s167] sm:$0xff] %v1420
        %1453 = vst [vmem:[%s167 + $0x8] sm:$0xff] %v1421
        %1454 = vst [vmem:[%s167 + $0x10] sm:$0xff] %v1422
        %1455 = vst [vmem:[%s167 + $0x18] sm:$0xff] %v1423
        %1456 = vst [vmem:[%s167 + $0x20] sm:$0xff] %v1424
        %1457 = vst [vmem:[%s167 + $0x28] sm:$0xff] %v1425
        %1458 = vst [vmem:[%s167 + $0x30] sm:$0xff] %v1426
        %1459 = vst [vmem:[%s167 + $0x38] sm:$0xff] %v1427
        %1460 = vst [vmem:[%s167 + $0x40] sm:$0xff] %v1428
        %1461 = vst [vmem:[%s167 + $0x48] sm:$0xff] %v1429
        %1462 = vst [vmem:[%s167 + $0x50] sm:$0xff] %v1430
        %1463 = vst [vmem:[%s167 + $0x58] sm:$0xff] %v1431
        %1464 = vst [vmem:[%s167 + $0x60] sm:$0xff] %v1432
        %1465 = vst [vmem:[%s167 + $0x68] sm:$0xff] %v1433
        %1466 = vst [vmem:[%s167 + $0x70] sm:$0xff] %v1434
        %1467 = vst [vmem:[%s167 + $0x78] sm:$0xff] %v1435
        %1468 = vst [vmem:[%s167 + $0x80] sm:$0xff] %v1436
        %1469 = vst [vmem:[%s167 + $0x88] sm:$0xff] %v1437
        %1470 = vst [vmem:[%s167 + $0x90] sm:$0xff] %v1438
        %1471 = vst [vmem:[%s167 + $0x98] sm:$0xff] %v1439
        %1472 = vst [vmem:[%s167 + $0xa0] sm:$0xff] %v1440
        %1473 = vst [vmem:[%s167 + $0xa8] sm:$0xff] %v1441
        %1474 = vst [vmem:[%s167 + $0xb0] sm:$0xff] %v1442
        %1475 = vst [vmem:[%s167 + $0xb8] sm:$0xff] %v1443
        %1476 = vst [vmem:[%s167 + $0xc0] sm:$0xff] %v1444
        %1477 = vst [vmem:[%s167 + $0xc8] sm:$0xff] %v1445
        %1478 = vst [vmem:[%s167 + $0xd0] sm:$0xff] %v1446
        %1479 = vst [vmem:[%s167 + $0xd8] sm:$0xff] %v1447
        %1480 = vst [vmem:[%s167 + $0xe0] sm:$0xff] %v1448
        %1481 = vst [vmem:[%s167 + $0xe8] sm:$0xff] %v1449
        %1482 = vst [vmem:[%s167 + $0xf0] sm:$0xff] %v1450
        %1483 = vst [vmem:[%s167 + $0xf8] sm:$0xff] %v1451
        %v1484 = vld [vmem:[%s179] sm:$0xe]
        %v1485 = vld [vmem:[%s179 + $0x4] sm:$0xf]
        %v1486 = vld [vmem:[%s179 + $0x8] sm:$0x1]
        %v1487 = vld [vmem:[%s179 + $0xc] sm:$0xe]
        %v1488 = vld [vmem:[%s179 + $0x10] sm:$0xf]
        %v1489 = vld [vmem:[%s179 + $0x14] sm:$0x1]
        %v1490 = vld [vmem:[%s179 + $0x18] sm:$0xe]
        %v1491 = vld [vmem:[%s179 + $0x1c] sm:$0xf]
        %v1492 = vld [vmem:[%s179 + $0x20] sm:$0x1]
        %v1493 = vld [vmem:[%s179 + $0x24] sm:$0xe]
        %v1494 = vld [vmem:[%s179 + $0x28] sm:$0xf]
        %v1495 = vld [vmem:[%s179 + $0x2c] sm:$0x1]
        %v1496 = vld [vmem:[%s179 + $0x30] sm:$0xe]
        %v1497 = vld [vmem:[%s179 + $0x34] sm:$0xf]
        %v1498 = vld [vmem:[%s179 + $0x38] sm:$0x1]
        %v1499 = vld [vmem:[%s179 + $0x3c] sm:$0xe]
        %v1500 = vld [vmem:[%s179 + $0x40] sm:$0xf]
        %v1501 = vld [vmem:[%s179 + $0x44] sm:$0x1]
        %v1502 = vld [vmem:[%s179 + $0x48] sm:$0xe]
        %v1503 = vld [vmem:[%s179 + $0x4c] sm:$0xf]
        %v1504 = vld [vmem:[%s179 + $0x50] sm:$0x1]
        %v1505 = vld [vmem:[%s179 + $0x54] sm:$0xe]
        %v1506 = vld [vmem:[%s179 + $0x58] sm:$0xf]
        %v1507 = vld [vmem:[%s179 + $0x5c] sm:$0x1]
        %v1508 = vld [vmem:[%s179 + $0x60] sm:$0xe]
        %v1509 = vld [vmem:[%s179 + $0x64] sm:$0xf]
        %v1510 = vld [vmem:[%s179 + $0x68] sm:$0x1]
        %v1511 = vld [vmem:[%s179 + $0x6c] sm:$0xe]
        %v1512 = vld [vmem:[%s179 + $0x70] sm:$0xf]
        %v1513 = vld [vmem:[%s179 + $0x74] sm:$0x1]
        %v1514 = vld [vmem:[%s179 + $0x78] sm:$0xe]
        %v1515 = vld [vmem:[%s179 + $0x7c] sm:$0xf]
        %v1516 = vld [vmem:[%s179 + $0x80] sm:$0x1]
        %v1517 = vld [vmem:[%s179 + $0x84] sm:$0xe]
        %v1518 = vld [vmem:[%s179 + $0x88] sm:$0xf]
        %v1519 = vld [vmem:[%s179 + $0x8c] sm:$0x1]
        %v1520 = vld [vmem:[%s179 + $0x90] sm:$0xe]
        %v1521 = vld [vmem:[%s179 + $0x94] sm:$0xf]
        %v1522 = vld [vmem:[%s179 + $0x98] sm:$0x1]
        %v1523 = vld [vmem:[%s179 + $0x9c] sm:$0xe]
        %v1524 = vld [vmem:[%s179 + $0xa0] sm:$0xf]
        %v1525 = vld [vmem:[%s179 + $0xa4] sm:$0x1]
        %v1526 = vld [vmem:[%s179 + $0xa8] sm:$0xe]
        %v1527 = vld [vmem:[%s179 + $0xac] sm:$0xf]
        %v1528 = vld [vmem:[%s179 + $0xb0] sm:$0x1]
        %v1529 = vld [vmem:[%s179 + $0xb4] sm:$0xe]
        %v1530 = vld [vmem:[%s179 + $0xb8] sm:$0xf]
        %v1531 = vld [vmem:[%s179 + $0xbc] sm:$0x1]
        %vm1580 = vcmask 1042432
        %vm1581 = vcmask 1046532
        %vm1582 = vmor %vm1580, %vm1581
        %v1583 = vrot.slane %v1484, 5
        %v1584 = vrot.slane %v1583, 4
        %v1585 = vrot.slane %v1485, 5
        %v1586 = vsel %vm1582, %v1584, %v1585
        %v1587 = vrot.slane %v1585, 4
        %v1588 = vrot.slane %v1486, 5
        %v1589 = vsel %vm1582, %v1587, %v1588
        %v1590 = vrot.slane %v1487, 5
        %v1591 = vrot.slane %v1590, 4
        %v1592 = vrot.slane %v1488, 5
        %v1593 = vsel %vm1582, %v1591, %v1592
        %v1594 = vrot.slane %v1592, 4
        %v1595 = vrot.slane %v1489, 5
        %v1596 = vsel %vm1582, %v1594, %v1595
        %v1597 = vrot.slane %v1490, 5
        %v1598 = vrot.slane %v1597, 4
        %v1599 = vrot.slane %v1491, 5
        %v1600 = vsel %vm1582, %v1598, %v1599
        %v1601 = vrot.slane %v1599, 4
        %v1602 = vrot.slane %v1492, 5
        %v1603 = vsel %vm1582, %v1601, %v1602
        %v1604 = vrot.slane %v1493, 5
        %v1605 = vrot.slane %v1604, 4
        %v1606 = vrot.slane %v1494, 5
        %v1607 = vsel %vm1582, %v1605, %v1606
        %v1608 = vrot.slane %v1606, 4
        %v1609 = vrot.slane %v1495, 5
        %v1610 = vsel %vm1582, %v1608, %v1609
        %v1611 = vrot.slane %v1496, 5
        %v1612 = vrot.slane %v1611, 4
        %v1613 = vrot.slane %v1497, 5
        %v1614 = vsel %vm1582, %v1612, %v1613
        %v1615 = vrot.slane %v1613, 4
        %v1616 = vrot.slane %v1498, 5
        %v1617 = vsel %vm1582, %v1615, %v1616
        %v1618 = vrot.slane %v1499, 5
        %v1619 = vrot.slane %v1618, 4
        %v1620 = vrot.slane %v1500, 5
        %v1621 = vsel %vm1582, %v1619, %v1620
        %v1622 = vrot.slane %v1620, 4
        %v1623 = vrot.slane %v1501, 5
        %v1624 = vsel %vm1582, %v1622, %v1623
        %v1625 = vrot.slane %v1502, 5
        %v1626 = vrot.slane %v1625, 4
        %v1627 = vrot.slane %v1503, 5
        %v1628 = vsel %vm1582, %v1626, %v1627
        %v1629 = vrot.slane %v1627, 4
        %v1630 = vrot.slane %v1504, 5
        %v1631 = vsel %vm1582, %v1629, %v1630
        %v1632 = vrot.slane %v1505, 5
        %v1633 = vrot.slane %v1632, 4
        %v1634 = vrot.slane %v1506, 5
        %v1635 = vsel %vm1582, %v1633, %v1634
        %v1636 = vrot.slane %v1634, 4
        %v1637 = vrot.slane %v1507, 5
        %v1638 = vsel %vm1582, %v1636, %v1637
        %v1639 = vrot.slane %v1508, 5
        %v1640 = vrot.slane %v1639, 4
        %v1641 = vrot.slane %v1509, 5
        %v1642 = vsel %vm1582, %v1640, %v1641
        %v1643 = vrot.slane %v1641, 4
        %v1644 = vrot.slane %v1510, 5
        %v1645 = vsel %vm1582, %v1643, %v1644
        %v1646 = vrot.slane %v1511, 5
        %v1647 = vrot.slane %v1646, 4
        %v1648 = vrot.slane %v1512, 5
        %v1649 = vsel %vm1582, %v1647, %v1648
        %v1650 = vrot.slane %v1648, 4
        %v1651 = vrot.slane %v1513, 5
        %v1652 = vsel %vm1582, %v1650, %v1651
        %v1653 = vrot.slane %v1514, 5
        %v1654 = vrot.slane %v1653, 4
        %v1655 = vrot.slane %v1515, 5
        %v1656 = vsel %vm1582, %v1654, %v1655
        %v1657 = vrot.slane %v1655, 4
        %v1658 = vrot.slane %v1516, 5
        %v1659 = vsel %vm1582, %v1657, %v1658
        %v1660 = vrot.slane %v1517, 5
        %v1661 = vrot.slane %v1660, 4
        %v1662 = vrot.slane %v1518, 5
        %v1663 = vsel %vm1582, %v1661, %v1662
        %v1664 = vrot.slane %v1662, 4
        %v1665 = vrot.slane %v1519, 5
        %v1666 = vsel %vm1582, %v1664, %v1665
        %v1667 = vrot.slane %v1520, 5
        %v1668 = vrot.slane %v1667, 4
        %v1669 = vrot.slane %v1521, 5
        %v1670 = vsel %vm1582, %v1668, %v1669
        %v1671 = vrot.slane %v1669, 4
        %v1672 = vrot.slane %v1522, 5
        %v1673 = vsel %vm1582, %v1671, %v1672
        %v1674 = vrot.slane %v1523, 5
        %v1675 = vrot.slane %v1674, 4
        %v1676 = vrot.slane %v1524, 5
        %v1677 = vsel %vm1582, %v1675, %v1676
        %v1678 = vrot.slane %v1676, 4
        %v1679 = vrot.slane %v1525, 5
        %v1680 = vsel %vm1582, %v1678, %v1679
        %v1681 = vrot.slane %v1526, 5
        %v1682 = vrot.slane %v1681, 4
        %v1683 = vrot.slane %v1527, 5
        %v1684 = vsel %vm1582, %v1682, %v1683
        %v1685 = vrot.slane %v1683, 4
        %v1686 = vrot.slane %v1528, 5
        %v1687 = vsel %vm1582, %v1685, %v1686
        %v1688 = vrot.slane %v1529, 5
        %v1689 = vrot.slane %v1688, 4
        %v1690 = vrot.slane %v1530, 5
        %v1691 = vsel %vm1582, %v1689, %v1690
        %v1692 = vrot.slane %v1690, 4
        %v1693 = vrot.slane %v1531, 5
        %v1694 = vsel %vm1582, %v1692, %v1693
        %v1695 = vld [vmem:[%s167] sm:$0xff]
        %v1696 = vld [vmem:[%s167 + $0x8] sm:$0xff]
        %v1697 = vld [vmem:[%s167 + $0x10] sm:$0xff]
        %v1698 = vld [vmem:[%s167 + $0x18] sm:$0xff]
        %v1699 = vld [vmem:[%s167 + $0x20] sm:$0xff]
        %v1700 = vld [vmem:[%s167 + $0x28] sm:$0xff]
        %v1701 = vld [vmem:[%s167 + $0x30] sm:$0xff]
        %v1702 = vld [vmem:[%s167 + $0x38] sm:$0xff]
        %v1703 = vld [vmem:[%s167 + $0x40] sm:$0xff]
        %v1704 = vld [vmem:[%s167 + $0x48] sm:$0xff]
        %v1705 = vld [vmem:[%s167 + $0x50] sm:$0xff]
        %v1706 = vld [vmem:[%s167 + $0x58] sm:$0xff]
        %v1707 = vld [vmem:[%s167 + $0x60] sm:$0xff]
        %v1708 = vld [vmem:[%s167 + $0x68] sm:$0xff]
        %v1709 = vld [vmem:[%s167 + $0x70] sm:$0xff]
        %v1710 = vld [vmem:[%s167 + $0x78] sm:$0xff]
        %v1711 = vld [vmem:[%s167 + $0x80] sm:$0xff]
        %v1712 = vld [vmem:[%s167 + $0x88] sm:$0xff]
        %v1713 = vld [vmem:[%s167 + $0x90] sm:$0xff]
        %v1714 = vld [vmem:[%s167 + $0x98] sm:$0xff]
        %v1715 = vld [vmem:[%s167 + $0xa0] sm:$0xff]
        %v1716 = vld [vmem:[%s167 + $0xa8] sm:$0xff]
        %v1717 = vld [vmem:[%s167 + $0xb0] sm:$0xff]
        %v1718 = vld [vmem:[%s167 + $0xb8] sm:$0xff]
        %v1719 = vld [vmem:[%s167 + $0xc0] sm:$0xff]
        %v1720 = vld [vmem:[%s167 + $0xc8] sm:$0xff]
        %v1721 = vld [vmem:[%s167 + $0xd0] sm:$0xff]
        %v1722 = vld [vmem:[%s167 + $0xd8] sm:$0xff]
        %v1723 = vld [vmem:[%s167 + $0xe0] sm:$0xff]
        %v1724 = vld [vmem:[%s167 + $0xe8] sm:$0xff]
        %v1725 = vld [vmem:[%s167 + $0xf0] sm:$0xff]
        %v1726 = vld [vmem:[%s167 + $0xf8] sm:$0xff]
        %s1727 = scalar_lea.vmem %s1, 128
        %v1728 = vld [vmem:[%s1727] sm:$0xf]
        %v1729 = vld [vmem:[%s1727 + $0x4] sm:$0xf]
        %v1730 = vld [vmem:[%s1727 + $0x8] sm:$0xf]
        %v1731 = vld [vmem:[%s1727 + $0xc] sm:$0xf]
        %v1732 = vld [vmem:[%s1727 + $0x10] sm:$0xf]
        %v1733 = vld [vmem:[%s1727 + $0x14] sm:$0xf]
        %v1734 = vld [vmem:[%s1727 + $0x18] sm:$0xf]
        %v1735 = vld [vmem:[%s1727 + $0x1c] sm:$0xf]
        %v1736 = vld [vmem:[%s1727 + $0x20] sm:$0xf]
        %v1737 = vld [vmem:[%s1727 + $0x24] sm:$0xf]
        %v1738 = vld [vmem:[%s1727 + $0x28] sm:$0xf]
        %v1739 = vld [vmem:[%s1727 + $0x2c] sm:$0xf]
        %v1740 = vld [vmem:[%s1727 + $0x30] sm:$0xf]
        %v1741 = vld [vmem:[%s1727 + $0x34] sm:$0xf]
        %v1742 = vld [vmem:[%s1727 + $0x38] sm:$0xf]
        %v1743 = vld [vmem:[%s1727 + $0x3c] sm:$0xf]
        %v1744 = vunpack.c.l.b16 %v1586
        %v1745 = vunpack.c.l.b16 %v1589
        %v1746 = vunpack.c.l.b16 %v1593
        %v1747 = vunpack.c.l.b16 %v1596
        %v1748 = vunpack.c.l.b16 %v1600
        %v1749 = vunpack.c.l.b16 %v1603
        %v1750 = vunpack.c.l.b16 %v1607
        %v1751 = vunpack.c.l.b16 %v1610
        %v1752 = vunpack.c.l.b16 %v1614
        %v1753 = vunpack.c.l.b16 %v1617
        %v1754 = vunpack.c.l.b16 %v1621
        %v1755 = vunpack.c.l.b16 %v1624
        %v1756 = vunpack.c.l.b16 %v1628
        %v1757 = vunpack.c.l.b16 %v1631
        %v1758 = vunpack.c.l.b16 %v1635
        %v1759 = vunpack.c.l.b16 %v1638
        %v1760 = vunpack.c.l.b16 %v1642
        %v1761 = vunpack.c.l.b16 %v1645
        %v1762 = vunpack.c.l.b16 %v1649
        %v1763 = vunpack.c.l.b16 %v1652
        %v1764 = vunpack.c.l.b16 %v1656
        %v1765 = vunpack.c.l.b16 %v1659
        %v1766 = vunpack.c.l.b16 %v1663
        %v1767 = vunpack.c.l.b16 %v1666
        %v1768 = vunpack.c.l.b16 %v1670
        %v1769 = vunpack.c.l.b16 %v1673
        %v1770 = vunpack.c.l.b16 %v1677
        %v1771 = vunpack.c.l.b16 %v1680
        %v1772 = vunpack.c.l.b16 %v1684
        %v1773 = vunpack.c.l.b16 %v1687
        %v1774 = vunpack.c.l.b16 %v1691
        %v1775 = vunpack.c.l.b16 %v1694
        %v1776 = vpack.c.b16 %v1745, %v1744
        %v1777 = vpack.c.b16 %v1747, %v1746
        %v1778 = vpack.c.b16 %v1749, %v1748
        %v1779 = vpack.c.b16 %v1751, %v1750
        %v1780 = vpack.c.b16 %v1753, %v1752
        %v1781 = vpack.c.b16 %v1755, %v1754
        %v1782 = vpack.c.b16 %v1757, %v1756
        %v1783 = vpack.c.b16 %v1759, %v1758
        %v1784 = vpack.c.b16 %v1761, %v1760
        %v1785 = vpack.c.b16 %v1763, %v1762
        %v1786 = vpack.c.b16 %v1765, %v1764
        %v1787 = vpack.c.b16 %v1767, %v1766
        %v1788 = vpack.c.b16 %v1769, %v1768
        %v1789 = vpack.c.b16 %v1771, %v1770
        %v1790 = vpack.c.b16 %v1773, %v1772
        %v1791 = vpack.c.b16 %v1775, %v1774
        %v1824 = vunpack.c.l.b16 %v1728
        %v1825 = vunpack.c.l.b16 %v1729
        %v1826 = vunpack.c.l.b16 %v1730
        %v1827 = vunpack.c.l.b16 %v1731
        %v1828 = vunpack.c.l.b16 %v1732
        %v1829 = vunpack.c.l.b16 %v1733
        %v1830 = vunpack.c.l.b16 %v1734
        %v1831 = vunpack.c.l.b16 %v1735
        %v1832 = vunpack.c.l.b16 %v1736
        %v1833 = vunpack.c.l.b16 %v1737
        %v1834 = vunpack.c.l.b16 %v1738
        %v1835 = vunpack.c.l.b16 %v1739
        %v1836 = vunpack.c.l.b16 %v1740
        %v1837 = vunpack.c.l.b16 %v1741
        %v1838 = vunpack.c.l.b16 %v1742
        %v1839 = vunpack.c.l.b16 %v1743
        %v1840 = vpack.c.b16 %v1825, %v1824
        %v1841 = vpack.c.b16 %v1827, %v1826
        %v1842 = vpack.c.b16 %v1829, %v1828
        %v1843 = vpack.c.b16 %v1831, %v1830
        %v1844 = vpack.c.b16 %v1833, %v1832
        %v1845 = vpack.c.b16 %v1835, %v1834
        %v1846 = vpack.c.b16 %v1837, %v1836
        %v1847 = vpack.c.b16 %v1839, %v1838
        %1856 = vmatprep.subr.bf16.mxu0 0
        %1857 = vmatpush1.bf16.msra.mxu0 %v1847
        %1858 = vmatprep.subr.bf16.mxu0 0
        %1859 = vmatpush1.bf16.msra.mxu0 %v1846
        %1860 = vmatprep.subr.bf16.mxu0 0
        %1861 = vmatpush1.bf16.msra.mxu0 %v1845
        %1862 = vmatprep.subr.bf16.mxu0 0
        %1863 = vmatpush1.bf16.msra.mxu0 %v1844
        %1864 = vmatprep.subr.bf16.mxu0 0
        %1865 = vmatpush1.bf16.msra.mxu0 %v1843
        %1866 = vmatprep.subr.bf16.mxu0 0
        %1867 = vmatpush1.bf16.msra.mxu0 %v1842
        %1868 = vmatprep.subr.bf16.mxu0 0
        %1869 = vmatpush1.bf16.msra.mxu0 %v1841
        %1870 = vmatprep.subr.bf16.mxu0 0
        %1871 = vmatpush1.bf16.msra.mxu0 %v1840
        %1872 = vmatprep.subr.bf16.mxu0 0
        %1873 = vmatpush2.bf16.msra.mxu0 0
        %1874 = vmatprep.subr.bf16.mxu0 0
        %1875 = vmatpush2.bf16.msra.mxu0 0
        %1876 = vmatprep.subr.bf16.mxu0 0
        %1877 = vmatpush2.bf16.msra.mxu0 0
        %1878 = vmatprep.subr.bf16.mxu0 0
        %1879 = vmatpush2.bf16.msra.mxu0 0
        %1880 = vmatprep.subr.bf16.mxu0 0
        %1881 = vmatpush2.bf16.msra.mxu0 0
        %1882 = vmatprep.subr.bf16.mxu0 0
        %1883 = vmatpush2.bf16.msra.mxu0 0
        %1884 = vmatprep.subr.bf16.mxu0 0
        %1885 = vmatpush2.bf16.msra.mxu0 0
        %1886 = vmatprep.subr.bf16.mxu0 0
        %1887 = vmatpush2.bf16.msra.mxu0 0
        %1888 = vmatprep.mubr.bf16.mxu0 0
        %1889 = vmatmul.mubr.bf16.gmra.mxu0 %v1776
        %v1890 = vpop.f32.mrf.mxu0
        %v1891 = vadd.f32 0.0, %v1890
        %v1892 = vpop.f32.mrf.mxu0
        %v1893 = vpop.f32.mrf.mxu0
        %v1894 = vadd.f32 0.0, %v1893
        %v1895 = vpop.f32.mrf.mxu0
        %1896 = vmatprep.mubr.bf16.mxu0 0
        %1897 = vmatmul.mubr.bf16.gmra.mxu0 %v1777
        %v1898 = vpop.f32.mrf.mxu0
        %v1899 = vadd.f32 0.0, %v1898
        %v1900 = vpop.f32.mrf.mxu0
        %v1901 = vpop.f32.mrf.mxu0
        %v1902 = vadd.f32 0.0, %v1901
        %v1903 = vpop.f32.mrf.mxu0
        %1904 = vmatprep.mubr.bf16.mxu0 0
        %1905 = vmatmul.mubr.bf16.gmra.mxu0 %v1778
        %v1906 = vpop.f32.mrf.mxu0
        %v1907 = vadd.f32 0.0, %v1906
        %v1908 = vpop.f32.mrf.mxu0
        %v1909 = vpop.f32.mrf.mxu0
        %v1910 = vadd.f32 0.0, %v1909
        %v1911 = vpop.f32.mrf.mxu0
        %1912 = vmatprep.mubr.bf16.mxu0 0
        %1913 = vmatmul.mubr.bf16.gmra.mxu0 %v1779
        %v1914 = vpop.f32.mrf.mxu0
        %v1915 = vadd.f32 0.0, %v1914
        %v1916 = vpop.f32.mrf.mxu0
        %v1917 = vpop.f32.mrf.mxu0
        %v1918 = vadd.f32 0.0, %v1917
        %v1919 = vpop.f32.mrf.mxu0
        %1920 = vmatprep.mubr.bf16.mxu0 0
        %1921 = vmatmul.mubr.bf16.gmra.mxu0 %v1780
        %v1922 = vpop.f32.mrf.mxu0
        %v1923 = vadd.f32 0.0, %v1922
        %v1924 = vpop.f32.mrf.mxu0
        %v1925 = vpop.f32.mrf.mxu0
        %v1926 = vadd.f32 0.0, %v1925
        %v1927 = vpop.f32.mrf.mxu0
        %1928 = vmatprep.mubr.bf16.mxu0 0
        %1929 = vmatmul.mubr.bf16.gmra.mxu0 %v1781
        %v1930 = vpop.f32.mrf.mxu0
        %v1931 = vadd.f32 0.0, %v1930
        %v1932 = vpop.f32.mrf.mxu0
        %v1933 = vpop.f32.mrf.mxu0
        %v1934 = vadd.f32 0.0, %v1933
        %v1935 = vpop.f32.mrf.mxu0
        %1936 = vmatprep.mubr.bf16.mxu0 0
        %1937 = vmatmul.mubr.bf16.gmra.mxu0 %v1782
        %v1938 = vpop.f32.mrf.mxu0
        %v1939 = vadd.f32 0.0, %v1938
        %v1940 = vpop.f32.mrf.mxu0
        %v1941 = vpop.f32.mrf.mxu0
        %v1942 = vadd.f32 0.0, %v1941
        %v1943 = vpop.f32.mrf.mxu0
        %1944 = vmatprep.mubr.bf16.mxu0 0
        %1945 = vmatmul.mubr.bf16.gmra.mxu0 %v1783
        %v1946 = vpop.f32.mrf.mxu0
        %v1947 = vadd.f32 0.0, %v1946
        %v1948 = vpop.f32.mrf.mxu0
        %v1949 = vpop.f32.mrf.mxu0
        %v1950 = vadd.f32 0.0, %v1949
        %v1951 = vpop.f32.mrf.mxu0
        %1952 = vmatprep.mubr.bf16.mxu0 0
        %1953 = vmatmul.mubr.bf16.gmra.mxu0 %v1784
        %v1954 = vpop.f32.mrf.mxu0
        %v1955 = vadd.f32 0.0, %v1954
        %v1956 = vpop.f32.mrf.mxu0
        %v1957 = vpop.f32.mrf.mxu0
        %v1958 = vadd.f32 0.0, %v1957
        %v1959 = vpop.f32.mrf.mxu0
        %1960 = vmatprep.mubr.bf16.mxu0 0
        %1961 = vmatmul.mubr.bf16.gmra.mxu0 %v1785
        %v1962 = vpop.f32.mrf.mxu0
        %v1963 = vadd.f32 0.0, %v1962
        %v1964 = vpop.f32.mrf.mxu0
        %v1965 = vpop.f32.mrf.mxu0
        %v1966 = vadd.f32 0.0, %v1965
        %v1967 = vpop.f32.mrf.mxu0
        %1968 = vmatprep.mubr.bf16.mxu0 0
        %1969 = vmatmul.mubr.bf16.gmra.mxu0 %v1786
        %v1970 = vpop.f32.mrf.mxu0
        %v1971 = vadd.f32 0.0, %v1970
        %v1972 = vpop.f32.mrf.mxu0
        %v1973 = vpop.f32.mrf.mxu0
        %v1974 = vadd.f32 0.0, %v1973
        %v1975 = vpop.f32.mrf.mxu0
        %1976 = vmatprep.mubr.bf16.mxu0 0
        %1977 = vmatmul.mubr.bf16.gmra.mxu0 %v1787
        %v1978 = vpop.f32.mrf.mxu0
        %v1979 = vadd.f32 0.0, %v1978
        %v1980 = vpop.f32.mrf.mxu0
        %v1981 = vpop.f32.mrf.mxu0
        %v1982 = vadd.f32 0.0, %v1981
        %v1983 = vpop.f32.mrf.mxu0
        %1984 = vmatprep.mubr.bf16.mxu0 0
        %1985 = vmatmul.mubr.bf16.gmra.mxu0 %v1788
        %v1986 = vpop.f32.mrf.mxu0
        %v1987 = vadd.f32 0.0, %v1986
        %v1988 = vpop.f32.mrf.mxu0
        %v1989 = vpop.f32.mrf.mxu0
        %v1990 = vadd.f32 0.0, %v1989
        %v1991 = vpop.f32.mrf.mxu0
        %1992 = vmatprep.mubr.bf16.mxu0 0
        %1993 = vmatmul.mubr.bf16.gmra.mxu0 %v1789
        %v1994 = vpop.f32.mrf.mxu0
        %v1995 = vadd.f32 0.0, %v1994
        %v1996 = vpop.f32.mrf.mxu0
        %v1997 = vpop.f32.mrf.mxu0
        %v1998 = vadd.f32 0.0, %v1997
        %v1999 = vpop.f32.mrf.mxu0
        %2000 = vmatprep.mubr.bf16.mxu0 0
        %2001 = vmatmul.mubr.bf16.gmra.mxu0 %v1790
        %v2002 = vpop.f32.mrf.mxu0
        %v2003 = vadd.f32 0.0, %v2002
        %v2004 = vpop.f32.mrf.mxu0
        %v2005 = vpop.f32.mrf.mxu0
        %v2006 = vadd.f32 0.0, %v2005
        %v2007 = vpop.f32.mrf.mxu0
        %2008 = vmatprep.mubr.bf16.mxu0 0
        %2009 = vmatmul.mubr.bf16.gmra.mxu0 %v1791
        %v2010 = vpop.f32.mrf.mxu0
        %v2011 = vadd.f32 0.0, %v2010
        %v2012 = vpop.f32.mrf.mxu0
        %v2013 = vpop.f32.mrf.mxu0
        %v2014 = vadd.f32 0.0, %v2013
        %v2015 = vpop.f32.mrf.mxu0
        %2016 = vdwg.mxu0
        %v2017 = vadd.f32 %v1695, %v1891
        %v2018 = vadd.f32 %v1696, %v1894
        %v2019 = vadd.f32 %v1697, %v1899
        %v2020 = vadd.f32 %v1698, %v1902
        %v2021 = vadd.f32 %v1699, %v1907
        %v2022 = vadd.f32 %v1700, %v1910
        %v2023 = vadd.f32 %v1701, %v1915
        %v2024 = vadd.f32 %v1702, %v1918
        %v2025 = vadd.f32 %v1703, %v1923
        %v2026 = vadd.f32 %v1704, %v1926
        %v2027 = vadd.f32 %v1705, %v1931
        %v2028 = vadd.f32 %v1706, %v1934
        %v2029 = vadd.f32 %v1707, %v1939
        %v2030 = vadd.f32 %v1708, %v1942
        %v2031 = vadd.f32 %v1709, %v1947
        %v2032 = vadd.f32 %v1710, %v1950
        %v2033 = vadd.f32 %v1711, %v1955
        %v2034 = vadd.f32 %v1712, %v1958
        %v2035 = vadd.f32 %v1713, %v1963
        %v2036 = vadd.f32 %v1714, %v1966
        %v2037 = vadd.f32 %v1715, %v1971
        %v2038 = vadd.f32 %v1716, %v1974
        %v2039 = vadd.f32 %v1717, %v1979
        %v2040 = vadd.f32 %v1718, %v1982
        %v2041 = vadd.f32 %v1719, %v1987
        %v2042 = vadd.f32 %v1720, %v1990
        %v2043 = vadd.f32 %v1721, %v1995
        %v2044 = vadd.f32 %v1722, %v1998
        %v2045 = vadd.f32 %v1723, %v2003
        %v2046 = vadd.f32 %v1724, %v2006
        %v2047 = vadd.f32 %v1725, %v2011
        %v2048 = vadd.f32 %v1726, %v2014
        %2049 = vst [vmem:[%s167] sm:$0xff] %v2017
        %2050 = vst [vmem:[%s167 + $0x8] sm:$0xff] %v2018
        %2051 = vst [vmem:[%s167 + $0x10] sm:$0xff] %v2019
        %2052 = vst [vmem:[%s167 + $0x18] sm:$0xff] %v2020
        %2053 = vst [vmem:[%s167 + $0x20] sm:$0xff] %v2021
        %2054 = vst [vmem:[%s167 + $0x28] sm:$0xff] %v2022
        %2055 = vst [vmem:[%s167 + $0x30] sm:$0xff] %v2023
        %2056 = vst [vmem:[%s167 + $0x38] sm:$0xff] %v2024
        %2057 = vst [vmem:[%s167 + $0x40] sm:$0xff] %v2025
        %2058 = vst [vmem:[%s167 + $0x48] sm:$0xff] %v2026
        %2059 = vst [vmem:[%s167 + $0x50] sm:$0xff] %v2027
        %2060 = vst [vmem:[%s167 + $0x58] sm:$0xff] %v2028
        %2061 = vst [vmem:[%s167 + $0x60] sm:$0xff] %v2029
        %2062 = vst [vmem:[%s167 + $0x68] sm:$0xff] %v2030
        %2063 = vst [vmem:[%s167 + $0x70] sm:$0xff] %v2031
        %2064 = vst [vmem:[%s167 + $0x78] sm:$0xff] %v2032
        %2065 = vst [vmem:[%s167 + $0x80] sm:$0xff] %v2033
        %2066 = vst [vmem:[%s167 + $0x88] sm:$0xff] %v2034
        %2067 = vst [vmem:[%s167 + $0x90] sm:$0xff] %v2035
        %2068 = vst [vmem:[%s167 + $0x98] sm:$0xff] %v2036
        %2069 = vst [vmem:[%s167 + $0xa0] sm:$0xff] %v2037
        %2070 = vst [vmem:[%s167 + $0xa8] sm:$0xff] %v2038
        %2071 = vst [vmem:[%s167 + $0xb0] sm:$0xff] %v2039
        %2072 = vst [vmem:[%s167 + $0xb8] sm:$0xff] %v2040
        %2073 = vst [vmem:[%s167 + $0xc0] sm:$0xff] %v2041
        %2074 = vst [vmem:[%s167 + $0xc8] sm:$0xff] %v2042
        %2075 = vst [vmem:[%s167 + $0xd0] sm:$0xff] %v2043
        %2076 = vst [vmem:[%s167 + $0xd8] sm:$0xff] %v2044
        %2077 = vst [vmem:[%s167 + $0xe0] sm:$0xff] %v2045
        %2078 = vst [vmem:[%s167 + $0xe8] sm:$0xff] %v2046
        %2079 = vst [vmem:[%s167 + $0xf0] sm:$0xff] %v2047
        %2080 = vst [vmem:[%s167 + $0xf8] sm:$0xff] %v2048
        %s2081 = scalar_lea.vmem %s179, 12
        %v2082 = vld [vmem:[%s2081] sm:$0xf]
        %v2083 = vld [vmem:[%s2081 + $0x4] sm:$0xf]
        %v2084 = vld [vmem:[%s2081 + $0xc] sm:$0xf]
        %v2085 = vld [vmem:[%s2081 + $0x10] sm:$0xf]
        %v2086 = vld [vmem:[%s2081 + $0x18] sm:$0xf]
        %v2087 = vld [vmem:[%s2081 + $0x1c] sm:$0xf]
        %v2088 = vld [vmem:[%s2081 + $0x24] sm:$0xf]
        %v2089 = vld [vmem:[%s2081 + $0x28] sm:$0xf]
        %v2090 = vld [vmem:[%s2081 + $0x30] sm:$0xf]
        %v2091 = vld [vmem:[%s2081 + $0x34] sm:$0xf]
        %v2092 = vld [vmem:[%s2081 + $0x3c] sm:$0xf]
        %v2093 = vld [vmem:[%s2081 + $0x40] sm:$0xf]
        %v2094 = vld [vmem:[%s2081 + $0x48] sm:$0xf]
        %v2095 = vld [vmem:[%s2081 + $0x4c] sm:$0xf]
        %v2096 = vld [vmem:[%s2081 + $0x54] sm:$0xf]
        %v2097 = vld [vmem:[%s2081 + $0x58] sm:$0xf]
        %v2098 = vld [vmem:[%s2081 + $0x60] sm:$0xf]
        %v2099 = vld [vmem:[%s2081 + $0x64] sm:$0xf]
        %v2100 = vld [vmem:[%s2081 + $0x6c] sm:$0xf]
        %v2101 = vld [vmem:[%s2081 + $0x70] sm:$0xf]
        %v2102 = vld [vmem:[%s2081 + $0x78] sm:$0xf]
        %v2103 = vld [vmem:[%s2081 + $0x7c] sm:$0xf]
        %v2104 = vld [vmem:[%s2081 + $0x84] sm:$0xf]
        %v2105 = vld [vmem:[%s2081 + $0x88] sm:$0xf]
        %v2106 = vld [vmem:[%s2081 + $0x90] sm:$0xf]
        %v2107 = vld [vmem:[%s2081 + $0x94] sm:$0xf]
        %v2108 = vld [vmem:[%s2081 + $0x9c] sm:$0xf]
        %v2109 = vld [vmem:[%s2081 + $0xa0] sm:$0xf]
        %v2110 = vld [vmem:[%s2081 + $0xa8] sm:$0xf]
        %v2111 = vld [vmem:[%s2081 + $0xac] sm:$0xf]
        %v2112 = vld [vmem:[%s2081 + $0xb4] sm:$0xf]
        %v2113 = vld [vmem:[%s2081 + $0xb8] sm:$0xf]
        %v2114 = vld [vmem:[%s167] sm:$0xff]
        %v2115 = vld [vmem:[%s167 + $0x8] sm:$0xff]
        %v2116 = vld [vmem:[%s167 + $0x10] sm:$0xff]
        %v2117 = vld [vmem:[%s167 + $0x18] sm:$0xff]
        %v2118 = vld [vmem:[%s167 + $0x20] sm:$0xff]
        %v2119 = vld [vmem:[%s167 + $0x28] sm:$0xff]
        %v2120 = vld [vmem:[%s167 + $0x30] sm:$0xff]
        %v2121 = vld [vmem:[%s167 + $0x38] sm:$0xff]
        %v2122 = vld [vmem:[%s167 + $0x40] sm:$0xff]
        %v2123 = vld [vmem:[%s167 + $0x48] sm:$0xff]
        %v2124 = vld [vmem:[%s167 + $0x50] sm:$0xff]
        %v2125 = vld [vmem:[%s167 + $0x58] sm:$0xff]
        %v2126 = vld [vmem:[%s167 + $0x60] sm:$0xff]
        %v2127 = vld [vmem:[%s167 + $0x68] sm:$0xff]
        %v2128 = vld [vmem:[%s167 + $0x70] sm:$0xff]
        %v2129 = vld [vmem:[%s167 + $0x78] sm:$0xff]
        %v2130 = vld [vmem:[%s167 + $0x80] sm:$0xff]
        %v2131 = vld [vmem:[%s167 + $0x88] sm:$0xff]
        %v2132 = vld [vmem:[%s167 + $0x90] sm:$0xff]
        %v2133 = vld [vmem:[%s167 + $0x98] sm:$0xff]
        %v2134 = vld [vmem:[%s167 + $0xa0] sm:$0xff]
        %v2135 = vld [vmem:[%s167 + $0xa8] sm:$0xff]
        %v2136 = vld [vmem:[%s167 + $0xb0] sm:$0xff]
        %v2137 = vld [vmem:[%s167 + $0xb8] sm:$0xff]
        %v2138 = vld [vmem:[%s167 + $0xc0] sm:$0xff]
        %v2139 = vld [vmem:[%s167 + $0xc8] sm:$0xff]
        %v2140 = vld [vmem:[%s167 + $0xd0] sm:$0xff]
        %v2141 = vld [vmem:[%s167 + $0xd8] sm:$0xff]
        %v2142 = vld [vmem:[%s167 + $0xe0] sm:$0xff]
        %v2143 = vld [vmem:[%s167 + $0xe8] sm:$0xff]
        %v2144 = vld [vmem:[%s167 + $0xf0] sm:$0xff]
        %v2145 = vld [vmem:[%s167 + $0xf8] sm:$0xff]
        %s2146 = scalar_lea.vmem %s1, 192
        %v2147 = vld [vmem:[%s2146] sm:$0xf]
        %v2148 = vld [vmem:[%s2146 + $0x4] sm:$0xf]
        %v2149 = vld [vmem:[%s2146 + $0x8] sm:$0xf]
        %v2150 = vld [vmem:[%s2146 + $0xc] sm:$0xf]
        %v2151 = vld [vmem:[%s2146 + $0x10] sm:$0xf]
        %v2152 = vld [vmem:[%s2146 + $0x14] sm:$0xf]
        %v2153 = vld [vmem:[%s2146 + $0x18] sm:$0xf]
        %v2154 = vld [vmem:[%s2146 + $0x1c] sm:$0xf]
        %v2155 = vld [vmem:[%s2146 + $0x20] sm:$0xf]
        %v2156 = vld [vmem:[%s2146 + $0x24] sm:$0xf]
        %v2157 = vld [vmem:[%s2146 + $0x28] sm:$0xf]
        %v2158 = vld [vmem:[%s2146 + $0x2c] sm:$0xf]
        %v2159 = vld [vmem:[%s2146 + $0x30] sm:$0xf]
        %v2160 = vld [vmem:[%s2146 + $0x34] sm:$0xf]
        %v2161 = vld [vmem:[%s2146 + $0x38] sm:$0xf]
        %v2162 = vld [vmem:[%s2146 + $0x3c] sm:$0xf]
        %v2195 = vunpack.c.l.b16 %v2082
        %v2196 = vunpack.c.l.b16 %v2083
        %v2197 = vunpack.c.l.b16 %v2084
        %v2198 = vunpack.c.l.b16 %v2085
        %v2199 = vunpack.c.l.b16 %v2086
        %v2200 = vunpack.c.l.b16 %v2087
        %v2201 = vunpack.c.l.b16 %v2088
        %v2202 = vunpack.c.l.b16 %v2089
        %v2203 = vunpack.c.l.b16 %v2090
        %v2204 = vunpack.c.l.b16 %v2091
        %v2205 = vunpack.c.l.b16 %v2092
        %v2206 = vunpack.c.l.b16 %v2093
        %v2207 = vunpack.c.l.b16 %v2094
        %v2208 = vunpack.c.l.b16 %v2095
        %v2209 = vunpack.c.l.b16 %v2096
        %v2210 = vunpack.c.l.b16 %v2097
        %v2211 = vunpack.c.l.b16 %v2098
        %v2212 = vunpack.c.l.b16 %v2099
        %v2213 = vunpack.c.l.b16 %v2100
        %v2214 = vunpack.c.l.b16 %v2101
        %v2215 = vunpack.c.l.b16 %v2102
        %v2216 = vunpack.c.l.b16 %v2103
        %v2217 = vunpack.c.l.b16 %v2104
        %v2218 = vunpack.c.l.b16 %v2105
        %v2219 = vunpack.c.l.b16 %v2106
        %v2220 = vunpack.c.l.b16 %v2107
        %v2221 = vunpack.c.l.b16 %v2108
        %v2222 = vunpack.c.l.b16 %v2109
        %v2223 = vunpack.c.l.b16 %v2110
        %v2224 = vunpack.c.l.b16 %v2111
        %v2225 = vunpack.c.l.b16 %v2112
        %v2226 = vunpack.c.l.b16 %v2113
        %v2227 = vpack.c.b16 %v2196, %v2195
        %v2228 = vpack.c.b16 %v2198, %v2197
        %v2229 = vpack.c.b16 %v2200, %v2199
        %v2230 = vpack.c.b16 %v2202, %v2201
        %v2231 = vpack.c.b16 %v2204, %v2203
        %v2232 = vpack.c.b16 %v2206, %v2205
        %v2233 = vpack.c.b16 %v2208, %v2207
        %v2234 = vpack.c.b16 %v2210, %v2209
        %v2235 = vpack.c.b16 %v2212, %v2211
        %v2236 = vpack.c.b16 %v2214, %v2213
        %v2237 = vpack.c.b16 %v2216, %v2215
        %v2238 = vpack.c.b16 %v2218, %v2217
        %v2239 = vpack.c.b16 %v2220, %v2219
        %v2240 = vpack.c.b16 %v2222, %v2221
        %v2241 = vpack.c.b16 %v2224, %v2223
        %v2242 = vpack.c.b16 %v2226, %v2225
        %v2275 = vunpack.c.l.b16 %v2147
        %v2276 = vunpack.c.l.b16 %v2148
        %v2277 = vunpack.c.l.b16 %v2149
        %v2278 = vunpack.c.l.b16 %v2150
        %v2279 = vunpack.c.l.b16 %v2151
        %v2280 = vunpack.c.l.b16 %v2152
        %v2281 = vunpack.c.l.b16 %v2153
        %v2282 = vunpack.c.l.b16 %v2154
        %v2283 = vunpack.c.l.b16 %v2155
        %v2284 = vunpack.c.l.b16 %v2156
        %v2285 = vunpack.c.l.b16 %v2157
        %v2286 = vunpack.c.l.b16 %v2158
        %v2287 = vunpack.c.l.b16 %v2159
        %v2288 = vunpack.c.l.b16 %v2160
        %v2289 = vunpack.c.l.b16 %v2161
        %v2290 = vunpack.c.l.b16 %v2162
        %v2291 = vpack.c.b16 %v2276, %v2275
        %v2292 = vpack.c.b16 %v2278, %v2277
        %v2293 = vpack.c.b16 %v2280, %v2279
        %v2294 = vpack.c.b16 %v2282, %v2281
        %v2295 = vpack.c.b16 %v2284, %v2283
        %v2296 = vpack.c.b16 %v2286, %v2285
        %v2297 = vpack.c.b16 %v2288, %v2287
        %v2298 = vpack.c.b16 %v2290, %v2289
        %2307 = vmatprep.subr.bf16.mxu0 0
        %2308 = vmatpush1.bf16.msra.mxu0 %v2298
        %2309 = vmatprep.subr.bf16.mxu0 0
        %2310 = vmatpush1.bf16.msra.mxu0 %v2297
        %2311 = vmatprep.subr.bf16.mxu0 0
        %2312 = vmatpush1.bf16.msra.mxu0 %v2296
        %2313 = vmatprep.subr.bf16.mxu0 0
        %2314 = vmatpush1.bf16.msra.mxu0 %v2295
        %2315 = vmatprep.subr.bf16.mxu0 0
        %2316 = vmatpush1.bf16.msra.mxu0 %v2294
        %2317 = vmatprep.subr.bf16.mxu0 0
        %2318 = vmatpush1.bf16.msra.mxu0 %v2293
        %2319 = vmatprep.subr.bf16.mxu0 0
        %2320 = vmatpush1.bf16.msra.mxu0 %v2292
        %2321 = vmatprep.subr.bf16.mxu0 0
        %2322 = vmatpush1.bf16.msra.mxu0 %v2291
        %2323 = vmatprep.subr.bf16.mxu0 0
        %2324 = vmatpush2.bf16.msra.mxu0 0
        %2325 = vmatprep.subr.bf16.mxu0 0
        %2326 = vmatpush2.bf16.msra.mxu0 0
        %2327 = vmatprep.subr.bf16.mxu0 0
        %2328 = vmatpush2.bf16.msra.mxu0 0
        %2329 = vmatprep.subr.bf16.mxu0 0
        %2330 = vmatpush2.bf16.msra.mxu0 0
        %2331 = vmatprep.subr.bf16.mxu0 0
        %2332 = vmatpush2.bf16.msra.mxu0 0
        %2333 = vmatprep.subr.bf16.mxu0 0
        %2334 = vmatpush2.bf16.msra.mxu0 0
        %2335 = vmatprep.subr.bf16.mxu0 0
        %2336 = vmatpush2.bf16.msra.mxu0 0
        %2337 = vmatprep.subr.bf16.mxu0 0
        %2338 = vmatpush2.bf16.msra.mxu0 0
        %2339 = vmatprep.mubr.bf16.mxu0 0
        %2340 = vmatmul.mubr.bf16.gmra.mxu0 %v2227
        %v2341 = vpop.f32.mrf.mxu0
        %v2342 = vadd.f32 0.0, %v2341
        %v2343 = vpop.f32.mrf.mxu0
        %v2344 = vpop.f32.mrf.mxu0
        %v2345 = vadd.f32 0.0, %v2344
        %v2346 = vpop.f32.mrf.mxu0
        %2347 = vmatprep.mubr.bf16.mxu0 0
        %2348 = vmatmul.mubr.bf16.gmra.mxu0 %v2228
        %v2349 = vpop.f32.mrf.mxu0
        %v2350 = vadd.f32 0.0, %v2349
        %v2351 = vpop.f32.mrf.mxu0
        %v2352 = vpop.f32.mrf.mxu0
        %v2353 = vadd.f32 0.0, %v2352
        %v2354 = vpop.f32.mrf.mxu0
        %2355 = vmatprep.mubr.bf16.mxu0 0
        %2356 = vmatmul.mubr.bf16.gmra.mxu0 %v2229
        %v2357 = vpop.f32.mrf.mxu0
        %v2358 = vadd.f32 0.0, %v2357
        %v2359 = vpop.f32.mrf.mxu0
        %v2360 = vpop.f32.mrf.mxu0
        %v2361 = vadd.f32 0.0, %v2360
        %v2362 = vpop.f32.mrf.mxu0
        %2363 = vmatprep.mubr.bf16.mxu0 0
        %2364 = vmatmul.mubr.bf16.gmra.mxu0 %v2230
        %v2365 = vpop.f32.mrf.mxu0
        %v2366 = vadd.f32 0.0, %v2365
        %v2367 = vpop.f32.mrf.mxu0
        %v2368 = vpop.f32.mrf.mxu0
        %v2369 = vadd.f32 0.0, %v2368
        %v2370 = vpop.f32.mrf.mxu0
        %2371 = vmatprep.mubr.bf16.mxu0 0
        %2372 = vmatmul.mubr.bf16.gmra.mxu0 %v2231
        %v2373 = vpop.f32.mrf.mxu0
        %v2374 = vadd.f32 0.0, %v2373
        %v2375 = vpop.f32.mrf.mxu0
        %v2376 = vpop.f32.mrf.mxu0
        %v2377 = vadd.f32 0.0, %v2376
        %v2378 = vpop.f32.mrf.mxu0
        %2379 = vmatprep.mubr.bf16.mxu0 0
        %2380 = vmatmul.mubr.bf16.gmra.mxu0 %v2232
        %v2381 = vpop.f32.mrf.mxu0
        %v2382 = vadd.f32 0.0, %v2381
        %v2383 = vpop.f32.mrf.mxu0
        %v2384 = vpop.f32.mrf.mxu0
        %v2385 = vadd.f32 0.0, %v2384
        %v2386 = vpop.f32.mrf.mxu0
        %2387 = vmatprep.mubr.bf16.mxu0 0
        %2388 = vmatmul.mubr.bf16.gmra.mxu0 %v2233
        %v2389 = vpop.f32.mrf.mxu0
        %v2390 = vadd.f32 0.0, %v2389
        %v2391 = vpop.f32.mrf.mxu0
        %v2392 = vpop.f32.mrf.mxu0
        %v2393 = vadd.f32 0.0, %v2392
        %v2394 = vpop.f32.mrf.mxu0
        %2395 = vmatprep.mubr.bf16.mxu0 0
        %2396 = vmatmul.mubr.bf16.gmra.mxu0 %v2234
        %v2397 = vpop.f32.mrf.mxu0
        %v2398 = vadd.f32 0.0, %v2397
        %v2399 = vpop.f32.mrf.mxu0
        %v2400 = vpop.f32.mrf.mxu0
        %v2401 = vadd.f32 0.0, %v2400
        %v2402 = vpop.f32.mrf.mxu0
        %2403 = vmatprep.mubr.bf16.mxu0 0
        %2404 = vmatmul.mubr.bf16.gmra.mxu0 %v2235
        %v2405 = vpop.f32.mrf.mxu0
        %v2406 = vadd.f32 0.0, %v2405
        %v2407 = vpop.f32.mrf.mxu0
        %v2408 = vpop.f32.mrf.mxu0
        %v2409 = vadd.f32 0.0, %v2408
        %v2410 = vpop.f32.mrf.mxu0
        %2411 = vmatprep.mubr.bf16.mxu0 0
        %2412 = vmatmul.mubr.bf16.gmra.mxu0 %v2236
        %v2413 = vpop.f32.mrf.mxu0
        %v2414 = vadd.f32 0.0, %v2413
        %v2415 = vpop.f32.mrf.mxu0
        %v2416 = vpop.f32.mrf.mxu0
        %v2417 = vadd.f32 0.0, %v2416
        %v2418 = vpop.f32.mrf.mxu0
        %2419 = vmatprep.mubr.bf16.mxu0 0
        %2420 = vmatmul.mubr.bf16.gmra.mxu0 %v2237
        %v2421 = vpop.f32.mrf.mxu0
        %v2422 = vadd.f32 0.0, %v2421
        %v2423 = vpop.f32.mrf.mxu0
        %v2424 = vpop.f32.mrf.mxu0
        %v2425 = vadd.f32 0.0, %v2424
        %v2426 = vpop.f32.mrf.mxu0
        %2427 = vmatprep.mubr.bf16.mxu0 0
        %2428 = vmatmul.mubr.bf16.gmra.mxu0 %v2238
        %v2429 = vpop.f32.mrf.mxu0
        %v2430 = vadd.f32 0.0, %v2429
        %v2431 = vpop.f32.mrf.mxu0
        %v2432 = vpop.f32.mrf.mxu0
        %v2433 = vadd.f32 0.0, %v2432
        %v2434 = vpop.f32.mrf.mxu0
        %2435 = vmatprep.mubr.bf16.mxu0 0
        %2436 = vmatmul.mubr.bf16.gmra.mxu0 %v2239
        %v2437 = vpop.f32.mrf.mxu0
        %v2438 = vadd.f32 0.0, %v2437
        %v2439 = vpop.f32.mrf.mxu0
        %v2440 = vpop.f32.mrf.mxu0
        %v2441 = vadd.f32 0.0, %v2440
        %v2442 = vpop.f32.mrf.mxu0
        %2443 = vmatprep.mubr.bf16.mxu0 0
        %2444 = vmatmul.mubr.bf16.gmra.mxu0 %v2240
        %v2445 = vpop.f32.mrf.mxu0
        %v2446 = vadd.f32 0.0, %v2445
        %v2447 = vpop.f32.mrf.mxu0
        %v2448 = vpop.f32.mrf.mxu0
        %v2449 = vadd.f32 0.0, %v2448
        %v2450 = vpop.f32.mrf.mxu0
        %2451 = vmatprep.mubr.bf16.mxu0 0
        %2452 = vmatmul.mubr.bf16.gmra.mxu0 %v2241
        %v2453 = vpop.f32.mrf.mxu0
        %v2454 = vadd.f32 0.0, %v2453
        %v2455 = vpop.f32.mrf.mxu0
        %v2456 = vpop.f32.mrf.mxu0
        %v2457 = vadd.f32 0.0, %v2456
        %v2458 = vpop.f32.mrf.mxu0
        %2459 = vmatprep.mubr.bf16.mxu0 0
        %2460 = vmatmul.mubr.bf16.gmra.mxu0 %v2242
        %v2461 = vpop.f32.mrf.mxu0
        %v2462 = vadd.f32 0.0, %v2461
        %v2463 = vpop.f32.mrf.mxu0
        %v2464 = vpop.f32.mrf.mxu0
        %v2465 = vadd.f32 0.0, %v2464
        %v2466 = vpop.f32.mrf.mxu0
        %2467 = vdwg.mxu0
        %v2468 = vadd.f32 %v2114, %v2342
        %v2469 = vadd.f32 %v2115, %v2345
        %v2470 = vadd.f32 %v2116, %v2350
        %v2471 = vadd.f32 %v2117, %v2353
        %v2472 = vadd.f32 %v2118, %v2358
        %v2473 = vadd.f32 %v2119, %v2361
        %v2474 = vadd.f32 %v2120, %v2366
        %v2475 = vadd.f32 %v2121, %v2369
        %v2476 = vadd.f32 %v2122, %v2374
        %v2477 = vadd.f32 %v2123, %v2377
        %v2478 = vadd.f32 %v2124, %v2382
        %v2479 = vadd.f32 %v2125, %v2385
        %v2480 = vadd.f32 %v2126, %v2390
        %v2481 = vadd.f32 %v2127, %v2393
        %v2482 = vadd.f32 %v2128, %v2398
        %v2483 = vadd.f32 %v2129, %v2401
        %v2484 = vadd.f32 %v2130, %v2406
        %v2485 = vadd.f32 %v2131, %v2409
        %v2486 = vadd.f32 %v2132, %v2414
        %v2487 = vadd.f32 %v2133, %v2417
        %v2488 = vadd.f32 %v2134, %v2422
        %v2489 = vadd.f32 %v2135, %v2425
        %v2490 = vadd.f32 %v2136, %v2430
        %v2491 = vadd.f32 %v2137, %v2433
        %v2492 = vadd.f32 %v2138, %v2438
        %v2493 = vadd.f32 %v2139, %v2441
        %v2494 = vadd.f32 %v2140, %v2446
        %v2495 = vadd.f32 %v2141, %v2449
        %v2496 = vadd.f32 %v2142, %v2454
        %v2497 = vadd.f32 %v2143, %v2457
        %v2498 = vadd.f32 %v2144, %v2462
        %v2499 = vadd.f32 %v2145, %v2465
        %2500 = vst [vmem:[%s167] sm:$0xff] %v2468
        %2501 = vst [vmem:[%s167 + $0x8] sm:$0xff] %v2469
        %2502 = vst [vmem:[%s167 + $0x10] sm:$0xff] %v2470
        %2503 = vst [vmem:[%s167 + $0x18] sm:$0xff] %v2471
        %2504 = vst [vmem:[%s167 + $0x20] sm:$0xff] %v2472
        %2505 = vst [vmem:[%s167 + $0x28] sm:$0xff] %v2473
        %2506 = vst [vmem:[%s167 + $0x30] sm:$0xff] %v2474
        %2507 = vst [vmem:[%s167 + $0x38] sm:$0xff] %v2475
        %2508 = vst [vmem:[%s167 + $0x40] sm:$0xff] %v2476
        %2509 = vst [vmem:[%s167 + $0x48] sm:$0xff] %v2477
        %2510 = vst [vmem:[%s167 + $0x50] sm:$0xff] %v2478
        %2511 = vst [vmem:[%s167 + $0x58] sm:$0xff] %v2479
        %2512 = vst [vmem:[%s167 + $0x60] sm:$0xff] %v2480
        %2513 = vst [vmem:[%s167 + $0x68] sm:$0xff] %v2481
        %2514 = vst [vmem:[%s167 + $0x70] sm:$0xff] %v2482
        %2515 = vst [vmem:[%s167 + $0x78] sm:$0xff] %v2483
        %2516 = vst [vmem:[%s167 + $0x80] sm:$0xff] %v2484
        %2517 = vst [vmem:[%s167 + $0x88] sm:$0xff] %v2485
        %2518 = vst [vmem:[%s167 + $0x90] sm:$0xff] %v2486
        %2519 = vst [vmem:[%s167 + $0x98] sm:$0xff] %v2487
        %2520 = vst [vmem:[%s167 + $0xa0] sm:$0xff] %v2488
        %2521 = vst [vmem:[%s167 + $0xa8] sm:$0xff] %v2489
        %2522 = vst [vmem:[%s167 + $0xb0] sm:$0xff] %v2490
        %2523 = vst [vmem:[%s167 + $0xb8] sm:$0xff] %v2491
        %2524 = vst [vmem:[%s167 + $0xc0] sm:$0xff] %v2492
        %2525 = vst [vmem:[%s167 + $0xc8] sm:$0xff] %v2493
        %2526 = vst [vmem:[%s167 + $0xd0] sm:$0xff] %v2494
        %2527 = vst [vmem:[%s167 + $0xd8] sm:$0xff] %v2495
        %2528 = vst [vmem:[%s167 + $0xe0] sm:$0xff] %v2496
        %2529 = vst [vmem:[%s167 + $0xe8] sm:$0xff] %v2497
        %2530 = vst [vmem:[%s167 + $0xf0] sm:$0xff] %v2498
        %2531 = vst [vmem:[%s167 + $0xf8] sm:$0xff] %v2499
        %v2532 = vld [vmem:[%s2081] sm:$0xf]
        %v2533 = vld [vmem:[%s2081 + $0x4] sm:$0xf]
        %v2534 = vld [vmem:[%s2081 + $0x8] sm:$0x1]
        %v2535 = vld [vmem:[%s2081 + $0xc] sm:$0xf]
        %v2536 = vld [vmem:[%s2081 + $0x10] sm:$0xf]
        %v2537 = vld [vmem:[%s2081 + $0x14] sm:$0x1]
        %v2538 = vld [vmem:[%s2081 + $0x18] sm:$0xf]
        %v2539 = vld [vmem:[%s2081 + $0x1c] sm:$0xf]
        %v2540 = vld [vmem:[%s2081 + $0x20] sm:$0x1]
        %v2541 = vld [vmem:[%s2081 + $0x24] sm:$0xf]
        %v2542 = vld [vmem:[%s2081 + $0x28] sm:$0xf]
        %v2543 = vld [vmem:[%s2081 + $0x2c] sm:$0x1]
        %v2544 = vld [vmem:[%s2081 + $0x30] sm:$0xf]
        %v2545 = vld [vmem:[%s2081 + $0x34] sm:$0xf]
        %v2546 = vld [vmem:[%s2081 + $0x38] sm:$0x1]
        %v2547 = vld [vmem:[%s2081 + $0x3c] sm:$0xf]
        %v2548 = vld [vmem:[%s2081 + $0x40] sm:$0xf]
        %v2549 = vld [vmem:[%s2081 + $0x44] sm:$0x1]
        %v2550 = vld [vmem:[%s2081 + $0x48] sm:$0xf]
        %v2551 = vld [vmem:[%s2081 + $0x4c] sm:$0xf]
        %v2552 = vld [vmem:[%s2081 + $0x50] sm:$0x1]
        %v2553 = vld [vmem:[%s2081 + $0x54] sm:$0xf]
        %v2554 = vld [vmem:[%s2081 + $0x58] sm:$0xf]
        %v2555 = vld [vmem:[%s2081 + $0x5c] sm:$0x1]
        %v2556 = vld [vmem:[%s2081 + $0x60] sm:$0xf]
        %v2557 = vld [vmem:[%s2081 + $0x64] sm:$0xf]
        %v2558 = vld [vmem:[%s2081 + $0x68] sm:$0x1]
        %v2559 = vld [vmem:[%s2081 + $0x6c] sm:$0xf]
        %v2560 = vld [vmem:[%s2081 + $0x70] sm:$0xf]
        %v2561 = vld [vmem:[%s2081 + $0x74] sm:$0x1]
        %v2562 = vld [vmem:[%s2081 + $0x78] sm:$0xf]
        %v2563 = vld [vmem:[%s2081 + $0x7c] sm:$0xf]
        %v2564 = vld [vmem:[%s2081 + $0x80] sm:$0x1]
        %v2565 = vld [vmem:[%s2081 + $0x84] sm:$0xf]
        %v2566 = vld [vmem:[%s2081 + $0x88] sm:$0xf]
        %v2567 = vld [vmem:[%s2081 + $0x8c] sm:$0x1]
        %v2568 = vld [vmem:[%s2081 + $0x90] sm:$0xf]
        %v2569 = vld [vmem:[%s2081 + $0x94] sm:$0xf]
        %v2570 = vld [vmem:[%s2081 + $0x98] sm:$0x1]
        %v2571 = vld [vmem:[%s2081 + $0x9c] sm:$0xf]
        %v2572 = vld [vmem:[%s2081 + $0xa0] sm:$0xf]
        %v2573 = vld [vmem:[%s2081 + $0xa4] sm:$0x1]
        %v2574 = vld [vmem:[%s2081 + $0xa8] sm:$0xf]
        %v2575 = vld [vmem:[%s2081 + $0xac] sm:$0xf]
        %v2576 = vld [vmem:[%s2081 + $0xb0] sm:$0x1]
        %v2577 = vld [vmem:[%s2081 + $0xb4] sm:$0xf]
        %v2578 = vld [vmem:[%s2081 + $0xb8] sm:$0xf]
        %v2579 = vld [vmem:[%s2081 + $0xbc] sm:$0x1]
        %v2581 = vshrl.u32 %v2532, 16
        %v2583 = vrot.slane %v2581, 4
        %v2584 = vshll.u32 %v2532, 16
        %v2586 = vrot.slane %v2584, 5
        %v2587 = vor.u32 %v2583, %v2586
        %v2588 = vrot.slane %v2587, 4
        %v2590 = vshll.u32 %v2533, 16
        %v2592 = vrot.slane %v2590, 5
        %v2593 = vsel %vm713, %v2588, %v2592
        %v2594 = vshrl.u32 %v2533, 16
        %v2596 = vrot.slane %v2594, 4
        %v2597 = vor.u32 %v2596, %v2592
        %v2598 = vrot.slane %v2597, 4
        %v2600 = vshll.u32 %v2534, 16
        %v2602 = vrot.slane %v2600, 5
        %v2603 = vsel %vm713, %v2598, %v2602
        %v2605 = vshrl.u32 %v2535, 16
        %v2607 = vrot.slane %v2605, 4
        %v2608 = vshll.u32 %v2535, 16
        %v2610 = vrot.slane %v2608, 5
        %v2611 = vor.u32 %v2607, %v2610
        %v2612 = vrot.slane %v2611, 4
        %v2614 = vshll.u32 %v2536, 16
        %v2616 = vrot.slane %v2614, 5
        %v2617 = vsel %vm713, %v2612, %v2616
        %v2618 = vshrl.u32 %v2536, 16
        %v2620 = vrot.slane %v2618, 4
        %v2621 = vor.u32 %v2620, %v2616
        %v2622 = vrot.slane %v2621, 4
        %v2624 = vshll.u32 %v2537, 16
        %v2626 = vrot.slane %v2624, 5
        %v2627 = vsel %vm713, %v2622, %v2626
        %v2629 = vshrl.u32 %v2538, 16
        %v2631 = vrot.slane %v2629, 4
        %v2632 = vshll.u32 %v2538, 16
        %v2634 = vrot.slane %v2632, 5
        %v2635 = vor.u32 %v2631, %v2634
        %v2636 = vrot.slane %v2635, 4
        %v2638 = vshll.u32 %v2539, 16
        %v2640 = vrot.slane %v2638, 5
        %v2641 = vsel %vm713, %v2636, %v2640
        %v2642 = vshrl.u32 %v2539, 16
        %v2644 = vrot.slane %v2642, 4
        %v2645 = vor.u32 %v2644, %v2640
        %v2646 = vrot.slane %v2645, 4
        %v2648 = vshll.u32 %v2540, 16
        %v2650 = vrot.slane %v2648, 5
        %v2651 = vsel %vm713, %v2646, %v2650
        %v2653 = vshrl.u32 %v2541, 16
        %v2655 = vrot.slane %v2653, 4
        %v2656 = vshll.u32 %v2541, 16
        %v2658 = vrot.slane %v2656, 5
        %v2659 = vor.u32 %v2655, %v2658
        %v2660 = vrot.slane %v2659, 4
        %v2662 = vshll.u32 %v2542, 16
        %v2664 = vrot.slane %v2662, 5
        %v2665 = vsel %vm713, %v2660, %v2664
        %v2666 = vshrl.u32 %v2542, 16
        %v2668 = vrot.slane %v2666, 4
        %v2669 = vor.u32 %v2668, %v2664
        %v2670 = vrot.slane %v2669, 4
        %v2672 = vshll.u32 %v2543, 16
        %v2674 = vrot.slane %v2672, 5
        %v2675 = vsel %vm713, %v2670, %v2674
        %v2677 = vshrl.u32 %v2544, 16
        %v2679 = vrot.slane %v2677, 4
        %v2680 = vshll.u32 %v2544, 16
        %v2682 = vrot.slane %v2680, 5
        %v2683 = vor.u32 %v2679, %v2682
        %v2684 = vrot.slane %v2683, 4
        %v2686 = vshll.u32 %v2545, 16
        %v2688 = vrot.slane %v2686, 5
        %v2689 = vsel %vm713, %v2684, %v2688
        %v2690 = vshrl.u32 %v2545, 16
        %v2692 = vrot.slane %v2690, 4
        %v2693 = vor.u32 %v2692, %v2688
        %v2694 = vrot.slane %v2693, 4
        %v2696 = vshll.u32 %v2546, 16
        %v2698 = vrot.slane %v2696, 5
        %v2699 = vsel %vm713, %v2694, %v2698
        %v2701 = vshrl.u32 %v2547, 16
        %v2703 = vrot.slane %v2701, 4
        %v2704 = vshll.u32 %v2547, 16
        %v2706 = vrot.slane %v2704, 5
        %v2707 = vor.u32 %v2703, %v2706
        %v2708 = vrot.slane %v2707, 4
        %v2710 = vshll.u32 %v2548, 16
        %v2712 = vrot.slane %v2710, 5
        %v2713 = vsel %vm713, %v2708, %v2712
        %v2714 = vshrl.u32 %v2548, 16
        %v2716 = vrot.slane %v2714, 4
        %v2717 = vor.u32 %v2716, %v2712
        %v2718 = vrot.slane %v2717, 4
        %v2720 = vshll.u32 %v2549, 16
        %v2722 = vrot.slane %v2720, 5
        %v2723 = vsel %vm713, %v2718, %v2722
        %v2725 = vshrl.u32 %v2550, 16
        %v2727 = vrot.slane %v2725, 4
        %v2728 = vshll.u32 %v2550, 16
        %v2730 = vrot.slane %v2728, 5
        %v2731 = vor.u32 %v2727, %v2730
        %v2732 = vrot.slane %v2731, 4
        %v2734 = vshll.u32 %v2551, 16
        %v2736 = vrot.slane %v2734, 5
        %v2737 = vsel %vm713, %v2732, %v2736
        %v2738 = vshrl.u32 %v2551, 16
        %v2740 = vrot.slane %v2738, 4
        %v2741 = vor.u32 %v2740, %v2736
        %v2742 = vrot.slane %v2741, 4
        %v2744 = vshll.u32 %v2552, 16
        %v2746 = vrot.slane %v2744, 5
        %v2747 = vsel %vm713, %v2742, %v2746
        %v2749 = vshrl.u32 %v2553, 16
        %v2751 = vrot.slane %v2749, 4
        %v2752 = vshll.u32 %v2553, 16
        %v2754 = vrot.slane %v2752, 5
        %v2755 = vor.u32 %v2751, %v2754
        %v2756 = vrot.slane %v2755, 4
        %v2758 = vshll.u32 %v2554, 16
        %v2760 = vrot.slane %v2758, 5
        %v2761 = vsel %vm713, %v2756, %v2760
        %v2762 = vshrl.u32 %v2554, 16
        %v2764 = vrot.slane %v2762, 4
        %v2765 = vor.u32 %v2764, %v2760
        %v2766 = vrot.slane %v2765, 4
        %v2768 = vshll.u32 %v2555, 16
        %v2770 = vrot.slane %v2768, 5
        %v2771 = vsel %vm713, %v2766, %v2770
        %v2773 = vshrl.u32 %v2556, 16
        %v2775 = vrot.slane %v2773, 4
        %v2776 = vshll.u32 %v2556, 16
        %v2778 = vrot.slane %v2776, 5
        %v2779 = vor.u32 %v2775, %v2778
        %v2780 = vrot.slane %v2779, 4
        %v2782 = vshll.u32 %v2557, 16
        %v2784 = vrot.slane %v2782, 5
        %v2785 = vsel %vm713, %v2780, %v2784
        %v2786 = vshrl.u32 %v2557, 16
        %v2788 = vrot.slane %v2786, 4
        %v2789 = vor.u32 %v2788, %v2784
        %v2790 = vrot.slane %v2789, 4
        %v2792 = vshll.u32 %v2558, 16
        %v2794 = vrot.slane %v2792, 5
        %v2795 = vsel %vm713, %v2790, %v2794
        %v2797 = vshrl.u32 %v2559, 16
        %v2799 = vrot.slane %v2797, 4
        %v2800 = vshll.u32 %v2559, 16
        %v2802 = vrot.slane %v2800, 5
        %v2803 = vor.u32 %v2799, %v2802
        %v2804 = vrot.slane %v2803, 4
        %v2806 = vshll.u32 %v2560, 16
        %v2808 = vrot.slane %v2806, 5
        %v2809 = vsel %vm713, %v2804, %v2808
        %v2810 = vshrl.u32 %v2560, 16
        %v2812 = vrot.slane %v2810, 4
        %v2813 = vor.u32 %v2812, %v2808
        %v2814 = vrot.slane %v2813, 4
        %v2816 = vshll.u32 %v2561, 16
        %v2818 = vrot.slane %v2816, 5
        %v2819 = vsel %vm713, %v2814, %v2818
        %v2821 = vshrl.u32 %v2562, 16
        %v2823 = vrot.slane %v2821, 4
        %v2824 = vshll.u32 %v2562, 16
        %v2826 = vrot.slane %v2824, 5
        %v2827 = vor.u32 %v2823, %v2826
        %v2828 = vrot.slane %v2827, 4
        %v2830 = vshll.u32 %v2563, 16
        %v2832 = vrot.slane %v2830, 5
        %v2833 = vsel %vm713, %v2828, %v2832
        %v2834 = vshrl.u32 %v2563, 16
        %v2836 = vrot.slane %v2834, 4
        %v2837 = vor.u32 %v2836, %v2832
        %v2838 = vrot.slane %v2837, 4
        %v2840 = vshll.u32 %v2564, 16
        %v2842 = vrot.slane %v2840, 5
        %v2843 = vsel %vm713, %v2838, %v2842
        %v2845 = vshrl.u32 %v2565, 16
        %v2847 = vrot.slane %v2845, 4
        %v2848 = vshll.u32 %v2565, 16
        %v2850 = vrot.slane %v2848, 5
        %v2851 = vor.u32 %v2847, %v2850
        %v2852 = vrot.slane %v2851, 4
        %v2854 = vshll.u32 %v2566, 16
        %v2856 = vrot.slane %v2854, 5
        %v2857 = vsel %vm713, %v2852, %v2856
        %v2858 = vshrl.u32 %v2566, 16
        %v2860 = vrot.slane %v2858, 4
        %v2861 = vor.u32 %v2860, %v2856
        %v2862 = vrot.slane %v2861, 4
        %v2864 = vshll.u32 %v2567, 16
        %v2866 = vrot.slane %v2864, 5
        %v2867 = vsel %vm713, %v2862, %v2866
        %v2869 = vshrl.u32 %v2568, 16
        %v2871 = vrot.slane %v2869, 4
        %v2872 = vshll.u32 %v2568, 16
        %v2874 = vrot.slane %v2872, 5
        %v2875 = vor.u32 %v2871, %v2874
        %v2876 = vrot.slane %v2875, 4
        %v2878 = vshll.u32 %v2569, 16
        %v2880 = vrot.slane %v2878, 5
        %v2881 = vsel %vm713, %v2876, %v2880
        %v2882 = vshrl.u32 %v2569, 16
        %v2884 = vrot.slane %v2882, 4
        %v2885 = vor.u32 %v2884, %v2880
        %v2886 = vrot.slane %v2885, 4
        %v2888 = vshll.u32 %v2570, 16
        %v2890 = vrot.slane %v2888, 5
        %v2891 = vsel %vm713, %v2886, %v2890
        %v2893 = vshrl.u32 %v2571, 16
        %v2895 = vrot.slane %v2893, 4
        %v2896 = vshll.u32 %v2571, 16
        %v2898 = vrot.slane %v2896, 5
        %v2899 = vor.u32 %v2895, %v2898
        %v2900 = vrot.slane %v2899, 4
        %v2902 = vshll.u32 %v2572, 16
        %v2904 = vrot.slane %v2902, 5
        %v2905 = vsel %vm713, %v2900, %v2904
        %v2906 = vshrl.u32 %v2572, 16
        %v2908 = vrot.slane %v2906, 4
        %v2909 = vor.u32 %v2908, %v2904
        %v2910 = vrot.slane %v2909, 4
        %v2912 = vshll.u32 %v2573, 16
        %v2914 = vrot.slane %v2912, 5
        %v2915 = vsel %vm713, %v2910, %v2914
        %v2917 = vshrl.u32 %v2574, 16
        %v2919 = vrot.slane %v2917, 4
        %v2920 = vshll.u32 %v2574, 16
        %v2922 = vrot.slane %v2920, 5
        %v2923 = vor.u32 %v2919, %v2922
        %v2924 = vrot.slane %v2923, 4
        %v2926 = vshll.u32 %v2575, 16
        %v2928 = vrot.slane %v2926, 5
        %v2929 = vsel %vm713, %v2924, %v2928
        %v2930 = vshrl.u32 %v2575, 16
        %v2932 = vrot.slane %v2930, 4
        %v2933 = vor.u32 %v2932, %v2928
        %v2934 = vrot.slane %v2933, 4
        %v2936 = vshll.u32 %v2576, 16
        %v2938 = vrot.slane %v2936, 5
        %v2939 = vsel %vm713, %v2934, %v2938
        %v2941 = vshrl.u32 %v2577, 16
        %v2943 = vrot.slane %v2941, 4
        %v2944 = vshll.u32 %v2577, 16
        %v2946 = vrot.slane %v2944, 5
        %v2947 = vor.u32 %v2943, %v2946
        %v2948 = vrot.slane %v2947, 4
        %v2950 = vshll.u32 %v2578, 16
        %v2952 = vrot.slane %v2950, 5
        %v2953 = vsel %vm713, %v2948, %v2952
        %v2954 = vshrl.u32 %v2578, 16
        %v2956 = vrot.slane %v2954, 4
        %v2957 = vor.u32 %v2956, %v2952
        %v2958 = vrot.slane %v2957, 4
        %v2960 = vshll.u32 %v2579, 16
        %v2962 = vrot.slane %v2960, 5
        %v2963 = vsel %vm713, %v2958, %v2962
        %v2964 = vld [vmem:[%s167] sm:$0xff]
        %v2965 = vld [vmem:[%s167 + $0x8] sm:$0xff]
        %v2966 = vld [vmem:[%s167 + $0x10] sm:$0xff]
        %v2967 = vld [vmem:[%s167 + $0x18] sm:$0xff]
        %v2968 = vld [vmem:[%s167 + $0x20] sm:$0xff]
        %v2969 = vld [vmem:[%s167 + $0x28] sm:$0xff]
        %v2970 = vld [vmem:[%s167 + $0x30] sm:$0xff]
        %v2971 = vld [vmem:[%s167 + $0x38] sm:$0xff]
        %v2972 = vld [vmem:[%s167 + $0x40] sm:$0xff]
        %v2973 = vld [vmem:[%s167 + $0x48] sm:$0xff]
        %v2974 = vld [vmem:[%s167 + $0x50] sm:$0xff]
        %v2975 = vld [vmem:[%s167 + $0x58] sm:$0xff]
        %v2976 = vld [vmem:[%s167 + $0x60] sm:$0xff]
        %v2977 = vld [vmem:[%s167 + $0x68] sm:$0xff]
        %v2978 = vld [vmem:[%s167 + $0x70] sm:$0xff]
        %v2979 = vld [vmem:[%s167 + $0x78] sm:$0xff]
        %v2980 = vld [vmem:[%s167 + $0x80] sm:$0xff]
        %v2981 = vld [vmem:[%s167 + $0x88] sm:$0xff]
        %v2982 = vld [vmem:[%s167 + $0x90] sm:$0xff]
        %v2983 = vld [vmem:[%s167 + $0x98] sm:$0xff]
        %v2984 = vld [vmem:[%s167 + $0xa0] sm:$0xff]
        %v2985 = vld [vmem:[%s167 + $0xa8] sm:$0xff]
        %v2986 = vld [vmem:[%s167 + $0xb0] sm:$0xff]
        %v2987 = vld [vmem:[%s167 + $0xb8] sm:$0xff]
        %v2988 = vld [vmem:[%s167 + $0xc0] sm:$0xff]
        %v2989 = vld [vmem:[%s167 + $0xc8] sm:$0xff]
        %v2990 = vld [vmem:[%s167 + $0xd0] sm:$0xff]
        %v2991 = vld [vmem:[%s167 + $0xd8] sm:$0xff]
        %v2992 = vld [vmem:[%s167 + $0xe0] sm:$0xff]
        %v2993 = vld [vmem:[%s167 + $0xe8] sm:$0xff]
        %v2994 = vld [vmem:[%s167 + $0xf0] sm:$0xff]
        %v2995 = vld [vmem:[%s167 + $0xf8] sm:$0xff]
        %s2996 = scalar_lea.vmem %s1, 256
        %v2997 = vld [vmem:[%s2996] sm:$0xf]
        %v2998 = vld [vmem:[%s2996 + $0x4] sm:$0xf]
        %v2999 = vld [vmem:[%s2996 + $0x8] sm:$0xf]
        %v3000 = vld [vmem:[%s2996 + $0xc] sm:$0xf]
        %v3001 = vld [vmem:[%s2996 + $0x10] sm:$0xf]
        %v3002 = vld [vmem:[%s2996 + $0x14] sm:$0xf]
        %v3003 = vld [vmem:[%s2996 + $0x18] sm:$0xf]
        %v3004 = vld [vmem:[%s2996 + $0x1c] sm:$0xf]
        %v3005 = vld [vmem:[%s2996 + $0x20] sm:$0xf]
        %v3006 = vld [vmem:[%s2996 + $0x24] sm:$0xf]
        %v3007 = vld [vmem:[%s2996 + $0x28] sm:$0xf]
        %v3008 = vld [vmem:[%s2996 + $0x2c] sm:$0xf]
        %v3009 = vld [vmem:[%s2996 + $0x30] sm:$0xf]
        %v3010 = vld [vmem:[%s2996 + $0x34] sm:$0xf]
        %v3011 = vld [vmem:[%s2996 + $0x38] sm:$0xf]
        %v3012 = vld [vmem:[%s2996 + $0x3c] sm:$0xf]
        %v3013 = vunpack.c.l.b16 %v2593
        %v3014 = vunpack.c.l.b16 %v2603
        %v3015 = vunpack.c.l.b16 %v2617
        %v3016 = vunpack.c.l.b16 %v2627
        %v3017 = vunpack.c.l.b16 %v2641
        %v3018 = vunpack.c.l.b16 %v2651
        %v3019 = vunpack.c.l.b16 %v2665
        %v3020 = vunpack.c.l.b16 %v2675
        %v3021 = vunpack.c.l.b16 %v2689
        %v3022 = vunpack.c.l.b16 %v2699
        %v3023 = vunpack.c.l.b16 %v2713
        %v3024 = vunpack.c.l.b16 %v2723
        %v3025 = vunpack.c.l.b16 %v2737
        %v3026 = vunpack.c.l.b16 %v2747
        %v3027 = vunpack.c.l.b16 %v2761
        %v3028 = vunpack.c.l.b16 %v2771
        %v3029 = vunpack.c.l.b16 %v2785
        %v3030 = vunpack.c.l.b16 %v2795
        %v3031 = vunpack.c.l.b16 %v2809
        %v3032 = vunpack.c.l.b16 %v2819
        %v3033 = vunpack.c.l.b16 %v2833
        %v3034 = vunpack.c.l.b16 %v2843
        %v3035 = vunpack.c.l.b16 %v2857
        %v3036 = vunpack.c.l.b16 %v2867
        %v3037 = vunpack.c.l.b16 %v2881
        %v3038 = vunpack.c.l.b16 %v2891
        %v3039 = vunpack.c.l.b16 %v2905
        %v3040 = vunpack.c.l.b16 %v2915
        %v3041 = vunpack.c.l.b16 %v2929
        %v3042 = vunpack.c.l.b16 %v2939
        %v3043 = vunpack.c.l.b16 %v2953
        %v3044 = vunpack.c.l.b16 %v2963
        %v3045 = vpack.c.b16 %v3014, %v3013
        %v3046 = vpack.c.b16 %v3016, %v3015
        %v3047 = vpack.c.b16 %v3018, %v3017
        %v3048 = vpack.c.b16 %v3020, %v3019
        %v3049 = vpack.c.b16 %v3022, %v3021
        %v3050 = vpack.c.b16 %v3024, %v3023
        %v3051 = vpack.c.b16 %v3026, %v3025
        %v3052 = vpack.c.b16 %v3028, %v3027
        %v3053 = vpack.c.b16 %v3030, %v3029
        %v3054 = vpack.c.b16 %v3032, %v3031
        %v3055 = vpack.c.b16 %v3034, %v3033
        %v3056 = vpack.c.b16 %v3036, %v3035
        %v3057 = vpack.c.b16 %v3038, %v3037
        %v3058 = vpack.c.b16 %v3040, %v3039
        %v3059 = vpack.c.b16 %v3042, %v3041
        %v3060 = vpack.c.b16 %v3044, %v3043
        %v3093 = vunpack.c.l.b16 %v2997
        %v3094 = vunpack.c.l.b16 %v2998
        %v3095 = vunpack.c.l.b16 %v2999
        %v3096 = vunpack.c.l.b16 %v3000
        %v3097 = vunpack.c.l.b16 %v3001
        %v3098 = vunpack.c.l.b16 %v3002
        %v3099 = vunpack.c.l.b16 %v3003
        %v3100 = vunpack.c.l.b16 %v3004
        %v3101 = vunpack.c.l.b16 %v3005
        %v3102 = vunpack.c.l.b16 %v3006
        %v3103 = vunpack.c.l.b16 %v3007
        %v3104 = vunpack.c.l.b16 %v3008
        %v3105 = vunpack.c.l.b16 %v3009
        %v3106 = vunpack.c.l.b16 %v3010
        %v3107 = vunpack.c.l.b16 %v3011
        %v3108 = vunpack.c.l.b16 %v3012
        %v3109 = vpack.c.b16 %v3094, %v3093
        %v3110 = vpack.c.b16 %v3096, %v3095
        %v3111 = vpack.c.b16 %v3098, %v3097
        %v3112 = vpack.c.b16 %v3100, %v3099
        %v3113 = vpack.c.b16 %v3102, %v3101
        %v3114 = vpack.c.b16 %v3104, %v3103
        %v3115 = vpack.c.b16 %v3106, %v3105
        %v3116 = vpack.c.b16 %v3108, %v3107
        %3125 = vmatprep.subr.bf16.mxu0 0
        %3126 = vmatpush1.bf16.msra.mxu0 %v3116
        %3127 = vmatprep.subr.bf16.mxu0 0
        %3128 = vmatpush1.bf16.msra.mxu0 %v3115
        %3129 = vmatprep.subr.bf16.mxu0 0
        %3130 = vmatpush1.bf16.msra.mxu0 %v3114
        %3131 = vmatprep.subr.bf16.mxu0 0
        %3132 = vmatpush1.bf16.msra.mxu0 %v3113
        %3133 = vmatprep.subr.bf16.mxu0 0
        %3134 = vmatpush1.bf16.msra.mxu0 %v3112
        %3135 = vmatprep.subr.bf16.mxu0 0
        %3136 = vmatpush1.bf16.msra.mxu0 %v3111
        %3137 = vmatprep.subr.bf16.mxu0 0
        %3138 = vmatpush1.bf16.msra.mxu0 %v3110
        %3139 = vmatprep.subr.bf16.mxu0 0
        %3140 = vmatpush1.bf16.msra.mxu0 %v3109
        %3141 = vmatprep.subr.bf16.mxu0 0
        %3142 = vmatpush2.bf16.msra.mxu0 0
        %3143 = vmatprep.subr.bf16.mxu0 0
        %3144 = vmatpush2.bf16.msra.mxu0 0
        %3145 = vmatprep.subr.bf16.mxu0 0
        %3146 = vmatpush2.bf16.msra.mxu0 0
        %3147 = vmatprep.subr.bf16.mxu0 0
        %3148 = vmatpush2.bf16.msra.mxu0 0
        %3149 = vmatprep.subr.bf16.mxu0 0
        %3150 = vmatpush2.bf16.msra.mxu0 0
        %3151 = vmatprep.subr.bf16.mxu0 0
        %3152 = vmatpush2.bf16.msra.mxu0 0
        %3153 = vmatprep.subr.bf16.mxu0 0
        %3154 = vmatpush2.bf16.msra.mxu0 0
        %3155 = vmatprep.subr.bf16.mxu0 0
        %3156 = vmatpush2.bf16.msra.mxu0 0
        %3157 = vmatprep.mubr.bf16.mxu0 0
        %3158 = vmatmul.mubr.bf16.gmra.mxu0 %v3045
        %v3159 = vpop.f32.mrf.mxu0
        %v3160 = vadd.f32 0.0, %v3159
        %v3161 = vpop.f32.mrf.mxu0
        %v3162 = vpop.f32.mrf.mxu0
        %v3163 = vadd.f32 0.0, %v3162
        %v3164 = vpop.f32.mrf.mxu0
        %3165 = vmatprep.mubr.bf16.mxu0 0
        %3166 = vmatmul.mubr.bf16.gmra.mxu0 %v3046
        %v3167 = vpop.f32.mrf.mxu0
        %v3168 = vadd.f32 0.0, %v3167
        %v3169 = vpop.f32.mrf.mxu0
        %v3170 = vpop.f32.mrf.mxu0
        %v3171 = vadd.f32 0.0, %v3170
        %v3172 = vpop.f32.mrf.mxu0
        %3173 = vmatprep.mubr.bf16.mxu0 0
        %3174 = vmatmul.mubr.bf16.gmra.mxu0 %v3047
        %v3175 = vpop.f32.mrf.mxu0
        %v3176 = vadd.f32 0.0, %v3175
        %v3177 = vpop.f32.mrf.mxu0
        %v3178 = vpop.f32.mrf.mxu0
        %v3179 = vadd.f32 0.0, %v3178
        %v3180 = vpop.f32.mrf.mxu0
        %3181 = vmatprep.mubr.bf16.mxu0 0
        %3182 = vmatmul.mubr.bf16.gmra.mxu0 %v3048
        %v3183 = vpop.f32.mrf.mxu0
        %v3184 = vadd.f32 0.0, %v3183
        %v3185 = vpop.f32.mrf.mxu0
        %v3186 = vpop.f32.mrf.mxu0
        %v3187 = vadd.f32 0.0, %v3186
        %v3188 = vpop.f32.mrf.mxu0
        %3189 = vmatprep.mubr.bf16.mxu0 0
        %3190 = vmatmul.mubr.bf16.gmra.mxu0 %v3049
        %v3191 = vpop.f32.mrf.mxu0
        %v3192 = vadd.f32 0.0, %v3191
        %v3193 = vpop.f32.mrf.mxu0
        %v3194 = vpop.f32.mrf.mxu0
        %v3195 = vadd.f32 0.0, %v3194
        %v3196 = vpop.f32.mrf.mxu0
        %3197 = vmatprep.mubr.bf16.mxu0 0
        %3198 = vmatmul.mubr.bf16.gmra.mxu0 %v3050
        %v3199 = vpop.f32.mrf.mxu0
        %v3200 = vadd.f32 0.0, %v3199
        %v3201 = vpop.f32.mrf.mxu0
        %v3202 = vpop.f32.mrf.mxu0
        %v3203 = vadd.f32 0.0, %v3202
        %v3204 = vpop.f32.mrf.mxu0
        %3205 = vmatprep.mubr.bf16.mxu0 0
        %3206 = vmatmul.mubr.bf16.gmra.mxu0 %v3051
        %v3207 = vpop.f32.mrf.mxu0
        %v3208 = vadd.f32 0.0, %v3207
        %v3209 = vpop.f32.mrf.mxu0
        %v3210 = vpop.f32.mrf.mxu0
        %v3211 = vadd.f32 0.0, %v3210
        %v3212 = vpop.f32.mrf.mxu0
        %3213 = vmatprep.mubr.bf16.mxu0 0
        %3214 = vmatmul.mubr.bf16.gmra.mxu0 %v3052
        %v3215 = vpop.f32.mrf.mxu0
        %v3216 = vadd.f32 0.0, %v3215
        %v3217 = vpop.f32.mrf.mxu0
        %v3218 = vpop.f32.mrf.mxu0
        %v3219 = vadd.f32 0.0, %v3218
        %v3220 = vpop.f32.mrf.mxu0
        %3221 = vmatprep.mubr.bf16.mxu0 0
        %3222 = vmatmul.mubr.bf16.gmra.mxu0 %v3053
        %v3223 = vpop.f32.mrf.mxu0
        %v3224 = vadd.f32 0.0, %v3223
        %v3225 = vpop.f32.mrf.mxu0
        %v3226 = vpop.f32.mrf.mxu0
        %v3227 = vadd.f32 0.0, %v3226
        %v3228 = vpop.f32.mrf.mxu0
        %3229 = vmatprep.mubr.bf16.mxu0 0
        %3230 = vmatmul.mubr.bf16.gmra.mxu0 %v3054
        %v3231 = vpop.f32.mrf.mxu0
        %v3232 = vadd.f32 0.0, %v3231
        %v3233 = vpop.f32.mrf.mxu0
        %v3234 = vpop.f32.mrf.mxu0
        %v3235 = vadd.f32 0.0, %v3234
        %v3236 = vpop.f32.mrf.mxu0
        %3237 = vmatprep.mubr.bf16.mxu0 0
        %3238 = vmatmul.mubr.bf16.gmra.mxu0 %v3055
        %v3239 = vpop.f32.mrf.mxu0
        %v3240 = vadd.f32 0.0, %v3239
        %v3241 = vpop.f32.mrf.mxu0
        %v3242 = vpop.f32.mrf.mxu0
        %v3243 = vadd.f32 0.0, %v3242
        %v3244 = vpop.f32.mrf.mxu0
        %3245 = vmatprep.mubr.bf16.mxu0 0
        %3246 = vmatmul.mubr.bf16.gmra.mxu0 %v3056
        %v3247 = vpop.f32.mrf.mxu0
        %v3248 = vadd.f32 0.0, %v3247
        %v3249 = vpop.f32.mrf.mxu0
        %v3250 = vpop.f32.mrf.mxu0
        %v3251 = vadd.f32 0.0, %v3250
        %v3252 = vpop.f32.mrf.mxu0
        %3253 = vmatprep.mubr.bf16.mxu0 0
        %3254 = vmatmul.mubr.bf16.gmra.mxu0 %v3057
        %v3255 = vpop.f32.mrf.mxu0
        %v3256 = vadd.f32 0.0, %v3255
        %v3257 = vpop.f32.mrf.mxu0
        %v3258 = vpop.f32.mrf.mxu0
        %v3259 = vadd.f32 0.0, %v3258
        %v3260 = vpop.f32.mrf.mxu0
        %3261 = vmatprep.mubr.bf16.mxu0 0
        %3262 = vmatmul.mubr.bf16.gmra.mxu0 %v3058
        %v3263 = vpop.f32.mrf.mxu0
        %v3264 = vadd.f32 0.0, %v3263
        %v3265 = vpop.f32.mrf.mxu0
        %v3266 = vpop.f32.mrf.mxu0
        %v3267 = vadd.f32 0.0, %v3266
        %v3268 = vpop.f32.mrf.mxu0
        %3269 = vmatprep.mubr.bf16.mxu0 0
        %3270 = vmatmul.mubr.bf16.gmra.mxu0 %v3059
        %v3271 = vpop.f32.mrf.mxu0
        %v3272 = vadd.f32 0.0, %v3271
        %v3273 = vpop.f32.mrf.mxu0
        %v3274 = vpop.f32.mrf.mxu0
        %v3275 = vadd.f32 0.0, %v3274
        %v3276 = vpop.f32.mrf.mxu0
        %3277 = vmatprep.mubr.bf16.mxu0 0
        %3278 = vmatmul.mubr.bf16.gmra.mxu0 %v3060
        %v3279 = vpop.f32.mrf.mxu0
        %v3280 = vadd.f32 0.0, %v3279
        %v3281 = vpop.f32.mrf.mxu0
        %v3282 = vpop.f32.mrf.mxu0
        %v3283 = vadd.f32 0.0, %v3282
        %v3284 = vpop.f32.mrf.mxu0
        %3285 = vdwg.mxu0
        %v3286 = vadd.f32 %v2964, %v3160
        %v3287 = vadd.f32 %v2965, %v3163
        %v3288 = vadd.f32 %v2966, %v3168
        %v3289 = vadd.f32 %v2967, %v3171
        %v3290 = vadd.f32 %v2968, %v3176
        %v3291 = vadd.f32 %v2969, %v3179
        %v3292 = vadd.f32 %v2970, %v3184
        %v3293 = vadd.f32 %v2971, %v3187
        %v3294 = vadd.f32 %v2972, %v3192
        %v3295 = vadd.f32 %v2973, %v3195
        %v3296 = vadd.f32 %v2974, %v3200
        %v3297 = vadd.f32 %v2975, %v3203
        %v3298 = vadd.f32 %v2976, %v3208
        %v3299 = vadd.f32 %v2977, %v3211
        %v3300 = vadd.f32 %v2978, %v3216
        %v3301 = vadd.f32 %v2979, %v3219
        %v3302 = vadd.f32 %v2980, %v3224
        %v3303 = vadd.f32 %v2981, %v3227
        %v3304 = vadd.f32 %v2982, %v3232
        %v3305 = vadd.f32 %v2983, %v3235
        %v3306 = vadd.f32 %v2984, %v3240
        %v3307 = vadd.f32 %v2985, %v3243
        %v3308 = vadd.f32 %v2986, %v3248
        %v3309 = vadd.f32 %v2987, %v3251
        %v3310 = vadd.f32 %v2988, %v3256
        %v3311 = vadd.f32 %v2989, %v3259
        %v3312 = vadd.f32 %v2990, %v3264
        %v3313 = vadd.f32 %v2991, %v3267
        %v3314 = vadd.f32 %v2992, %v3272
        %v3315 = vadd.f32 %v2993, %v3275
        %v3316 = vadd.f32 %v2994, %v3280
        %v3317 = vadd.f32 %v2995, %v3283
        %3318 = vst [vmem:[%s167] sm:$0xff] %v3286
        %3319 = vst [vmem:[%s167 + $0x8] sm:$0xff] %v3287
        %3320 = vst [vmem:[%s167 + $0x10] sm:$0xff] %v3288
        %3321 = vst [vmem:[%s167 + $0x18] sm:$0xff] %v3289
        %3322 = vst [vmem:[%s167 + $0x20] sm:$0xff] %v3290
        %3323 = vst [vmem:[%s167 + $0x28] sm:$0xff] %v3291
        %3324 = vst [vmem:[%s167 + $0x30] sm:$0xff] %v3292
        %3325 = vst [vmem:[%s167 + $0x38] sm:$0xff] %v3293
        %3326 = vst [vmem:[%s167 + $0x40] sm:$0xff] %v3294
        %3327 = vst [vmem:[%s167 + $0x48] sm:$0xff] %v3295
        %3328 = vst [vmem:[%s167 + $0x50] sm:$0xff] %v3296
        %3329 = vst [vmem:[%s167 + $0x58] sm:$0xff] %v3297
        %3330 = vst [vmem:[%s167 + $0x60] sm:$0xff] %v3298
        %3331 = vst [vmem:[%s167 + $0x68] sm:$0xff] %v3299
        %3332 = vst [vmem:[%s167 + $0x70] sm:$0xff] %v3300
        %3333 = vst [vmem:[%s167 + $0x78] sm:$0xff] %v3301
        %3334 = vst [vmem:[%s167 + $0x80] sm:$0xff] %v3302
        %3335 = vst [vmem:[%s167 + $0x88] sm:$0xff] %v3303
        %3336 = vst [vmem:[%s167 + $0x90] sm:$0xff] %v3304
        %3337 = vst [vmem:[%s167 + $0x98] sm:$0xff] %v3305
        %3338 = vst [vmem:[%s167 + $0xa0] sm:$0xff] %v3306
        %3339 = vst [vmem:[%s167 + $0xa8] sm:$0xff] %v3307
        %3340 = vst [vmem:[%s167 + $0xb0] sm:$0xff] %v3308
        %3341 = vst [vmem:[%s167 + $0xb8] sm:$0xff] %v3309
        %3342 = vst [vmem:[%s167 + $0xc0] sm:$0xff] %v3310
        %3343 = vst [vmem:[%s167 + $0xc8] sm:$0xff] %v3311
        %3344 = vst [vmem:[%s167 + $0xd0] sm:$0xff] %v3312
        %3345 = vst [vmem:[%s167 + $0xd8] sm:$0xff] %v3313
        %3346 = vst [vmem:[%s167 + $0xe0] sm:$0xff] %v3314
        %3347 = vst [vmem:[%s167 + $0xe8] sm:$0xff] %v3315
        %3348 = vst [vmem:[%s167 + $0xf0] sm:$0xff] %v3316
        %3349 = vst [vmem:[%s167 + $0xf8] sm:$0xff] %v3317
        %v3350 = vld [vmem:[%s2081] sm:$0xe]
        %v3351 = vld [vmem:[%s2081 + $0x4] sm:$0xf]
        %v3352 = vld [vmem:[%s2081 + $0x8] sm:$0x1]
        %v3353 = vld [vmem:[%s2081 + $0xc] sm:$0xe]
        %v3354 = vld [vmem:[%s2081 + $0x10] sm:$0xf]
        %v3355 = vld [vmem:[%s2081 + $0x14] sm:$0x1]
        %v3356 = vld [vmem:[%s2081 + $0x18] sm:$0xe]
        %v3357 = vld [vmem:[%s2081 + $0x1c] sm:$0xf]
        %v3358 = vld [vmem:[%s2081 + $0x20] sm:$0x1]
        %v3359 = vld [vmem:[%s2081 + $0x24] sm:$0xe]
        %v3360 = vld [vmem:[%s2081 + $0x28] sm:$0xf]
        %v3361 = vld [vmem:[%s2081 + $0x2c] sm:$0x1]
        %v3362 = vld [vmem:[%s2081 + $0x30] sm:$0xe]
        %v3363 = vld [vmem:[%s2081 + $0x34] sm:$0xf]
        %v3364 = vld [vmem:[%s2081 + $0x38] sm:$0x1]
        %v3365 = vld [vmem:[%s2081 + $0x3c] sm:$0xe]
        %v3366 = vld [vmem:[%s2081 + $0x40] sm:$0xf]
        %v3367 = vld [vmem:[%s2081 + $0x44] sm:$0x1]
        %v3368 = vld [vmem:[%s2081 + $0x48] sm:$0xe]
        %v3369 = vld [vmem:[%s2081 + $0x4c] sm:$0xf]
        %v3370 = vld [vmem:[%s2081 + $0x50] sm:$0x1]
        %v3371 = vld [vmem:[%s2081 + $0x54] sm:$0xe]
        %v3372 = vld [vmem:[%s2081 + $0x58] sm:$0xf]
        %v3373 = vld [vmem:[%s2081 + $0x5c] sm:$0x1]
        %v3374 = vld [vmem:[%s2081 + $0x60] sm:$0xe]
        %v3375 = vld [vmem:[%s2081 + $0x64] sm:$0xf]
        %v3376 = vld [vmem:[%s2081 + $0x68] sm:$0x1]
        %v3377 = vld [vmem:[%s2081 + $0x6c] sm:$0xe]
        %v3378 = vld [vmem:[%s2081 + $0x70] sm:$0xf]
        %v3379 = vld [vmem:[%s2081 + $0x74] sm:$0x1]
        %v3380 = vld [vmem:[%s2081 + $0x78] sm:$0xe]
        %v3381 = vld [vmem:[%s2081 + $0x7c] sm:$0xf]
        %v3382 = vld [vmem:[%s2081 + $0x80] sm:$0x1]
        %v3383 = vld [vmem:[%s2081 + $0x84] sm:$0xe]
        %v3384 = vld [vmem:[%s2081 + $0x88] sm:$0xf]
        %v3385 = vld [vmem:[%s2081 + $0x8c] sm:$0x1]
        %v3386 = vld [vmem:[%s2081 + $0x90] sm:$0xe]
        %v3387 = vld [vmem:[%s2081 + $0x94] sm:$0xf]
        %v3388 = vld [vmem:[%s2081 + $0x98] sm:$0x1]
        %v3389 = vld [vmem:[%s2081 + $0x9c] sm:$0xe]
        %v3390 = vld [vmem:[%s2081 + $0xa0] sm:$0xf]
        %v3391 = vld [vmem:[%s2081 + $0xa4] sm:$0x1]
        %v3392 = vld [vmem:[%s2081 + $0xa8] sm:$0xe]
        %v3393 = vld [vmem:[%s2081 + $0xac] sm:$0xf]
        %v3394 = vld [vmem:[%s2081 + $0xb0] sm:$0x1]
        %v3395 = vld [vmem:[%s2081 + $0xb4] sm:$0xe]
        %v3396 = vld [vmem:[%s2081 + $0xb8] sm:$0xf]
        %v3397 = vld [vmem:[%s2081 + $0xbc] sm:$0x1]
        %v3446 = vrot.slane %v3350, 5
        %v3447 = vrot.slane %v3446, 4
        %v3448 = vrot.slane %v3351, 5
        %v3449 = vsel %vm1582, %v3447, %v3448
        %v3450 = vrot.slane %v3448, 4
        %v3451 = vrot.slane %v3352, 5
        %v3452 = vsel %vm1582, %v3450, %v3451
        %v3453 = vrot.slane %v3353, 5
        %v3454 = vrot.slane %v3453, 4
        %v3455 = vrot.slane %v3354, 5
        %v3456 = vsel %vm1582, %v3454, %v3455
        %v3457 = vrot.slane %v3455, 4
        %v3458 = vrot.slane %v3355, 5
        %v3459 = vsel %vm1582, %v3457, %v3458
        %v3460 = vrot.slane %v3356, 5
        %v3461 = vrot.slane %v3460, 4
        %v3462 = vrot.slane %v3357, 5
        %v3463 = vsel %vm1582, %v3461, %v3462
        %v3464 = vrot.slane %v3462, 4
        %v3465 = vrot.slane %v3358, 5
        %v3466 = vsel %vm1582, %v3464, %v3465
        %v3467 = vrot.slane %v3359, 5
        %v3468 = vrot.slane %v3467, 4
        %v3469 = vrot.slane %v3360, 5
        %v3470 = vsel %vm1582, %v3468, %v3469
        %v3471 = vrot.slane %v3469, 4
        %v3472 = vrot.slane %v3361, 5
        %v3473 = vsel %vm1582, %v3471, %v3472
        %v3474 = vrot.slane %v3362, 5
        %v3475 = vrot.slane %v3474, 4
        %v3476 = vrot.slane %v3363, 5
        %v3477 = vsel %vm1582, %v3475, %v3476
        %v3478 = vrot.slane %v3476, 4
        %v3479 = vrot.slane %v3364, 5
        %v3480 = vsel %vm1582, %v3478, %v3479
        %v3481 = vrot.slane %v3365, 5
        %v3482 = vrot.slane %v3481, 4
        %v3483 = vrot.slane %v3366, 5
        %v3484 = vsel %vm1582, %v3482, %v3483
        %v3485 = vrot.slane %v3483, 4
        %v3486 = vrot.slane %v3367, 5
        %v3487 = vsel %vm1582, %v3485, %v3486
        %v3488 = vrot.slane %v3368, 5
        %v3489 = vrot.slane %v3488, 4
        %v3490 = vrot.slane %v3369, 5
        %v3491 = vsel %vm1582, %v3489, %v3490
        %v3492 = vrot.slane %v3490, 4
        %v3493 = vrot.slane %v3370, 5
        %v3494 = vsel %vm1582, %v3492, %v3493
        %v3495 = vrot.slane %v3371, 5
        %v3496 = vrot.slane %v3495, 4
        %v3497 = vrot.slane %v3372, 5
        %v3498 = vsel %vm1582, %v3496, %v3497
        %v3499 = vrot.slane %v3497, 4
        %v3500 = vrot.slane %v3373, 5
        %v3501 = vsel %vm1582, %v3499, %v3500
        %v3502 = vrot.slane %v3374, 5
        %v3503 = vrot.slane %v3502, 4
        %v3504 = vrot.slane %v3375, 5
        %v3505 = vsel %vm1582, %v3503, %v3504
        %v3506 = vrot.slane %v3504, 4
        %v3507 = vrot.slane %v3376, 5
        %v3508 = vsel %vm1582, %v3506, %v3507
        %v3509 = vrot.slane %v3377, 5
        %v3510 = vrot.slane %v3509, 4
        %v3511 = vrot.slane %v3378, 5
        %v3512 = vsel %vm1582, %v3510, %v3511
        %v3513 = vrot.slane %v3511, 4
        %v3514 = vrot.slane %v3379, 5
        %v3515 = vsel %vm1582, %v3513, %v3514
        %v3516 = vrot.slane %v3380, 5
        %v3517 = vrot.slane %v3516, 4
        %v3518 = vrot.slane %v3381, 5
        %v3519 = vsel %vm1582, %v3517, %v3518
        %v3520 = vrot.slane %v3518, 4
        %v3521 = vrot.slane %v3382, 5
        %v3522 = vsel %vm1582, %v3520, %v3521
        %v3523 = vrot.slane %v3383, 5
        %v3524 = vrot.slane %v3523, 4
        %v3525 = vrot.slane %v3384, 5
        %v3526 = vsel %vm1582, %v3524, %v3525
        %v3527 = vrot.slane %v3525, 4
        %v3528 = vrot.slane %v3385, 5
        %v3529 = vsel %vm1582, %v3527, %v3528
        %v3530 = vrot.slane %v3386, 5
        %v3531 = vrot.slane %v3530, 4
        %v3532 = vrot.slane %v3387, 5
        %v3533 = vsel %vm1582, %v3531, %v3532
        %v3534 = vrot.slane %v3532, 4
        %v3535 = vrot.slane %v3388, 5
        %v3536 = vsel %vm1582, %v3534, %v3535
        %v3537 = vrot.slane %v3389, 5
        %v3538 = vrot.slane %v3537, 4
        %v3539 = vrot.slane %v3390, 5
        %v3540 = vsel %vm1582, %v3538, %v3539
        %v3541 = vrot.slane %v3539, 4
        %v3542 = vrot.slane %v3391, 5
        %v3543 = vsel %vm1582, %v3541, %v3542
        %v3544 = vrot.slane %v3392, 5
        %v3545 = vrot.slane %v3544, 4
        %v3546 = vrot.slane %v3393, 5
        %v3547 = vsel %vm1582, %v3545, %v3546
        %v3548 = vrot.slane %v3546, 4
        %v3549 = vrot.slane %v3394, 5
        %v3550 = vsel %vm1582, %v3548, %v3549
        %v3551 = vrot.slane %v3395, 5
        %v3552 = vrot.slane %v3551, 4
        %v3553 = vrot.slane %v3396, 5
        %v3554 = vsel %vm1582, %v3552, %v3553
        %v3555 = vrot.slane %v3553, 4
        %v3556 = vrot.slane %v3397, 5
        %v3557 = vsel %vm1582, %v3555, %v3556
        %v3558 = vld [vmem:[%s167] sm:$0xff]
        %v3559 = vld [vmem:[%s167 + $0x8] sm:$0xff]
        %v3560 = vld [vmem:[%s167 + $0x10] sm:$0xff]
        %v3561 = vld [vmem:[%s167 + $0x18] sm:$0xff]
        %v3562 = vld [vmem:[%s167 + $0x20] sm:$0xff]
        %v3563 = vld [vmem:[%s167 + $0x28] sm:$0xff]
        %v3564 = vld [vmem:[%s167 + $0x30] sm:$0xff]
        %v3565 = vld [vmem:[%s167 + $0x38] sm:$0xff]
        %v3566 = vld [vmem:[%s167 + $0x40] sm:$0xff]
        %v3567 = vld [vmem:[%s167 + $0x48] sm:$0xff]
        %v3568 = vld [vmem:[%s167 + $0x50] sm:$0xff]
        %v3569 = vld [vmem:[%s167 + $0x58] sm:$0xff]
        %v3570 = vld [vmem:[%s167 + $0x60] sm:$0xff]
        %v3571 = vld [vmem:[%s167 + $0x68] sm:$0xff]
        %v3572 = vld [vmem:[%s167 + $0x70] sm:$0xff]
        %v3573 = vld [vmem:[%s167 + $0x78] sm:$0xff]
        %v3574 = vld [vmem:[%s167 + $0x80] sm:$0xff]
        %v3575 = vld [vmem:[%s167 + $0x88] sm:$0xff]
        %v3576 = vld [vmem:[%s167 + $0x90] sm:$0xff]
        %v3577 = vld [vmem:[%s167 + $0x98] sm:$0xff]
        %v3578 = vld [vmem:[%s167 + $0xa0] sm:$0xff]
        %v3579 = vld [vmem:[%s167 + $0xa8] sm:$0xff]
        %v3580 = vld [vmem:[%s167 + $0xb0] sm:$0xff]
        %v3581 = vld [vmem:[%s167 + $0xb8] sm:$0xff]
        %v3582 = vld [vmem:[%s167 + $0xc0] sm:$0xff]
        %v3583 = vld [vmem:[%s167 + $0xc8] sm:$0xff]
        %v3584 = vld [vmem:[%s167 + $0xd0] sm:$0xff]
        %v3585 = vld [vmem:[%s167 + $0xd8] sm:$0xff]
        %v3586 = vld [vmem:[%s167 + $0xe0] sm:$0xff]
        %v3587 = vld [vmem:[%s167 + $0xe8] sm:$0xff]
        %v3588 = vld [vmem:[%s167 + $0xf0] sm:$0xff]
        %v3589 = vld [vmem:[%s167 + $0xf8] sm:$0xff]
        %s3590 = scalar_lea.vmem %s1, 320
        %v3591 = vld [vmem:[%s3590] sm:$0xf]
        %v3592 = vld [vmem:[%s3590 + $0x4] sm:$0xf]
        %v3593 = vld [vmem:[%s3590 + $0x8] sm:$0xf]
        %v3594 = vld [vmem:[%s3590 + $0xc] sm:$0xf]
        %v3595 = vld [vmem:[%s3590 + $0x10] sm:$0xf]
        %v3596 = vld [vmem:[%s3590 + $0x14] sm:$0xf]
        %v3597 = vld [vmem:[%s3590 + $0x18] sm:$0xf]
        %v3598 = vld [vmem:[%s3590 + $0x1c] sm:$0xf]
        %v3599 = vld [vmem:[%s3590 + $0x20] sm:$0xf]
        %v3600 = vld [vmem:[%s3590 + $0x24] sm:$0xf]
        %v3601 = vld [vmem:[%s3590 + $0x28] sm:$0xf]
        %v3602 = vld [vmem:[%s3590 + $0x2c] sm:$0xf]
        %v3603 = vld [vmem:[%s3590 + $0x30] sm:$0xf]
        %v3604 = vld [vmem:[%s3590 + $0x34] sm:$0xf]
        %v3605 = vld [vmem:[%s3590 + $0x38] sm:$0xf]
        %v3606 = vld [vmem:[%s3590 + $0x3c] sm:$0xf]
        %v3607 = vunpack.c.l.b16 %v3449
        %v3608 = vunpack.c.l.b16 %v3452
        %v3609 = vunpack.c.l.b16 %v3456
        %v3610 = vunpack.c.l.b16 %v3459
        %v3611 = vunpack.c.l.b16 %v3463
        %v3612 = vunpack.c.l.b16 %v3466
        %v3613 = vunpack.c.l.b16 %v3470
        %v3614 = vunpack.c.l.b16 %v3473
        %v3615 = vunpack.c.l.b16 %v3477
        %v3616 = vunpack.c.l.b16 %v3480
        %v3617 = vunpack.c.l.b16 %v3484
        %v3618 = vunpack.c.l.b16 %v3487
        %v3619 = vunpack.c.l.b16 %v3491
        %v3620 = vunpack.c.l.b16 %v3494
        %v3621 = vunpack.c.l.b16 %v3498
        %v3622 = vunpack.c.l.b16 %v3501
        %v3623 = vunpack.c.l.b16 %v3505
        %v3624 = vunpack.c.l.b16 %v3508
        %v3625 = vunpack.c.l.b16 %v3512
        %v3626 = vunpack.c.l.b16 %v3515
        %v3627 = vunpack.c.l.b16 %v3519
        %v3628 = vunpack.c.l.b16 %v3522
        %v3629 = vunpack.c.l.b16 %v3526
        %v3630 = vunpack.c.l.b16 %v3529
        %v3631 = vunpack.c.l.b16 %v3533
        %v3632 = vunpack.c.l.b16 %v3536
        %v3633 = vunpack.c.l.b16 %v3540
        %v3634 = vunpack.c.l.b16 %v3543
        %v3635 = vunpack.c.l.b16 %v3547
        %v3636 = vunpack.c.l.b16 %v3550
        %v3637 = vunpack.c.l.b16 %v3554
        %v3638 = vunpack.c.l.b16 %v3557
        %v3639 = vpack.c.b16 %v3608, %v3607
        %v3640 = vpack.c.b16 %v3610, %v3609
        %v3641 = vpack.c.b16 %v3612, %v3611
        %v3642 = vpack.c.b16 %v3614, %v3613
        %v3643 = vpack.c.b16 %v3616, %v3615
        %v3644 = vpack.c.b16 %v3618, %v3617
        %v3645 = vpack.c.b16 %v3620, %v3619
        %v3646 = vpack.c.b16 %v3622, %v3621
        %v3647 = vpack.c.b16 %v3624, %v3623
        %v3648 = vpack.c.b16 %v3626, %v3625
        %v3649 = vpack.c.b16 %v3628, %v3627
        %v3650 = vpack.c.b16 %v3630, %v3629
        %v3651 = vpack.c.b16 %v3632, %v3631
        %v3652 = vpack.c.b16 %v3634, %v3633
        %v3653 = vpack.c.b16 %v3636, %v3635
        %v3654 = vpack.c.b16 %v3638, %v3637
        %v3687 = vunpack.c.l.b16 %v3591
        %v3688 = vunpack.c.l.b16 %v3592
        %v3689 = vunpack.c.l.b16 %v3593
        %v3690 = vunpack.c.l.b16 %v3594
        %v3691 = vunpack.c.l.b16 %v3595
        %v3692 = vunpack.c.l.b16 %v3596
        %v3693 = vunpack.c.l.b16 %v3597
        %v3694 = vunpack.c.l.b16 %v3598
        %v3695 = vunpack.c.l.b16 %v3599
        %v3696 = vunpack.c.l.b16 %v3600
        %v3697 = vunpack.c.l.b16 %v3601
        %v3698 = vunpack.c.l.b16 %v3602
        %v3699 = vunpack.c.l.b16 %v3603
        %v3700 = vunpack.c.l.b16 %v3604
        %v3701 = vunpack.c.l.b16 %v3605
        %v3702 = vunpack.c.l.b16 %v3606
        %v3703 = vpack.c.b16 %v3688, %v3687
        %v3704 = vpack.c.b16 %v3690, %v3689
        %v3705 = vpack.c.b16 %v3692, %v3691
        %v3706 = vpack.c.b16 %v3694, %v3693
        %v3707 = vpack.c.b16 %v3696, %v3695
        %v3708 = vpack.c.b16 %v3698, %v3697
        %v3709 = vpack.c.b16 %v3700, %v3699
        %v3710 = vpack.c.b16 %v3702, %v3701
        %3719 = vmatprep.subr.bf16.mxu0 0
        %3720 = vmatpush1.bf16.msra.mxu0 %v3710
        %3721 = vmatprep.subr.bf16.mxu0 0
        %3722 = vmatpush1.bf16.msra.mxu0 %v3709
        %3723 = vmatprep.subr.bf16.mxu0 0
        %3724 = vmatpush1.bf16.msra.mxu0 %v3708
        %3725 = vmatprep.subr.bf16.mxu0 0
        %3726 = vmatpush1.bf16.msra.mxu0 %v3707
        %3727 = vmatprep.subr.bf16.mxu0 0
        %3728 = vmatpush1.bf16.msra.mxu0 %v3706
        %3729 = vmatprep.subr.bf16.mxu0 0
        %3730 = vmatpush1.bf16.msra.mxu0 %v3705
        %3731 = vmatprep.subr.bf16.mxu0 0
        %3732 = vmatpush1.bf16.msra.mxu0 %v3704
        %3733 = vmatprep.subr.bf16.mxu0 0
        %3734 = vmatpush1.bf16.msra.mxu0 %v3703
        %3735 = vmatprep.subr.bf16.mxu0 0
        %3736 = vmatpush2.bf16.msra.mxu0 0
        %3737 = vmatprep.subr.bf16.mxu0 0
        %3738 = vmatpush2.bf16.msra.mxu0 0
        %3739 = vmatprep.subr.bf16.mxu0 0
        %3740 = vmatpush2.bf16.msra.mxu0 0
        %3741 = vmatprep.subr.bf16.mxu0 0
        %3742 = vmatpush2.bf16.msra.mxu0 0
        %3743 = vmatprep.subr.bf16.mxu0 0
        %3744 = vmatpush2.bf16.msra.mxu0 0
        %3745 = vmatprep.subr.bf16.mxu0 0
        %3746 = vmatpush2.bf16.msra.mxu0 0
        %3747 = vmatprep.subr.bf16.mxu0 0
        %3748 = vmatpush2.bf16.msra.mxu0 0
        %3749 = vmatprep.subr.bf16.mxu0 0
        %3750 = vmatpush2.bf16.msra.mxu0 0
        %3751 = vmatprep.mubr.bf16.mxu0 0
        %3752 = vmatmul.mubr.bf16.gmra.mxu0 %v3639
        %v3753 = vpop.f32.mrf.mxu0
        %v3754 = vadd.f32 0.0, %v3753
        %v3755 = vpop.f32.mrf.mxu0
        %v3756 = vpop.f32.mrf.mxu0
        %v3757 = vadd.f32 0.0, %v3756
        %v3758 = vpop.f32.mrf.mxu0
        %3759 = vmatprep.mubr.bf16.mxu0 0
        %3760 = vmatmul.mubr.bf16.gmra.mxu0 %v3640
        %v3761 = vpop.f32.mrf.mxu0
        %v3762 = vadd.f32 0.0, %v3761
        %v3763 = vpop.f32.mrf.mxu0
        %v3764 = vpop.f32.mrf.mxu0
        %v3765 = vadd.f32 0.0, %v3764
        %v3766 = vpop.f32.mrf.mxu0
        %3767 = vmatprep.mubr.bf16.mxu0 0
        %3768 = vmatmul.mubr.bf16.gmra.mxu0 %v3641
        %v3769 = vpop.f32.mrf.mxu0
        %v3770 = vadd.f32 0.0, %v3769
        %v3771 = vpop.f32.mrf.mxu0
        %v3772 = vpop.f32.mrf.mxu0
        %v3773 = vadd.f32 0.0, %v3772
        %v3774 = vpop.f32.mrf.mxu0
        %3775 = vmatprep.mubr.bf16.mxu0 0
        %3776 = vmatmul.mubr.bf16.gmra.mxu0 %v3642
        %v3777 = vpop.f32.mrf.mxu0
        %v3778 = vadd.f32 0.0, %v3777
        %v3779 = vpop.f32.mrf.mxu0
        %v3780 = vpop.f32.mrf.mxu0
        %v3781 = vadd.f32 0.0, %v3780
        %v3782 = vpop.f32.mrf.mxu0
        %3783 = vmatprep.mubr.bf16.mxu0 0
        %3784 = vmatmul.mubr.bf16.gmra.mxu0 %v3643
        %v3785 = vpop.f32.mrf.mxu0
        %v3786 = vadd.f32 0.0, %v3785
        %v3787 = vpop.f32.mrf.mxu0
        %v3788 = vpop.f32.mrf.mxu0
        %v3789 = vadd.f32 0.0, %v3788
        %v3790 = vpop.f32.mrf.mxu0
        %3791 = vmatprep.mubr.bf16.mxu0 0
        %3792 = vmatmul.mubr.bf16.gmra.mxu0 %v3644
        %v3793 = vpop.f32.mrf.mxu0
        %v3794 = vadd.f32 0.0, %v3793
        %v3795 = vpop.f32.mrf.mxu0
        %v3796 = vpop.f32.mrf.mxu0
        %v3797 = vadd.f32 0.0, %v3796
        %v3798 = vpop.f32.mrf.mxu0
        %3799 = vmatprep.mubr.bf16.mxu0 0
        %3800 = vmatmul.mubr.bf16.gmra.mxu0 %v3645
        %v3801 = vpop.f32.mrf.mxu0
        %v3802 = vadd.f32 0.0, %v3801
        %v3803 = vpop.f32.mrf.mxu0
        %v3804 = vpop.f32.mrf.mxu0
        %v3805 = vadd.f32 0.0, %v3804
        %v3806 = vpop.f32.mrf.mxu0
        %3807 = vmatprep.mubr.bf16.mxu0 0
        %3808 = vmatmul.mubr.bf16.gmra.mxu0 %v3646
        %v3809 = vpop.f32.mrf.mxu0
        %v3810 = vadd.f32 0.0, %v3809
        %v3811 = vpop.f32.mrf.mxu0
        %v3812 = vpop.f32.mrf.mxu0
        %v3813 = vadd.f32 0.0, %v3812
        %v3814 = vpop.f32.mrf.mxu0
        %3815 = vmatprep.mubr.bf16.mxu0 0
        %3816 = vmatmul.mubr.bf16.gmra.mxu0 %v3647
        %v3817 = vpop.f32.mrf.mxu0
        %v3818 = vadd.f32 0.0, %v3817
        %v3819 = vpop.f32.mrf.mxu0
        %v3820 = vpop.f32.mrf.mxu0
        %v3821 = vadd.f32 0.0, %v3820
        %v3822 = vpop.f32.mrf.mxu0
        %3823 = vmatprep.mubr.bf16.mxu0 0
        %3824 = vmatmul.mubr.bf16.gmra.mxu0 %v3648
        %v3825 = vpop.f32.mrf.mxu0
        %v3826 = vadd.f32 0.0, %v3825
        %v3827 = vpop.f32.mrf.mxu0
        %v3828 = vpop.f32.mrf.mxu0
        %v3829 = vadd.f32 0.0, %v3828
        %v3830 = vpop.f32.mrf.mxu0
        %3831 = vmatprep.mubr.bf16.mxu0 0
        %3832 = vmatmul.mubr.bf16.gmra.mxu0 %v3649
        %v3833 = vpop.f32.mrf.mxu0
        %v3834 = vadd.f32 0.0, %v3833
        %v3835 = vpop.f32.mrf.mxu0
        %v3836 = vpop.f32.mrf.mxu0
        %v3837 = vadd.f32 0.0, %v3836
        %v3838 = vpop.f32.mrf.mxu0
        %3839 = vmatprep.mubr.bf16.mxu0 0
        %3840 = vmatmul.mubr.bf16.gmra.mxu0 %v3650
        %v3841 = vpop.f32.mrf.mxu0
        %v3842 = vadd.f32 0.0, %v3841
        %v3843 = vpop.f32.mrf.mxu0
        %v3844 = vpop.f32.mrf.mxu0
        %v3845 = vadd.f32 0.0, %v3844
        %v3846 = vpop.f32.mrf.mxu0
        %3847 = vmatprep.mubr.bf16.mxu0 0
        %3848 = vmatmul.mubr.bf16.gmra.mxu0 %v3651
        %v3849 = vpop.f32.mrf.mxu0
        %v3850 = vadd.f32 0.0, %v3849
        %v3851 = vpop.f32.mrf.mxu0
        %v3852 = vpop.f32.mrf.mxu0
        %v3853 = vadd.f32 0.0, %v3852
        %v3854 = vpop.f32.mrf.mxu0
        %3855 = vmatprep.mubr.bf16.mxu0 0
        %3856 = vmatmul.mubr.bf16.gmra.mxu0 %v3652
        %v3857 = vpop.f32.mrf.mxu0
        %v3858 = vadd.f32 0.0, %v3857
        %v3859 = vpop.f32.mrf.mxu0
        %v3860 = vpop.f32.mrf.mxu0
        %v3861 = vadd.f32 0.0, %v3860
        %v3862 = vpop.f32.mrf.mxu0
        %3863 = vmatprep.mubr.bf16.mxu0 0
        %3864 = vmatmul.mubr.bf16.gmra.mxu0 %v3653
        %v3865 = vpop.f32.mrf.mxu0
        %v3866 = vadd.f32 0.0, %v3865
        %v3867 = vpop.f32.mrf.mxu0
        %v3868 = vpop.f32.mrf.mxu0
        %v3869 = vadd.f32 0.0, %v3868
        %v3870 = vpop.f32.mrf.mxu0
        %3871 = vmatprep.mubr.bf16.mxu0 0
        %3872 = vmatmul.mubr.bf16.gmra.mxu0 %v3654
        %v3873 = vpop.f32.mrf.mxu0
        %v3874 = vadd.f32 0.0, %v3873
        %v3875 = vpop.f32.mrf.mxu0
        %v3876 = vpop.f32.mrf.mxu0
        %v3877 = vadd.f32 0.0, %v3876
        %v3878 = vpop.f32.mrf.mxu0
        %3879 = vdwg.mxu0
        %v3880 = vadd.f32 %v3558, %v3754
        %v3881 = vadd.f32 %v3559, %v3757
        %v3882 = vadd.f32 %v3560, %v3762
        %v3883 = vadd.f32 %v3561, %v3765
        %v3884 = vadd.f32 %v3562, %v3770
        %v3885 = vadd.f32 %v3563, %v3773
        %v3886 = vadd.f32 %v3564, %v3778
        %v3887 = vadd.f32 %v3565, %v3781
        %v3888 = vadd.f32 %v3566, %v3786
        %v3889 = vadd.f32 %v3567, %v3789
        %v3890 = vadd.f32 %v3568, %v3794
        %v3891 = vadd.f32 %v3569, %v3797
        %v3892 = vadd.f32 %v3570, %v3802
        %v3893 = vadd.f32 %v3571, %v3805
        %v3894 = vadd.f32 %v3572, %v3810
        %v3895 = vadd.f32 %v3573, %v3813
        %v3896 = vadd.f32 %v3574, %v3818
        %v3897 = vadd.f32 %v3575, %v3821
        %v3898 = vadd.f32 %v3576, %v3826
        %v3899 = vadd.f32 %v3577, %v3829
        %v3900 = vadd.f32 %v3578, %v3834
        %v3901 = vadd.f32 %v3579, %v3837
        %v3902 = vadd.f32 %v3580, %v3842
        %v3903 = vadd.f32 %v3581, %v3845
        %v3904 = vadd.f32 %v3582, %v3850
        %v3905 = vadd.f32 %v3583, %v3853
        %v3906 = vadd.f32 %v3584, %v3858
        %v3907 = vadd.f32 %v3585, %v3861
        %v3908 = vadd.f32 %v3586, %v3866
        %v3909 = vadd.f32 %v3587, %v3869
        %v3910 = vadd.f32 %v3588, %v3874
        %v3911 = vadd.f32 %v3589, %v3877
        %3912 = vst [vmem:[%s167] sm:$0xff] %v3880
        %3913 = vst [vmem:[%s167 + $0x8] sm:$0xff] %v3881
        %3914 = vst [vmem:[%s167 + $0x10] sm:$0xff] %v3882
        %3915 = vst [vmem:[%s167 + $0x18] sm:$0xff] %v3883
        %3916 = vst [vmem:[%s167 + $0x20] sm:$0xff] %v3884
        %3917 = vst [vmem:[%s167 + $0x28] sm:$0xff] %v3885
        %3918 = vst [vmem:[%s167 + $0x30] sm:$0xff] %v3886
        %3919 = vst [vmem:[%s167 + $0x38] sm:$0xff] %v3887
        %3920 = vst [vmem:[%s167 + $0x40] sm:$0xff] %v3888
        %3921 = vst [vmem:[%s167 + $0x48] sm:$0xff] %v3889
        %3922 = vst [vmem:[%s167 + $0x50] sm:$0xff] %v3890
        %3923 = vst [vmem:[%s167 + $0x58] sm:$0xff] %v3891
        %3924 = vst [vmem:[%s167 + $0x60] sm:$0xff] %v3892
        %3925 = vst [vmem:[%s167 + $0x68] sm:$0xff] %v3893
        %3926 = vst [vmem:[%s167 + $0x70] sm:$0xff] %v3894
        %3927 = vst [vmem:[%s167 + $0x78] sm:$0xff] %v3895
        %3928 = vst [vmem:[%s167 + $0x80] sm:$0xff] %v3896
        %3929 = vst [vmem:[%s167 + $0x88] sm:$0xff] %v3897
        %3930 = vst [vmem:[%s167 + $0x90] sm:$0xff] %v3898
        %3931 = vst [vmem:[%s167 + $0x98] sm:$0xff] %v3899
        %3932 = vst [vmem:[%s167 + $0xa0] sm:$0xff] %v3900
        %3933 = vst [vmem:[%s167 + $0xa8] sm:$0xff] %v3901
        %3934 = vst [vmem:[%s167 + $0xb0] sm:$0xff] %v3902
        %3935 = vst [vmem:[%s167 + $0xb8] sm:$0xff] %v3903
        %3936 = vst [vmem:[%s167 + $0xc0] sm:$0xff] %v3904
        %3937 = vst [vmem:[%s167 + $0xc8] sm:$0xff] %v3905
        %3938 = vst [vmem:[%s167 + $0xd0] sm:$0xff] %v3906
        %3939 = vst [vmem:[%s167 + $0xd8] sm:$0xff] %v3907
        %3940 = vst [vmem:[%s167 + $0xe0] sm:$0xff] %v3908
        %3941 = vst [vmem:[%s167 + $0xe8] sm:$0xff] %v3909
        %3942 = vst [vmem:[%s167 + $0xf0] sm:$0xff] %v3910
        %3943 = vst [vmem:[%s167 + $0xf8] sm:$0xff] %v3911
        %s3944 = scalar_lea.vmem %s179, 24
        %v3945 = vld [vmem:[%s3944] sm:$0xf]
        %v3946 = vld [vmem:[%s3944 + $0x4] sm:$0xf]
        %v3947 = vld [vmem:[%s3944 + $0xc] sm:$0xf]
        %v3948 = vld [vmem:[%s3944 + $0x10] sm:$0xf]
        %v3949 = vld [vmem:[%s3944 + $0x18] sm:$0xf]
        %v3950 = vld [vmem:[%s3944 + $0x1c] sm:$0xf]
        %v3951 = vld [vmem:[%s3944 + $0x24] sm:$0xf]
        %v3952 = vld [vmem:[%s3944 + $0x28] sm:$0xf]
        %v3953 = vld [vmem:[%s3944 + $0x30] sm:$0xf]
        %v3954 = vld [vmem:[%s3944 + $0x34] sm:$0xf]
        %v3955 = vld [vmem:[%s3944 + $0x3c] sm:$0xf]
        %v3956 = vld [vmem:[%s3944 + $0x40] sm:$0xf]
        %v3957 = vld [vmem:[%s3944 + $0x48] sm:$0xf]
        %v3958 = vld [vmem:[%s3944 + $0x4c] sm:$0xf]
        %v3959 = vld [vmem:[%s3944 + $0x54] sm:$0xf]
        %v3960 = vld [vmem:[%s3944 + $0x58] sm:$0xf]
        %v3961 = vld [vmem:[%s3944 + $0x60] sm:$0xf]
        %v3962 = vld [vmem:[%s3944 + $0x64] sm:$0xf]
        %v3963 = vld [vmem:[%s3944 + $0x6c] sm:$0xf]
        %v3964 = vld [vmem:[%s3944 + $0x70] sm:$0xf]
        %v3965 = vld [vmem:[%s3944 + $0x78] sm:$0xf]
        %v3966 = vld [vmem:[%s3944 + $0x7c] sm:$0xf]
        %v3967 = vld [vmem:[%s3944 + $0x84] sm:$0xf]
        %v3968 = vld [vmem:[%s3944 + $0x88] sm:$0xf]
        %v3969 = vld [vmem:[%s3944 + $0x90] sm:$0xf]
        %v3970 = vld [vmem:[%s3944 + $0x94] sm:$0xf]
        %v3971 = vld [vmem:[%s3944 + $0x9c] sm:$0xf]
        %v3972 = vld [vmem:[%s3944 + $0xa0] sm:$0xf]
        %v3973 = vld [vmem:[%s3944 + $0xa8] sm:$0xf]
        %v3974 = vld [vmem:[%s3944 + $0xac] sm:$0xf]
        %v3975 = vld [vmem:[%s3944 + $0xb4] sm:$0xf]
        %v3976 = vld [vmem:[%s3944 + $0xb8] sm:$0xf]
        %v3977 = vld [vmem:[%s167] sm:$0xff]
        %v3978 = vld [vmem:[%s167 + $0x8] sm:$0xff]
        %v3979 = vld [vmem:[%s167 + $0x10] sm:$0xff]
        %v3980 = vld [vmem:[%s167 + $0x18] sm:$0xff]
        %v3981 = vld [vmem:[%s167 + $0x20] sm:$0xff]
        %v3982 = vld [vmem:[%s167 + $0x28] sm:$0xff]
        %v3983 = vld [vmem:[%s167 + $0x30] sm:$0xff]
        %v3984 = vld [vmem:[%s167 + $0x38] sm:$0xff]
        %v3985 = vld [vmem:[%s167 + $0x40] sm:$0xff]
        %v3986 = vld [vmem:[%s167 + $0x48] sm:$0xff]
        %v3987 = vld [vmem:[%s167 + $0x50] sm:$0xff]
        %v3988 = vld [vmem:[%s167 + $0x58] sm:$0xff]
        %v3989 = vld [vmem:[%s167 + $0x60] sm:$0xff]
        %v3990 = vld [vmem:[%s167 + $0x68] sm:$0xff]
        %v3991 = vld [vmem:[%s167 + $0x70] sm:$0xff]
        %v3992 = vld [vmem:[%s167 + $0x78] sm:$0xff]
        %v3993 = vld [vmem:[%s167 + $0x80] sm:$0xff]
        %v3994 = vld [vmem:[%s167 + $0x88] sm:$0xff]
        %v3995 = vld [vmem:[%s167 + $0x90] sm:$0xff]
        %v3996 = vld [vmem:[%s167 + $0x98] sm:$0xff]
        %v3997 = vld [vmem:[%s167 + $0xa0] sm:$0xff]
        %v3998 = vld [vmem:[%s167 + $0xa8] sm:$0xff]
        %v3999 = vld [vmem:[%s167 + $0xb0] sm:$0xff]
        %v4000 = vld [vmem:[%s167 + $0xb8] sm:$0xff]
        %v4001 = vld [vmem:[%s167 + $0xc0] sm:$0xff]
        %v4002 = vld [vmem:[%s167 + $0xc8] sm:$0xff]
        %v4003 = vld [vmem:[%s167 + $0xd0] sm:$0xff]
        %v4004 = vld [vmem:[%s167 + $0xd8] sm:$0xff]
        %v4005 = vld [vmem:[%s167 + $0xe0] sm:$0xff]
        %v4006 = vld [vmem:[%s167 + $0xe8] sm:$0xff]
        %v4007 = vld [vmem:[%s167 + $0xf0] sm:$0xff]
        %v4008 = vld [vmem:[%s167 + $0xf8] sm:$0xff]
        %s4009 = scalar_lea.vmem %s1, 384
        %v4010 = vld [vmem:[%s4009] sm:$0xf]
        %v4011 = vld [vmem:[%s4009 + $0x4] sm:$0xf]
        %v4012 = vld [vmem:[%s4009 + $0x8] sm:$0xf]
        %v4013 = vld [vmem:[%s4009 + $0xc] sm:$0xf]
        %v4014 = vld [vmem:[%s4009 + $0x10] sm:$0xf]
        %v4015 = vld [vmem:[%s4009 + $0x14] sm:$0xf]
        %v4016 = vld [vmem:[%s4009 + $0x18] sm:$0xf]
        %v4017 = vld [vmem:[%s4009 + $0x1c] sm:$0xf]
        %v4018 = vld [vmem:[%s4009 + $0x20] sm:$0xf]
        %v4019 = vld [vmem:[%s4009 + $0x24] sm:$0xf]
        %v4020 = vld [vmem:[%s4009 + $0x28] sm:$0xf]
        %v4021 = vld [vmem:[%s4009 + $0x2c] sm:$0xf]
        %v4022 = vld [vmem:[%s4009 + $0x30] sm:$0xf]
        %v4023 = vld [vmem:[%s4009 + $0x34] sm:$0xf]
        %v4024 = vld [vmem:[%s4009 + $0x38] sm:$0xf]
        %v4025 = vld [vmem:[%s4009 + $0x3c] sm:$0xf]
        %v4058 = vunpack.c.l.b16 %v3945
        %v4059 = vunpack.c.l.b16 %v3946
        %v4060 = vunpack.c.l.b16 %v3947
        %v4061 = vunpack.c.l.b16 %v3948
        %v4062 = vunpack.c.l.b16 %v3949
        %v4063 = vunpack.c.l.b16 %v3950
        %v4064 = vunpack.c.l.b16 %v3951
        %v4065 = vunpack.c.l.b16 %v3952
        %v4066 = vunpack.c.l.b16 %v3953
        %v4067 = vunpack.c.l.b16 %v3954
        %v4068 = vunpack.c.l.b16 %v3955
        %v4069 = vunpack.c.l.b16 %v3956
        %v4070 = vunpack.c.l.b16 %v3957
        %v4071 = vunpack.c.l.b16 %v3958
        %v4072 = vunpack.c.l.b16 %v3959
        %v4073 = vunpack.c.l.b16 %v3960
        %v4074 = vunpack.c.l.b16 %v3961
        %v4075 = vunpack.c.l.b16 %v3962
        %v4076 = vunpack.c.l.b16 %v3963
        %v4077 = vunpack.c.l.b16 %v3964
        %v4078 = vunpack.c.l.b16 %v3965
        %v4079 = vunpack.c.l.b16 %v3966
        %v4080 = vunpack.c.l.b16 %v3967
        %v4081 = vunpack.c.l.b16 %v3968
        %v4082 = vunpack.c.l.b16 %v3969
        %v4083 = vunpack.c.l.b16 %v3970
        %v4084 = vunpack.c.l.b16 %v3971
        %v4085 = vunpack.c.l.b16 %v3972
        %v4086 = vunpack.c.l.b16 %v3973
        %v4087 = vunpack.c.l.b16 %v3974
        %v4088 = vunpack.c.l.b16 %v3975
        %v4089 = vunpack.c.l.b16 %v3976
        %v4090 = vpack.c.b16 %v4059, %v4058
        %v4091 = vpack.c.b16 %v4061, %v4060
        %v4092 = vpack.c.b16 %v4063, %v4062
        %v4093 = vpack.c.b16 %v4065, %v4064
        %v4094 = vpack.c.b16 %v4067, %v4066
        %v4095 = vpack.c.b16 %v4069, %v4068
        %v4096 = vpack.c.b16 %v4071, %v4070
        %v4097 = vpack.c.b16 %v4073, %v4072
        %v4098 = vpack.c.b16 %v4075, %v4074
        %v4099 = vpack.c.b16 %v4077, %v4076
        %v4100 = vpack.c.b16 %v4079, %v4078
        %v4101 = vpack.c.b16 %v4081, %v4080
        %v4102 = vpack.c.b16 %v4083, %v4082
        %v4103 = vpack.c.b16 %v4085, %v4084
        %v4104 = vpack.c.b16 %v4087, %v4086
        %v4105 = vpack.c.b16 %v4089, %v4088
        %v4138 = vunpack.c.l.b16 %v4010
        %v4139 = vunpack.c.l.b16 %v4011
        %v4140 = vunpack.c.l.b16 %v4012
        %v4141 = vunpack.c.l.b16 %v4013
        %v4142 = vunpack.c.l.b16 %v4014
        %v4143 = vunpack.c.l.b16 %v4015
        %v4144 = vunpack.c.l.b16 %v4016
        %v4145 = vunpack.c.l.b16 %v4017
        %v4146 = vunpack.c.l.b16 %v4018
        %v4147 = vunpack.c.l.b16 %v4019
        %v4148 = vunpack.c.l.b16 %v4020
        %v4149 = vunpack.c.l.b16 %v4021
        %v4150 = vunpack.c.l.b16 %v4022
        %v4151 = vunpack.c.l.b16 %v4023
        %v4152 = vunpack.c.l.b16 %v4024
        %v4153 = vunpack.c.l.b16 %v4025
        %v4154 = vpack.c.b16 %v4139, %v4138
        %v4155 = vpack.c.b16 %v4141, %v4140
        %v4156 = vpack.c.b16 %v4143, %v4142
        %v4157 = vpack.c.b16 %v4145, %v4144
        %v4158 = vpack.c.b16 %v4147, %v4146
        %v4159 = vpack.c.b16 %v4149, %v4148
        %v4160 = vpack.c.b16 %v4151, %v4150
        %v4161 = vpack.c.b16 %v4153, %v4152
        %4170 = vmatprep.subr.bf16.mxu0 0
        %4171 = vmatpush1.bf16.msra.mxu0 %v4161
        %4172 = vmatprep.subr.bf16.mxu0 0
        %4173 = vmatpush1.bf16.msra.mxu0 %v4160
        %4174 = vmatprep.subr.bf16.mxu0 0
        %4175 = vmatpush1.bf16.msra.mxu0 %v4159
        %4176 = vmatprep.subr.bf16.mxu0 0
        %4177 = vmatpush1.bf16.msra.mxu0 %v4158
        %4178 = vmatprep.subr.bf16.mxu0 0
        %4179 = vmatpush1.bf16.msra.mxu0 %v4157
        %4180 = vmatprep.subr.bf16.mxu0 0
        %4181 = vmatpush1.bf16.msra.mxu0 %v4156
        %4182 = vmatprep.subr.bf16.mxu0 0
        %4183 = vmatpush1.bf16.msra.mxu0 %v4155
        %4184 = vmatprep.subr.bf16.mxu0 0
        %4185 = vmatpush1.bf16.msra.mxu0 %v4154
        %4186 = vmatprep.subr.bf16.mxu0 0
        %4187 = vmatpush2.bf16.msra.mxu0 0
        %4188 = vmatprep.subr.bf16.mxu0 0
        %4189 = vmatpush2.bf16.msra.mxu0 0
        %4190 = vmatprep.subr.bf16.mxu0 0
        %4191 = vmatpush2.bf16.msra.mxu0 0
        %4192 = vmatprep.subr.bf16.mxu0 0
        %4193 = vmatpush2.bf16.msra.mxu0 0
        %4194 = vmatprep.subr.bf16.mxu0 0
        %4195 = vmatpush2.bf16.msra.mxu0 0
        %4196 = vmatprep.subr.bf16.mxu0 0
        %4197 = vmatpush2.bf16.msra.mxu0 0
        %4198 = vmatprep.subr.bf16.mxu0 0
        %4199 = vmatpush2.bf16.msra.mxu0 0
        %4200 = vmatprep.subr.bf16.mxu0 0
        %4201 = vmatpush2.bf16.msra.mxu0 0
        %4202 = vmatprep.mubr.bf16.mxu0 0
        %4203 = vmatmul.mubr.bf16.gmra.mxu0 %v4090
        %v4204 = vpop.f32.mrf.mxu0
        %v4205 = vadd.f32 0.0, %v4204
        %v4206 = vpop.f32.mrf.mxu0
        %v4207 = vpop.f32.mrf.mxu0
        %v4208 = vadd.f32 0.0, %v4207
        %v4209 = vpop.f32.mrf.mxu0
        %4210 = vmatprep.mubr.bf16.mxu0 0
        %4211 = vmatmul.mubr.bf16.gmra.mxu0 %v4091
        %v4212 = vpop.f32.mrf.mxu0
        %v4213 = vadd.f32 0.0, %v4212
        %v4214 = vpop.f32.mrf.mxu0
        %v4215 = vpop.f32.mrf.mxu0
        %v4216 = vadd.f32 0.0, %v4215
        %v4217 = vpop.f32.mrf.mxu0
        %4218 = vmatprep.mubr.bf16.mxu0 0
        %4219 = vmatmul.mubr.bf16.gmra.mxu0 %v4092
        %v4220 = vpop.f32.mrf.mxu0
        %v4221 = vadd.f32 0.0, %v4220
        %v4222 = vpop.f32.mrf.mxu0
        %v4223 = vpop.f32.mrf.mxu0
        %v4224 = vadd.f32 0.0, %v4223
        %v4225 = vpop.f32.mrf.mxu0
        %4226 = vmatprep.mubr.bf16.mxu0 0
        %4227 = vmatmul.mubr.bf16.gmra.mxu0 %v4093
        %v4228 = vpop.f32.mrf.mxu0
        %v4229 = vadd.f32 0.0, %v4228
        %v4230 = vpop.f32.mrf.mxu0
        %v4231 = vpop.f32.mrf.mxu0
        %v4232 = vadd.f32 0.0, %v4231
        %v4233 = vpop.f32.mrf.mxu0
        %4234 = vmatprep.mubr.bf16.mxu0 0
        %4235 = vmatmul.mubr.bf16.gmra.mxu0 %v4094
        %v4236 = vpop.f32.mrf.mxu0
        %v4237 = vadd.f32 0.0, %v4236
        %v4238 = vpop.f32.mrf.mxu0
        %v4239 = vpop.f32.mrf.mxu0
        %v4240 = vadd.f32 0.0, %v4239
        %v4241 = vpop.f32.mrf.mxu0
        %4242 = vmatprep.mubr.bf16.mxu0 0
        %4243 = vmatmul.mubr.bf16.gmra.mxu0 %v4095
        %v4244 = vpop.f32.mrf.mxu0
        %v4245 = vadd.f32 0.0, %v4244
        %v4246 = vpop.f32.mrf.mxu0
        %v4247 = vpop.f32.mrf.mxu0
        %v4248 = vadd.f32 0.0, %v4247
        %v4249 = vpop.f32.mrf.mxu0
        %4250 = vmatprep.mubr.bf16.mxu0 0
        %4251 = vmatmul.mubr.bf16.gmra.mxu0 %v4096
        %v4252 = vpop.f32.mrf.mxu0
        %v4253 = vadd.f32 0.0, %v4252
        %v4254 = vpop.f32.mrf.mxu0
        %v4255 = vpop.f32.mrf.mxu0
        %v4256 = vadd.f32 0.0, %v4255
        %v4257 = vpop.f32.mrf.mxu0
        %4258 = vmatprep.mubr.bf16.mxu0 0
        %4259 = vmatmul.mubr.bf16.gmra.mxu0 %v4097
        %v4260 = vpop.f32.mrf.mxu0
        %v4261 = vadd.f32 0.0, %v4260
        %v4262 = vpop.f32.mrf.mxu0
        %v4263 = vpop.f32.mrf.mxu0
        %v4264 = vadd.f32 0.0, %v4263
        %v4265 = vpop.f32.mrf.mxu0
        %4266 = vmatprep.mubr.bf16.mxu0 0
        %4267 = vmatmul.mubr.bf16.gmra.mxu0 %v4098
        %v4268 = vpop.f32.mrf.mxu0
        %v4269 = vadd.f32 0.0, %v4268
        %v4270 = vpop.f32.mrf.mxu0
        %v4271 = vpop.f32.mrf.mxu0
        %v4272 = vadd.f32 0.0, %v4271
        %v4273 = vpop.f32.mrf.mxu0
        %4274 = vmatprep.mubr.bf16.mxu0 0
        %4275 = vmatmul.mubr.bf16.gmra.mxu0 %v4099
        %v4276 = vpop.f32.mrf.mxu0
        %v4277 = vadd.f32 0.0, %v4276
        %v4278 = vpop.f32.mrf.mxu0
        %v4279 = vpop.f32.mrf.mxu0
        %v4280 = vadd.f32 0.0, %v4279
        %v4281 = vpop.f32.mrf.mxu0
        %4282 = vmatprep.mubr.bf16.mxu0 0
        %4283 = vmatmul.mubr.bf16.gmra.mxu0 %v4100
        %v4284 = vpop.f32.mrf.mxu0
        %v4285 = vadd.f32 0.0, %v4284
        %v4286 = vpop.f32.mrf.mxu0
        %v4287 = vpop.f32.mrf.mxu0
        %v4288 = vadd.f32 0.0, %v4287
        %v4289 = vpop.f32.mrf.mxu0
        %4290 = vmatprep.mubr.bf16.mxu0 0
        %4291 = vmatmul.mubr.bf16.gmra.mxu0 %v4101
        %v4292 = vpop.f32.mrf.mxu0
        %v4293 = vadd.f32 0.0, %v4292
        %v4294 = vpop.f32.mrf.mxu0
        %v4295 = vpop.f32.mrf.mxu0
        %v4296 = vadd.f32 0.0, %v4295
        %v4297 = vpop.f32.mrf.mxu0
        %4298 = vmatprep.mubr.bf16.mxu0 0
        %4299 = vmatmul.mubr.bf16.gmra.mxu0 %v4102
        %v4300 = vpop.f32.mrf.mxu0
        %v4301 = vadd.f32 0.0, %v4300
        %v4302 = vpop.f32.mrf.mxu0
        %v4303 = vpop.f32.mrf.mxu0
        %v4304 = vadd.f32 0.0, %v4303
        %v4305 = vpop.f32.mrf.mxu0
        %4306 = vmatprep.mubr.bf16.mxu0 0
        %4307 = vmatmul.mubr.bf16.gmra.mxu0 %v4103
        %v4308 = vpop.f32.mrf.mxu0
        %v4309 = vadd.f32 0.0, %v4308
        %v4310 = vpop.f32.mrf.mxu0
        %v4311 = vpop.f32.mrf.mxu0
        %v4312 = vadd.f32 0.0, %v4311
        %v4313 = vpop.f32.mrf.mxu0
        %4314 = vmatprep.mubr.bf16.mxu0 0
        %4315 = vmatmul.mubr.bf16.gmra.mxu0 %v4104
        %v4316 = vpop.f32.mrf.mxu0
        %v4317 = vadd.f32 0.0, %v4316
        %v4318 = vpop.f32.mrf.mxu0
        %v4319 = vpop.f32.mrf.mxu0
        %v4320 = vadd.f32 0.0, %v4319
        %v4321 = vpop.f32.mrf.mxu0
        %4322 = vmatprep.mubr.bf16.mxu0 0
        %4323 = vmatmul.mubr.bf16.gmra.mxu0 %v4105
        %v4324 = vpop.f32.mrf.mxu0
        %v4325 = vadd.f32 0.0, %v4324
        %v4326 = vpop.f32.mrf.mxu0
        %v4327 = vpop.f32.mrf.mxu0
        %v4328 = vadd.f32 0.0, %v4327
        %v4329 = vpop.f32.mrf.mxu0
        %4330 = vdwg.mxu0
        %v4331 = vadd.f32 %v3977, %v4205
        %v4332 = vadd.f32 %v3978, %v4208
        %v4333 = vadd.f32 %v3979, %v4213
        %v4334 = vadd.f32 %v3980, %v4216
        %v4335 = vadd.f32 %v3981, %v4221
        %v4336 = vadd.f32 %v3982, %v4224
        %v4337 = vadd.f32 %v3983, %v4229
        %v4338 = vadd.f32 %v3984, %v4232
        %v4339 = vadd.f32 %v3985, %v4237
        %v4340 = vadd.f32 %v3986, %v4240
        %v4341 = vadd.f32 %v3987, %v4245
        %v4342 = vadd.f32 %v3988, %v4248
        %v4343 = vadd.f32 %v3989, %v4253
        %v4344 = vadd.f32 %v3990, %v4256
        %v4345 = vadd.f32 %v3991, %v4261
        %v4346 = vadd.f32 %v3992, %v4264
        %v4347 = vadd.f32 %v3993, %v4269
        %v4348 = vadd.f32 %v3994, %v4272
        %v4349 = vadd.f32 %v3995, %v4277
        %v4350 = vadd.f32 %v3996, %v4280
        %v4351 = vadd.f32 %v3997, %v4285
        %v4352 = vadd.f32 %v3998, %v4288
        %v4353 = vadd.f32 %v3999, %v4293
        %v4354 = vadd.f32 %v4000, %v4296
        %v4355 = vadd.f32 %v4001, %v4301
        %v4356 = vadd.f32 %v4002, %v4304
        %v4357 = vadd.f32 %v4003, %v4309
        %v4358 = vadd.f32 %v4004, %v4312
        %v4359 = vadd.f32 %v4005, %v4317
        %v4360 = vadd.f32 %v4006, %v4320
        %v4361 = vadd.f32 %v4007, %v4325
        %v4362 = vadd.f32 %v4008, %v4328
        %4363 = vst [vmem:[%s167] sm:$0xff] %v4331
        %4364 = vst [vmem:[%s167 + $0x8] sm:$0xff] %v4332
        %4365 = vst [vmem:[%s167 + $0x10] sm:$0xff] %v4333
        %4366 = vst [vmem:[%s167 + $0x18] sm:$0xff] %v4334
        %4367 = vst [vmem:[%s167 + $0x20] sm:$0xff] %v4335
        %4368 = vst [vmem:[%s167 + $0x28] sm:$0xff] %v4336
        %4369 = vst [vmem:[%s167 + $0x30] sm:$0xff] %v4337
        %4370 = vst [vmem:[%s167 + $0x38] sm:$0xff] %v4338
        %4371 = vst [vmem:[%s167 + $0x40] sm:$0xff] %v4339
        %4372 = vst [vmem:[%s167 + $0x48] sm:$0xff] %v4340
        %4373 = vst [vmem:[%s167 + $0x50] sm:$0xff] %v4341
        %4374 = vst [vmem:[%s167 + $0x58] sm:$0xff] %v4342
        %4375 = vst [vmem:[%s167 + $0x60] sm:$0xff] %v4343
        %4376 = vst [vmem:[%s167 + $0x68] sm:$0xff] %v4344
        %4377 = vst [vmem:[%s167 + $0x70] sm:$0xff] %v4345
        %4378 = vst [vmem:[%s167 + $0x78] sm:$0xff] %v4346
        %4379 = vst [vmem:[%s167 + $0x80] sm:$0xff] %v4347
        %4380 = vst [vmem:[%s167 + $0x88] sm:$0xff] %v4348
        %4381 = vst [vmem:[%s167 + $0x90] sm:$0xff] %v4349
        %4382 = vst [vmem:[%s167 + $0x98] sm:$0xff] %v4350
        %4383 = vst [vmem:[%s167 + $0xa0] sm:$0xff] %v4351
        %4384 = vst [vmem:[%s167 + $0xa8] sm:$0xff] %v4352
        %4385 = vst [vmem:[%s167 + $0xb0] sm:$0xff] %v4353
        %4386 = vst [vmem:[%s167 + $0xb8] sm:$0xff] %v4354
        %4387 = vst [vmem:[%s167 + $0xc0] sm:$0xff] %v4355
        %4388 = vst [vmem:[%s167 + $0xc8] sm:$0xff] %v4356
        %4389 = vst [vmem:[%s167 + $0xd0] sm:$0xff] %v4357
        %4390 = vst [vmem:[%s167 + $0xd8] sm:$0xff] %v4358
        %4391 = vst [vmem:[%s167 + $0xe0] sm:$0xff] %v4359
        %4392 = vst [vmem:[%s167 + $0xe8] sm:$0xff] %v4360
        %4393 = vst [vmem:[%s167 + $0xf0] sm:$0xff] %v4361
        %4394 = vst [vmem:[%s167 + $0xf8] sm:$0xff] %v4362
        %v4395 = vld [vmem:[%s3944] sm:$0xf]
        %v4396 = vld [vmem:[%s3944 + $0x4] sm:$0xf]
        %v4397 = vld [vmem:[%s3944 + $0x8] sm:$0x1]
        %v4398 = vld [vmem:[%s3944 + $0xc] sm:$0xf]
        %v4399 = vld [vmem:[%s3944 + $0x10] sm:$0xf]
        %v4400 = vld [vmem:[%s3944 + $0x14] sm:$0x1]
        %v4401 = vld [vmem:[%s3944 + $0x18] sm:$0xf]
        %v4402 = vld [vmem:[%s3944 + $0x1c] sm:$0xf]
        %v4403 = vld [vmem:[%s3944 + $0x20] sm:$0x1]
        %v4404 = vld [vmem:[%s3944 + $0x24] sm:$0xf]
        %v4405 = vld [vmem:[%s3944 + $0x28] sm:$0xf]
        %v4406 = vld [vmem:[%s3944 + $0x2c] sm:$0x1]
        %v4407 = vld [vmem:[%s3944 + $0x30] sm:$0xf]
        %v4408 = vld [vmem:[%s3944 + $0x34] sm:$0xf]
        %v4409 = vld [vmem:[%s3944 + $0x38] sm:$0x1]
        %v4410 = vld [vmem:[%s3944 + $0x3c] sm:$0xf]
        %v4411 = vld [vmem:[%s3944 + $0x40] sm:$0xf]
        %v4412 = vld [vmem:[%s3944 + $0x44] sm:$0x1]
        %v4413 = vld [vmem:[%s3944 + $0x48] sm:$0xf]
        %v4414 = vld [vmem:[%s3944 + $0x4c] sm:$0xf]
        %v4415 = vld [vmem:[%s3944 + $0x50] sm:$0x1]
        %v4416 = vld [vmem:[%s3944 + $0x54] sm:$0xf]
        %v4417 = vld [vmem:[%s3944 + $0x58] sm:$0xf]
        %v4418 = vld [vmem:[%s3944 + $0x5c] sm:$0x1]
        %v4419 = vld [vmem:[%s3944 + $0x60] sm:$0xf]
        %v4420 = vld [vmem:[%s3944 + $0x64] sm:$0xf]
        %v4421 = vld [vmem:[%s3944 + $0x68] sm:$0x1]
        %v4422 = vld [vmem:[%s3944 + $0x6c] sm:$0xf]
        %v4423 = vld [vmem:[%s3944 + $0x70] sm:$0xf]
        %v4424 = vld [vmem:[%s3944 + $0x74] sm:$0x1]
        %v4425 = vld [vmem:[%s3944 + $0x78] sm:$0xf]
        %v4426 = vld [vmem:[%s3944 + $0x7c] sm:$0xf]
        %v4427 = vld [vmem:[%s3944 + $0x80] sm:$0x1]
        %v4428 = vld [vmem:[%s3944 + $0x84] sm:$0xf]
        %v4429 = vld [vmem:[%s3944 + $0x88] sm:$0xf]
        %v4430 = vld [vmem:[%s3944 + $0x8c] sm:$0x1]
        %v4431 = vld [vmem:[%s3944 + $0x90] sm:$0xf]
        %v4432 = vld [vmem:[%s3944 + $0x94] sm:$0xf]
        %v4433 = vld [vmem:[%s3944 + $0x98] sm:$0x1]
        %v4434 = vld [vmem:[%s3944 + $0x9c] sm:$0xf]
        %v4435 = vld [vmem:[%s3944 + $0xa0] sm:$0xf]
        %v4436 = vld [vmem:[%s3944 + $0xa4] sm:$0x1]
        %v4437 = vld [vmem:[%s3944 + $0xa8] sm:$0xf]
        %v4438 = vld [vmem:[%s3944 + $0xac] sm:$0xf]
        %v4439 = vld [vmem:[%s3944 + $0xb0] sm:$0x1]
        %v4440 = vld [vmem:[%s3944 + $0xb4] sm:$0xf]
        %v4441 = vld [vmem:[%s3944 + $0xb8] sm:$0xf]
        %v4442 = vld [vmem:[%s3944 + $0xbc] sm:$0x1]
        %v4444 = vshrl.u32 %v4395, 16
        %v4446 = vrot.slane %v4444, 4
        %v4447 = vshll.u32 %v4395, 16
        %v4449 = vrot.slane %v4447, 5
        %v4450 = vor.u32 %v4446, %v4449
        %v4451 = vrot.slane %v4450, 4
        %v4453 = vshll.u32 %v4396, 16
        %v4455 = vrot.slane %v4453, 5
        %v4456 = vsel %vm713, %v4451, %v4455
        %v4457 = vshrl.u32 %v4396, 16
        %v4459 = vrot.slane %v4457, 4
        %v4460 = vor.u32 %v4459, %v4455
        %v4461 = vrot.slane %v4460, 4
        %v4463 = vshll.u32 %v4397, 16
        %v4465 = vrot.slane %v4463, 5
        %v4466 = vsel %vm713, %v4461, %v4465
        %v4468 = vshrl.u32 %v4398, 16
        %v4470 = vrot.slane %v4468, 4
        %v4471 = vshll.u32 %v4398, 16
        %v4473 = vrot.slane %v4471, 5
        %v4474 = vor.u32 %v4470, %v4473
        %v4475 = vrot.slane %v4474, 4
        %v4477 = vshll.u32 %v4399, 16
        %v4479 = vrot.slane %v4477, 5
        %v4480 = vsel %vm713, %v4475, %v4479
        %v4481 = vshrl.u32 %v4399, 16
        %v4483 = vrot.slane %v4481, 4
        %v4484 = vor.u32 %v4483, %v4479
        %v4485 = vrot.slane %v4484, 4
        %v4487 = vshll.u32 %v4400, 16
        %v4489 = vrot.slane %v4487, 5
        %v4490 = vsel %vm713, %v4485, %v4489
        %v4492 = vshrl.u32 %v4401, 16
        %v4494 = vrot.slane %v4492, 4
        %v4495 = vshll.u32 %v4401, 16
        %v4497 = vrot.slane %v4495, 5
        %v4498 = vor.u32 %v4494, %v4497
        %v4499 = vrot.slane %v4498, 4
        %v4501 = vshll.u32 %v4402, 16
        %v4503 = vrot.slane %v4501, 5
        %v4504 = vsel %vm713, %v4499, %v4503
        %v4505 = vshrl.u32 %v4402, 16
        %v4507 = vrot.slane %v4505, 4
        %v4508 = vor.u32 %v4507, %v4503
        %v4509 = vrot.slane %v4508, 4
        %v4511 = vshll.u32 %v4403, 16
        %v4513 = vrot.slane %v4511, 5
        %v4514 = vsel %vm713, %v4509, %v4513
        %v4516 = vshrl.u32 %v4404, 16
        %v4518 = vrot.slane %v4516, 4
        %v4519 = vshll.u32 %v4404, 16
        %v4521 = vrot.slane %v4519, 5
        %v4522 = vor.u32 %v4518, %v4521
        %v4523 = vrot.slane %v4522, 4
        %v4525 = vshll.u32 %v4405, 16
        %v4527 = vrot.slane %v4525, 5
        %v4528 = vsel %vm713, %v4523, %v4527
        %v4529 = vshrl.u32 %v4405, 16
        %v4531 = vrot.slane %v4529, 4
        %v4532 = vor.u32 %v4531, %v4527
        %v4533 = vrot.slane %v4532, 4
        %v4535 = vshll.u32 %v4406, 16
        %v4537 = vrot.slane %v4535, 5
        %v4538 = vsel %vm713, %v4533, %v4537
        %v4540 = vshrl.u32 %v4407, 16
        %v4542 = vrot.slane %v4540, 4
        %v4543 = vshll.u32 %v4407, 16
        %v4545 = vrot.slane %v4543, 5
        %v4546 = vor.u32 %v4542, %v4545
        %v4547 = vrot.slane %v4546, 4
        %v4549 = vshll.u32 %v4408, 16
        %v4551 = vrot.slane %v4549, 5
        %v4552 = vsel %vm713, %v4547, %v4551
        %v4553 = vshrl.u32 %v4408, 16
        %v4555 = vrot.slane %v4553, 4
        %v4556 = vor.u32 %v4555, %v4551
        %v4557 = vrot.slane %v4556, 4
        %v4559 = vshll.u32 %v4409, 16
        %v4561 = vrot.slane %v4559, 5
        %v4562 = vsel %vm713, %v4557, %v4561
        %v4564 = vshrl.u32 %v4410, 16
        %v4566 = vrot.slane %v4564, 4
        %v4567 = vshll.u32 %v4410, 16
        %v4569 = vrot.slane %v4567, 5
        %v4570 = vor.u32 %v4566, %v4569
        %v4571 = vrot.slane %v4570, 4
        %v4573 = vshll.u32 %v4411, 16
        %v4575 = vrot.slane %v4573, 5
        %v4576 = vsel %vm713, %v4571, %v4575
        %v4577 = vshrl.u32 %v4411, 16
        %v4579 = vrot.slane %v4577, 4
        %v4580 = vor.u32 %v4579, %v4575
        %v4581 = vrot.slane %v4580, 4
        %v4583 = vshll.u32 %v4412, 16
        %v4585 = vrot.slane %v4583, 5
        %v4586 = vsel %vm713, %v4581, %v4585
        %v4588 = vshrl.u32 %v4413, 16
        %v4590 = vrot.slane %v4588, 4
        %v4591 = vshll.u32 %v4413, 16
        %v4593 = vrot.slane %v4591, 5
        %v4594 = vor.u32 %v4590, %v4593
        %v4595 = vrot.slane %v4594, 4
        %v4597 = vshll.u32 %v4414, 16
        %v4599 = vrot.slane %v4597, 5
        %v4600 = vsel %vm713, %v4595, %v4599
        %v4601 = vshrl.u32 %v4414, 16
        %v4603 = vrot.slane %v4601, 4
        %v4604 = vor.u32 %v4603, %v4599
        %v4605 = vrot.slane %v4604, 4
        %v4607 = vshll.u32 %v4415, 16
        %v4609 = vrot.slane %v4607, 5
        %v4610 = vsel %vm713, %v4605, %v4609
        %v4612 = vshrl.u32 %v4416, 16
        %v4614 = vrot.slane %v4612, 4
        %v4615 = vshll.u32 %v4416, 16
        %v4617 = vrot.slane %v4615, 5
        %v4618 = vor.u32 %v4614, %v4617
        %v4619 = vrot.slane %v4618, 4
        %v4621 = vshll.u32 %v4417, 16
        %v4623 = vrot.slane %v4621, 5
        %v4624 = vsel %vm713, %v4619, %v4623
        %v4625 = vshrl.u32 %v4417, 16
        %v4627 = vrot.slane %v4625, 4
        %v4628 = vor.u32 %v4627, %v4623
        %v4629 = vrot.slane %v4628, 4
        %v4631 = vshll.u32 %v4418, 16
        %v4633 = vrot.slane %v4631, 5
        %v4634 = vsel %vm713, %v4629, %v4633
        %v4636 = vshrl.u32 %v4419, 16
        %v4638 = vrot.slane %v4636, 4
        %v4639 = vshll.u32 %v4419, 16
        %v4641 = vrot.slane %v4639, 5
        %v4642 = vor.u32 %v4638, %v4641
        %v4643 = vrot.slane %v4642, 4
        %v4645 = vshll.u32 %v4420, 16
        %v4647 = vrot.slane %v4645, 5
        %v4648 = vsel %vm713, %v4643, %v4647
        %v4649 = vshrl.u32 %v4420, 16
        %v4651 = vrot.slane %v4649, 4
        %v4652 = vor.u32 %v4651, %v4647
        %v4653 = vrot.slane %v4652, 4
        %v4655 = vshll.u32 %v4421, 16
        %v4657 = vrot.slane %v4655, 5
        %v4658 = vsel %vm713, %v4653, %v4657
        %v4660 = vshrl.u32 %v4422, 16
        %v4662 = vrot.slane %v4660, 4
        %v4663 = vshll.u32 %v4422, 16
        %v4665 = vrot.slane %v4663, 5
        %v4666 = vor.u32 %v4662, %v4665
        %v4667 = vrot.slane %v4666, 4
        %v4669 = vshll.u32 %v4423, 16
        %v4671 = vrot.slane %v4669, 5
        %v4672 = vsel %vm713, %v4667, %v4671
        %v4673 = vshrl.u32 %v4423, 16
        %v4675 = vrot.slane %v4673, 4
        %v4676 = vor.u32 %v4675, %v4671
        %v4677 = vrot.slane %v4676, 4
        %v4679 = vshll.u32 %v4424, 16
        %v4681 = vrot.slane %v4679, 5
        %v4682 = vsel %vm713, %v4677, %v4681
        %v4684 = vshrl.u32 %v4425, 16
        %v4686 = vrot.slane %v4684, 4
        %v4687 = vshll.u32 %v4425, 16
        %v4689 = vrot.slane %v4687, 5
        %v4690 = vor.u32 %v4686, %v4689
        %v4691 = vrot.slane %v4690, 4
        %v4693 = vshll.u32 %v4426, 16
        %v4695 = vrot.slane %v4693, 5
        %v4696 = vsel %vm713, %v4691, %v4695
        %v4697 = vshrl.u32 %v4426, 16
        %v4699 = vrot.slane %v4697, 4
        %v4700 = vor.u32 %v4699, %v4695
        %v4701 = vrot.slane %v4700, 4
        %v4703 = vshll.u32 %v4427, 16
        %v4705 = vrot.slane %v4703, 5
        %v4706 = vsel %vm713, %v4701, %v4705
        %v4708 = vshrl.u32 %v4428, 16
        %v4710 = vrot.slane %v4708, 4
        %v4711 = vshll.u32 %v4428, 16
        %v4713 = vrot.slane %v4711, 5
        %v4714 = vor.u32 %v4710, %v4713
        %v4715 = vrot.slane %v4714, 4
        %v4717 = vshll.u32 %v4429, 16
        %v4719 = vrot.slane %v4717, 5
        %v4720 = vsel %vm713, %v4715, %v4719
        %v4721 = vshrl.u32 %v4429, 16
        %v4723 = vrot.slane %v4721, 4
        %v4724 = vor.u32 %v4723, %v4719
        %v4725 = vrot.slane %v4724, 4
        %v4727 = vshll.u32 %v4430, 16
        %v4729 = vrot.slane %v4727, 5
        %v4730 = vsel %vm713, %v4725, %v4729
        %v4732 = vshrl.u32 %v4431, 16
        %v4734 = vrot.slane %v4732, 4
        %v4735 = vshll.u32 %v4431, 16
        %v4737 = vrot.slane %v4735, 5
        %v4738 = vor.u32 %v4734, %v4737
        %v4739 = vrot.slane %v4738, 4
        %v4741 = vshll.u32 %v4432, 16
        %v4743 = vrot.slane %v4741, 5
        %v4744 = vsel %vm713, %v4739, %v4743
        %v4745 = vshrl.u32 %v4432, 16
        %v4747 = vrot.slane %v4745, 4
        %v4748 = vor.u32 %v4747, %v4743
        %v4749 = vrot.slane %v4748, 4
        %v4751 = vshll.u32 %v4433, 16
        %v4753 = vrot.slane %v4751, 5
        %v4754 = vsel %vm713, %v4749, %v4753
        %v4756 = vshrl.u32 %v4434, 16
        %v4758 = vrot.slane %v4756, 4
        %v4759 = vshll.u32 %v4434, 16
        %v4761 = vrot.slane %v4759, 5
        %v4762 = vor.u32 %v4758, %v4761
        %v4763 = vrot.slane %v4762, 4
        %v4765 = vshll.u32 %v4435, 16
        %v4767 = vrot.slane %v4765, 5
        %v4768 = vsel %vm713, %v4763, %v4767
        %v4769 = vshrl.u32 %v4435, 16
        %v4771 = vrot.slane %v4769, 4
        %v4772 = vor.u32 %v4771, %v4767
        %v4773 = vrot.slane %v4772, 4
        %v4775 = vshll.u32 %v4436, 16
        %v4777 = vrot.slane %v4775, 5
        %v4778 = vsel %vm713, %v4773, %v4777
        %v4780 = vshrl.u32 %v4437, 16
        %v4782 = vrot.slane %v4780, 4
        %v4783 = vshll.u32 %v4437, 16
        %v4785 = vrot.slane %v4783, 5
        %v4786 = vor.u32 %v4782, %v4785
        %v4787 = vrot.slane %v4786, 4
        %v4789 = vshll.u32 %v4438, 16
        %v4791 = vrot.slane %v4789, 5
        %v4792 = vsel %vm713, %v4787, %v4791
        %v4793 = vshrl.u32 %v4438, 16
        %v4795 = vrot.slane %v4793, 4
        %v4796 = vor.u32 %v4795, %v4791
        %v4797 = vrot.slane %v4796, 4
        %v4799 = vshll.u32 %v4439, 16
        %v4801 = vrot.slane %v4799, 5
        %v4802 = vsel %vm713, %v4797, %v4801
        %v4804 = vshrl.u32 %v4440, 16
        %v4806 = vrot.slane %v4804, 4
        %v4807 = vshll.u32 %v4440, 16
        %v4809 = vrot.slane %v4807, 5
        %v4810 = vor.u32 %v4806, %v4809
        %v4811 = vrot.slane %v4810, 4
        %v4813 = vshll.u32 %v4441, 16
        %v4815 = vrot.slane %v4813, 5
        %v4816 = vsel %vm713, %v4811, %v4815
        %v4817 = vshrl.u32 %v4441, 16
        %v4819 = vrot.slane %v4817, 4
        %v4820 = vor.u32 %v4819, %v4815
        %v4821 = vrot.slane %v4820, 4
        %v4823 = vshll.u32 %v4442, 16
        %v4825 = vrot.slane %v4823, 5
        %v4826 = vsel %vm713, %v4821, %v4825
        %v4827 = vld [vmem:[%s167] sm:$0xff]
        %v4828 = vld [vmem:[%s167 + $0x8] sm:$0xff]
        %v4829 = vld [vmem:[%s167 + $0x10] sm:$0xff]
        %v4830 = vld [vmem:[%s167 + $0x18] sm:$0xff]
        %v4831 = vld [vmem:[%s167 + $0x20] sm:$0xff]
        %v4832 = vld [vmem:[%s167 + $0x28] sm:$0xff]
        %v4833 = vld [vmem:[%s167 + $0x30] sm:$0xff]
        %v4834 = vld [vmem:[%s167 + $0x38] sm:$0xff]
        %v4835 = vld [vmem:[%s167 + $0x40] sm:$0xff]
        %v4836 = vld [vmem:[%s167 + $0x48] sm:$0xff]
        %v4837 = vld [vmem:[%s167 + $0x50] sm:$0xff]
        %v4838 = vld [vmem:[%s167 + $0x58] sm:$0xff]
        %v4839 = vld [vmem:[%s167 + $0x60] sm:$0xff]
        %v4840 = vld [vmem:[%s167 + $0x68] sm:$0xff]
        %v4841 = vld [vmem:[%s167 + $0x70] sm:$0xff]
        %v4842 = vld [vmem:[%s167 + $0x78] sm:$0xff]
        %v4843 = vld [vmem:[%s167 + $0x80] sm:$0xff]
        %v4844 = vld [vmem:[%s167 + $0x88] sm:$0xff]
        %v4845 = vld [vmem:[%s167 + $0x90] sm:$0xff]
        %v4846 = vld [vmem:[%s167 + $0x98] sm:$0xff]
        %v4847 = vld [vmem:[%s167 + $0xa0] sm:$0xff]
        %v4848 = vld [vmem:[%s167 + $0xa8] sm:$0xff]
        %v4849 = vld [vmem:[%s167 + $0xb0] sm:$0xff]
        %v4850 = vld [vmem:[%s167 + $0xb8] sm:$0xff]
        %v4851 = vld [vmem:[%s167 + $0xc0] sm:$0xff]
        %v4852 = vld [vmem:[%s167 + $0xc8] sm:$0xff]
        %v4853 = vld [vmem:[%s167 + $0xd0] sm:$0xff]
        %v4854 = vld [vmem:[%s167 + $0xd8] sm:$0xff]
        %v4855 = vld [vmem:[%s167 + $0xe0] sm:$0xff]
        %v4856 = vld [vmem:[%s167 + $0xe8] sm:$0xff]
        %v4857 = vld [vmem:[%s167 + $0xf0] sm:$0xff]
        %v4858 = vld [vmem:[%s167 + $0xf8] sm:$0xff]
        %s4859 = scalar_lea.vmem %s1, 448
        %v4860 = vld [vmem:[%s4859] sm:$0xf]
        %v4861 = vld [vmem:[%s4859 + $0x4] sm:$0xf]
        %v4862 = vld [vmem:[%s4859 + $0x8] sm:$0xf]
        %v4863 = vld [vmem:[%s4859 + $0xc] sm:$0xf]
        %v4864 = vld [vmem:[%s4859 + $0x10] sm:$0xf]
        %v4865 = vld [vmem:[%s4859 + $0x14] sm:$0xf]
        %v4866 = vld [vmem:[%s4859 + $0x18] sm:$0xf]
        %v4867 = vld [vmem:[%s4859 + $0x1c] sm:$0xf]
        %v4868 = vld [vmem:[%s4859 + $0x20] sm:$0xf]
        %v4869 = vld [vmem:[%s4859 + $0x24] sm:$0xf]
        %v4870 = vld [vmem:[%s4859 + $0x28] sm:$0xf]
        %v4871 = vld [vmem:[%s4859 + $0x2c] sm:$0xf]
        %v4872 = vld [vmem:[%s4859 + $0x30] sm:$0xf]
        %v4873 = vld [vmem:[%s4859 + $0x34] sm:$0xf]
        %v4874 = vld [vmem:[%s4859 + $0x38] sm:$0xf]
        %v4875 = vld [vmem:[%s4859 + $0x3c] sm:$0xf]
        %v4876 = vunpack.c.l.b16 %v4456
        %v4877 = vunpack.c.l.b16 %v4466
        %v4878 = vunpack.c.l.b16 %v4480
        %v4879 = vunpack.c.l.b16 %v4490
        %v4880 = vunpack.c.l.b16 %v4504
        %v4881 = vunpack.c.l.b16 %v4514
        %v4882 = vunpack.c.l.b16 %v4528
        %v4883 = vunpack.c.l.b16 %v4538
        %v4884 = vunpack.c.l.b16 %v4552
        %v4885 = vunpack.c.l.b16 %v4562
        %v4886 = vunpack.c.l.b16 %v4576
        %v4887 = vunpack.c.l.b16 %v4586
        %v4888 = vunpack.c.l.b16 %v4600
        %v4889 = vunpack.c.l.b16 %v4610
        %v4890 = vunpack.c.l.b16 %v4624
        %v4891 = vunpack.c.l.b16 %v4634
        %v4892 = vunpack.c.l.b16 %v4648
        %v4893 = vunpack.c.l.b16 %v4658
        %v4894 = vunpack.c.l.b16 %v4672
        %v4895 = vunpack.c.l.b16 %v4682
        %v4896 = vunpack.c.l.b16 %v4696
        %v4897 = vunpack.c.l.b16 %v4706
        %v4898 = vunpack.c.l.b16 %v4720
        %v4899 = vunpack.c.l.b16 %v4730
        %v4900 = vunpack.c.l.b16 %v4744
        %v4901 = vunpack.c.l.b16 %v4754
        %v4902 = vunpack.c.l.b16 %v4768
        %v4903 = vunpack.c.l.b16 %v4778
        %v4904 = vunpack.c.l.b16 %v4792
        %v4905 = vunpack.c.l.b16 %v4802
        %v4906 = vunpack.c.l.b16 %v4816
        %v4907 = vunpack.c.l.b16 %v4826
        %v4908 = vpack.c.b16 %v4877, %v4876
        %v4909 = vpack.c.b16 %v4879, %v4878
        %v4910 = vpack.c.b16 %v4881, %v4880
        %v4911 = vpack.c.b16 %v4883, %v4882
        %v4912 = vpack.c.b16 %v4885, %v4884
        %v4913 = vpack.c.b16 %v4887, %v4886
        %v4914 = vpack.c.b16 %v4889, %v4888
        %v4915 = vpack.c.b16 %v4891, %v4890
        %v4916 = vpack.c.b16 %v4893, %v4892
        %v4917 = vpack.c.b16 %v4895, %v4894
        %v4918 = vpack.c.b16 %v4897, %v4896
        %v4919 = vpack.c.b16 %v4899, %v4898
        %v4920 = vpack.c.b16 %v4901, %v4900
        %v4921 = vpack.c.b16 %v4903, %v4902
        %v4922 = vpack.c.b16 %v4905, %v4904
        %v4923 = vpack.c.b16 %v4907, %v4906
        %v4956 = vunpack.c.l.b16 %v4860
        %v4957 = vunpack.c.l.b16 %v4861
        %v4958 = vunpack.c.l.b16 %v4862
        %v4959 = vunpack.c.l.b16 %v4863
        %v4960 = vunpack.c.l.b16 %v4864
        %v4961 = vunpack.c.l.b16 %v4865
        %v4962 = vunpack.c.l.b16 %v4866
        %v4963 = vunpack.c.l.b16 %v4867
        %v4964 = vunpack.c.l.b16 %v4868
        %v4965 = vunpack.c.l.b16 %v4869
        %v4966 = vunpack.c.l.b16 %v4870
        %v4967 = vunpack.c.l.b16 %v4871
        %v4968 = vunpack.c.l.b16 %v4872
        %v4969 = vunpack.c.l.b16 %v4873
        %v4970 = vunpack.c.l.b16 %v4874
        %v4971 = vunpack.c.l.b16 %v4875
        %v4972 = vpack.c.b16 %v4957, %v4956
        %v4973 = vpack.c.b16 %v4959, %v4958
        %v4974 = vpack.c.b16 %v4961, %v4960
        %v4975 = vpack.c.b16 %v4963, %v4962
        %v4976 = vpack.c.b16 %v4965, %v4964
        %v4977 = vpack.c.b16 %v4967, %v4966
        %v4978 = vpack.c.b16 %v4969, %v4968
        %v4979 = vpack.c.b16 %v4971, %v4970
        %4988 = vmatprep.subr.bf16.mxu0 0
        %4989 = vmatpush1.bf16.msra.mxu0 %v4979
        %4990 = vmatprep.subr.bf16.mxu0 0
        %4991 = vmatpush1.bf16.msra.mxu0 %v4978
        %4992 = vmatprep.subr.bf16.mxu0 0
        %4993 = vmatpush1.bf16.msra.mxu0 %v4977
        %4994 = vmatprep.subr.bf16.mxu0 0
        %4995 = vmatpush1.bf16.msra.mxu0 %v4976
        %4996 = vmatprep.subr.bf16.mxu0 0
        %4997 = vmatpush1.bf16.msra.mxu0 %v4975
        %4998 = vmatprep.subr.bf16.mxu0 0
        %4999 = vmatpush1.bf16.msra.mxu0 %v4974
        %5000 = vmatprep.subr.bf16.mxu0 0
        %5001 = vmatpush1.bf16.msra.mxu0 %v4973
        %5002 = vmatprep.subr.bf16.mxu0 0
        %5003 = vmatpush1.bf16.msra.mxu0 %v4972
        %5004 = vmatprep.subr.bf16.mxu0 0
        %5005 = vmatpush2.bf16.msra.mxu0 0
        %5006 = vmatprep.subr.bf16.mxu0 0
        %5007 = vmatpush2.bf16.msra.mxu0 0
        %5008 = vmatprep.subr.bf16.mxu0 0
        %5009 = vmatpush2.bf16.msra.mxu0 0
        %5010 = vmatprep.subr.bf16.mxu0 0
        %5011 = vmatpush2.bf16.msra.mxu0 0
        %5012 = vmatprep.subr.bf16.mxu0 0
        %5013 = vmatpush2.bf16.msra.mxu0 0
        %5014 = vmatprep.subr.bf16.mxu0 0
        %5015 = vmatpush2.bf16.msra.mxu0 0
        %5016 = vmatprep.subr.bf16.mxu0 0
        %5017 = vmatpush2.bf16.msra.mxu0 0
        %5018 = vmatprep.subr.bf16.mxu0 0
        %5019 = vmatpush2.bf16.msra.mxu0 0
        %5020 = vmatprep.mubr.bf16.mxu0 0
        %5021 = vmatmul.mubr.bf16.gmra.mxu0 %v4908
        %v5022 = vpop.f32.mrf.mxu0
        %v5023 = vadd.f32 0.0, %v5022
        %v5024 = vpop.f32.mrf.mxu0
        %v5025 = vpop.f32.mrf.mxu0
        %v5026 = vadd.f32 0.0, %v5025
        %v5027 = vpop.f32.mrf.mxu0
        %5028 = vmatprep.mubr.bf16.mxu0 0
        %5029 = vmatmul.mubr.bf16.gmra.mxu0 %v4909
        %v5030 = vpop.f32.mrf.mxu0
        %v5031 = vadd.f32 0.0, %v5030
        %v5032 = vpop.f32.mrf.mxu0
        %v5033 = vpop.f32.mrf.mxu0
        %v5034 = vadd.f32 0.0, %v5033
        %v5035 = vpop.f32.mrf.mxu0
        %5036 = vmatprep.mubr.bf16.mxu0 0
        %5037 = vmatmul.mubr.bf16.gmra.mxu0 %v4910
        %v5038 = vpop.f32.mrf.mxu0
        %v5039 = vadd.f32 0.0, %v5038
        %v5040 = vpop.f32.mrf.mxu0
        %v5041 = vpop.f32.mrf.mxu0
        %v5042 = vadd.f32 0.0, %v5041
        %v5043 = vpop.f32.mrf.mxu0
        %5044 = vmatprep.mubr.bf16.mxu0 0
        %5045 = vmatmul.mubr.bf16.gmra.mxu0 %v4911
        %v5046 = vpop.f32.mrf.mxu0
        %v5047 = vadd.f32 0.0, %v5046
        %v5048 = vpop.f32.mrf.mxu0
        %v5049 = vpop.f32.mrf.mxu0
        %v5050 = vadd.f32 0.0, %v5049
        %v5051 = vpop.f32.mrf.mxu0
        %5052 = vmatprep.mubr.bf16.mxu0 0
        %5053 = vmatmul.mubr.bf16.gmra.mxu0 %v4912
        %v5054 = vpop.f32.mrf.mxu0
        %v5055 = vadd.f32 0.0, %v5054
        %v5056 = vpop.f32.mrf.mxu0
        %v5057 = vpop.f32.mrf.mxu0
        %v5058 = vadd.f32 0.0, %v5057
        %v5059 = vpop.f32.mrf.mxu0
        %5060 = vmatprep.mubr.bf16.mxu0 0
        %5061 = vmatmul.mubr.bf16.gmra.mxu0 %v4913
        %v5062 = vpop.f32.mrf.mxu0
        %v5063 = vadd.f32 0.0, %v5062
        %v5064 = vpop.f32.mrf.mxu0
        %v5065 = vpop.f32.mrf.mxu0
        %v5066 = vadd.f32 0.0, %v5065
        %v5067 = vpop.f32.mrf.mxu0
        %5068 = vmatprep.mubr.bf16.mxu0 0
        %5069 = vmatmul.mubr.bf16.gmra.mxu0 %v4914
        %v5070 = vpop.f32.mrf.mxu0
        %v5071 = vadd.f32 0.0, %v5070
        %v5072 = vpop.f32.mrf.mxu0
        %v5073 = vpop.f32.mrf.mxu0
        %v5074 = vadd.f32 0.0, %v5073
        %v5075 = vpop.f32.mrf.mxu0
        %5076 = vmatprep.mubr.bf16.mxu0 0
        %5077 = vmatmul.mubr.bf16.gmra.mxu0 %v4915
        %v5078 = vpop.f32.mrf.mxu0
        %v5079 = vadd.f32 0.0, %v5078
        %v5080 = vpop.f32.mrf.mxu0
        %v5081 = vpop.f32.mrf.mxu0
        %v5082 = vadd.f32 0.0, %v5081
        %v5083 = vpop.f32.mrf.mxu0
        %5084 = vmatprep.mubr.bf16.mxu0 0
        %5085 = vmatmul.mubr.bf16.gmra.mxu0 %v4916
        %v5086 = vpop.f32.mrf.mxu0
        %v5087 = vadd.f32 0.0, %v5086
        %v5088 = vpop.f32.mrf.mxu0
        %v5089 = vpop.f32.mrf.mxu0
        %v5090 = vadd.f32 0.0, %v5089
        %v5091 = vpop.f32.mrf.mxu0
        %5092 = vmatprep.mubr.bf16.mxu0 0
        %5093 = vmatmul.mubr.bf16.gmra.mxu0 %v4917
        %v5094 = vpop.f32.mrf.mxu0
        %v5095 = vadd.f32 0.0, %v5094
        %v5096 = vpop.f32.mrf.mxu0
        %v5097 = vpop.f32.mrf.mxu0
        %v5098 = vadd.f32 0.0, %v5097
        %v5099 = vpop.f32.mrf.mxu0
        %5100 = vmatprep.mubr.bf16.mxu0 0
        %5101 = vmatmul.mubr.bf16.gmra.mxu0 %v4918
        %v5102 = vpop.f32.mrf.mxu0
        %v5103 = vadd.f32 0.0, %v5102
        %v5104 = vpop.f32.mrf.mxu0
        %v5105 = vpop.f32.mrf.mxu0
        %v5106 = vadd.f32 0.0, %v5105
        %v5107 = vpop.f32.mrf.mxu0
        %5108 = vmatprep.mubr.bf16.mxu0 0
        %5109 = vmatmul.mubr.bf16.gmra.mxu0 %v4919
        %v5110 = vpop.f32.mrf.mxu0
        %v5111 = vadd.f32 0.0, %v5110
        %v5112 = vpop.f32.mrf.mxu0
        %v5113 = vpop.f32.mrf.mxu0
        %v5114 = vadd.f32 0.0, %v5113
        %v5115 = vpop.f32.mrf.mxu0
        %5116 = vmatprep.mubr.bf16.mxu0 0
        %5117 = vmatmul.mubr.bf16.gmra.mxu0 %v4920
        %v5118 = vpop.f32.mrf.mxu0
        %v5119 = vadd.f32 0.0, %v5118
        %v5120 = vpop.f32.mrf.mxu0
        %v5121 = vpop.f32.mrf.mxu0
        %v5122 = vadd.f32 0.0, %v5121
        %v5123 = vpop.f32.mrf.mxu0
        %5124 = vmatprep.mubr.bf16.mxu0 0
        %5125 = vmatmul.mubr.bf16.gmra.mxu0 %v4921
        %v5126 = vpop.f32.mrf.mxu0
        %v5127 = vadd.f32 0.0, %v5126
        %v5128 = vpop.f32.mrf.mxu0
        %v5129 = vpop.f32.mrf.mxu0
        %v5130 = vadd.f32 0.0, %v5129
        %v5131 = vpop.f32.mrf.mxu0
        %5132 = vmatprep.mubr.bf16.mxu0 0
        %5133 = vmatmul.mubr.bf16.gmra.mxu0 %v4922
        %v5134 = vpop.f32.mrf.mxu0
        %v5135 = vadd.f32 0.0, %v5134
        %v5136 = vpop.f32.mrf.mxu0
        %v5137 = vpop.f32.mrf.mxu0
        %v5138 = vadd.f32 0.0, %v5137
        %v5139 = vpop.f32.mrf.mxu0
        %5140 = vmatprep.mubr.bf16.mxu0 0
        %5141 = vmatmul.mubr.bf16.gmra.mxu0 %v4923
        %v5142 = vpop.f32.mrf.mxu0
        %v5143 = vadd.f32 0.0, %v5142
        %v5144 = vpop.f32.mrf.mxu0
        %v5145 = vpop.f32.mrf.mxu0
        %v5146 = vadd.f32 0.0, %v5145
        %v5147 = vpop.f32.mrf.mxu0
        %5148 = vdwg.mxu0
        %v5149 = vadd.f32 %v4827, %v5023
        %v5150 = vadd.f32 %v4828, %v5026
        %v5151 = vadd.f32 %v4829, %v5031
        %v5152 = vadd.f32 %v4830, %v5034
        %v5153 = vadd.f32 %v4831, %v5039
        %v5154 = vadd.f32 %v4832, %v5042
        %v5155 = vadd.f32 %v4833, %v5047
        %v5156 = vadd.f32 %v4834, %v5050
        %v5157 = vadd.f32 %v4835, %v5055
        %v5158 = vadd.f32 %v4836, %v5058
        %v5159 = vadd.f32 %v4837, %v5063
        %v5160 = vadd.f32 %v4838, %v5066
        %v5161 = vadd.f32 %v4839, %v5071
        %v5162 = vadd.f32 %v4840, %v5074
        %v5163 = vadd.f32 %v4841, %v5079
        %v5164 = vadd.f32 %v4842, %v5082
        %v5165 = vadd.f32 %v4843, %v5087
        %v5166 = vadd.f32 %v4844, %v5090
        %v5167 = vadd.f32 %v4845, %v5095
        %v5168 = vadd.f32 %v4846, %v5098
        %v5169 = vadd.f32 %v4847, %v5103
        %v5170 = vadd.f32 %v4848, %v5106
        %v5171 = vadd.f32 %v4849, %v5111
        %v5172 = vadd.f32 %v4850, %v5114
        %v5173 = vadd.f32 %v4851, %v5119
        %v5174 = vadd.f32 %v4852, %v5122
        %v5175 = vadd.f32 %v4853, %v5127
        %v5176 = vadd.f32 %v4854, %v5130
        %v5177 = vadd.f32 %v4855, %v5135
        %v5178 = vadd.f32 %v4856, %v5138
        %v5179 = vadd.f32 %v4857, %v5143
        %v5180 = vadd.f32 %v4858, %v5146
        %5181 = vst [vmem:[%s167] sm:$0xff] %v5149
        %5182 = vst [vmem:[%s167 + $0x8] sm:$0xff] %v5150
        %5183 = vst [vmem:[%s167 + $0x10] sm:$0xff] %v5151
        %5184 = vst [vmem:[%s167 + $0x18] sm:$0xff] %v5152
        %5185 = vst [vmem:[%s167 + $0x20] sm:$0xff] %v5153
        %5186 = vst [vmem:[%s167 + $0x28] sm:$0xff] %v5154
        %5187 = vst [vmem:[%s167 + $0x30] sm:$0xff] %v5155
        %5188 = vst [vmem:[%s167 + $0x38] sm:$0xff] %v5156
        %5189 = vst [vmem:[%s167 + $0x40] sm:$0xff] %v5157
        %5190 = vst [vmem:[%s167 + $0x48] sm:$0xff] %v5158
        %5191 = vst [vmem:[%s167 + $0x50] sm:$0xff] %v5159
        %5192 = vst [vmem:[%s167 + $0x58] sm:$0xff] %v5160
        %5193 = vst [vmem:[%s167 + $0x60] sm:$0xff] %v5161
        %5194 = vst [vmem:[%s167 + $0x68] sm:$0xff] %v5162
        %5195 = vst [vmem:[%s167 + $0x70] sm:$0xff] %v5163
        %5196 = vst [vmem:[%s167 + $0x78] sm:$0xff] %v5164
        %5197 = vst [vmem:[%s167 + $0x80] sm:$0xff] %v5165
        %5198 = vst [vmem:[%s167 + $0x88] sm:$0xff] %v5166
        %5199 = vst [vmem:[%s167 + $0x90] sm:$0xff] %v5167
        %5200 = vst [vmem:[%s167 + $0x98] sm:$0xff] %v5168
        %5201 = vst [vmem:[%s167 + $0xa0] sm:$0xff] %v5169
        %5202 = vst [vmem:[%s167 + $0xa8] sm:$0xff] %v5170
        %5203 = vst [vmem:[%s167 + $0xb0] sm:$0xff] %v5171
        %5204 = vst [vmem:[%s167 + $0xb8] sm:$0xff] %v5172
        %5205 = vst [vmem:[%s167 + $0xc0] sm:$0xff] %v5173
        %5206 = vst [vmem:[%s167 + $0xc8] sm:$0xff] %v5174
        %5207 = vst [vmem:[%s167 + $0xd0] sm:$0xff] %v5175
        %5208 = vst [vmem:[%s167 + $0xd8] sm:$0xff] %v5176
        %5209 = vst [vmem:[%s167 + $0xe0] sm:$0xff] %v5177
        %5210 = vst [vmem:[%s167 + $0xe8] sm:$0xff] %v5178
        %5211 = vst [vmem:[%s167 + $0xf0] sm:$0xff] %v5179
        %5212 = vst [vmem:[%s167 + $0xf8] sm:$0xff] %v5180
        %v5213 = vld [vmem:[%s3944] sm:$0xe]
        %v5214 = vld [vmem:[%s3944 + $0x4] sm:$0xf]
        %v5215 = vld [vmem:[%s3944 + $0x8] sm:$0x1]
        %v5216 = vld [vmem:[%s3944 + $0xc] sm:$0xe]
        %v5217 = vld [vmem:[%s3944 + $0x10] sm:$0xf]
        %v5218 = vld [vmem:[%s3944 + $0x14] sm:$0x1]
        %v5219 = vld [vmem:[%s3944 + $0x18] sm:$0xe]
        %v5220 = vld [vmem:[%s3944 + $0x1c] sm:$0xf]
        %v5221 = vld [vmem:[%s3944 + $0x20] sm:$0x1]
        %v5222 = vld [vmem:[%s3944 + $0x24] sm:$0xe]
        %v5223 = vld [vmem:[%s3944 + $0x28] sm:$0xf]
        %v5224 = vld [vmem:[%s3944 + $0x2c] sm:$0x1]
        %v5225 = vld [vmem:[%s3944 + $0x30] sm:$0xe]
        %v5226 = vld [vmem:[%s3944 + $0x34] sm:$0xf]
        %v5227 = vld [vmem:[%s3944 + $0x38] sm:$0x1]
        %v5228 = vld [vmem:[%s3944 + $0x3c] sm:$0xe]
        %v5229 = vld [vmem:[%s3944 + $0x40] sm:$0xf]
        %v5230 = vld [vmem:[%s3944 + $0x44] sm:$0x1]
        %v5231 = vld [vmem:[%s3944 + $0x48] sm:$0xe]
        %v5232 = vld [vmem:[%s3944 + $0x4c] sm:$0xf]
        %v5233 = vld [vmem:[%s3944 + $0x50] sm:$0x1]
        %v5234 = vld [vmem:[%s3944 + $0x54] sm:$0xe]
        %v5235 = vld [vmem:[%s3944 + $0x58] sm:$0xf]
        %v5236 = vld [vmem:[%s3944 + $0x5c] sm:$0x1]
        %v5237 = vld [vmem:[%s3944 + $0x60] sm:$0xe]
        %v5238 = vld [vmem:[%s3944 + $0x64] sm:$0xf]
        %v5239 = vld [vmem:[%s3944 + $0x68] sm:$0x1]
        %v5240 = vld [vmem:[%s3944 + $0x6c] sm:$0xe]
        %v5241 = vld [vmem:[%s3944 + $0x70] sm:$0xf]
        %v5242 = vld [vmem:[%s3944 + $0x74] sm:$0x1]
        %v5243 = vld [vmem:[%s3944 + $0x78] sm:$0xe]
        %v5244 = vld [vmem:[%s3944 + $0x7c] sm:$0xf]
        %v5245 = vld [vmem:[%s3944 + $0x80] sm:$0x1]
        %v5246 = vld [vmem:[%s3944 + $0x84] sm:$0xe]
        %v5247 = vld [vmem:[%s3944 + $0x88] sm:$0xf]
        %v5248 = vld [vmem:[%s3944 + $0x8c] sm:$0x1]
        %v5249 = vld [vmem:[%s3944 + $0x90] sm:$0xe]
        %v5250 = vld [vmem:[%s3944 + $0x94] sm:$0xf]
        %v5251 = vld [vmem:[%s3944 + $0x98] sm:$0x1]
        %v5252 = vld [vmem:[%s3944 + $0x9c] sm:$0xe]
        %v5253 = vld [vmem:[%s3944 + $0xa0] sm:$0xf]
        %v5254 = vld [vmem:[%s3944 + $0xa4] sm:$0x1]
        %v5255 = vld [vmem:[%s3944 + $0xa8] sm:$0xe]
        %v5256 = vld [vmem:[%s3944 + $0xac] sm:$0xf]
        %v5257 = vld [vmem:[%s3944 + $0xb0] sm:$0x1]
        %v5258 = vld [vmem:[%s3944 + $0xb4] sm:$0xe]
        %v5259 = vld [vmem:[%s3944 + $0xb8] sm:$0xf]
        %v5260 = vld [vmem:[%s3944 + $0xbc] sm:$0x1]
        %v5309 = vrot.slane %v5213, 5
        %v5310 = vrot.slane %v5309, 4
        %v5311 = vrot.slane %v5214, 5
        %v5312 = vsel %vm1582, %v5310, %v5311
        %v5313 = vrot.slane %v5311, 4
        %v5314 = vrot.slane %v5215, 5
        %v5315 = vsel %vm1582, %v5313, %v5314
        %v5316 = vrot.slane %v5216, 5
        %v5317 = vrot.slane %v5316, 4
        %v5318 = vrot.slane %v5217, 5
        %v5319 = vsel %vm1582, %v5317, %v5318
        %v5320 = vrot.slane %v5318, 4
        %v5321 = vrot.slane %v5218, 5
        %v5322 = vsel %vm1582, %v5320, %v5321
        %v5323 = vrot.slane %v5219, 5
        %v5324 = vrot.slane %v5323, 4
        %v5325 = vrot.slane %v5220, 5
        %v5326 = vsel %vm1582, %v5324, %v5325
        %v5327 = vrot.slane %v5325, 4
        %v5328 = vrot.slane %v5221, 5
        %v5329 = vsel %vm1582, %v5327, %v5328
        %v5330 = vrot.slane %v5222, 5
        %v5331 = vrot.slane %v5330, 4
        %v5332 = vrot.slane %v5223, 5
        %v5333 = vsel %vm1582, %v5331, %v5332
        %v5334 = vrot.slane %v5332, 4
        %v5335 = vrot.slane %v5224, 5
        %v5336 = vsel %vm1582, %v5334, %v5335
        %v5337 = vrot.slane %v5225, 5
        %v5338 = vrot.slane %v5337, 4
        %v5339 = vrot.slane %v5226, 5
        %v5340 = vsel %vm1582, %v5338, %v5339
        %v5341 = vrot.slane %v5339, 4
        %v5342 = vrot.slane %v5227, 5
        %v5343 = vsel %vm1582, %v5341, %v5342
        %v5344 = vrot.slane %v5228, 5
        %v5345 = vrot.slane %v5344, 4
        %v5346 = vrot.slane %v5229, 5
        %v5347 = vsel %vm1582, %v5345, %v5346
        %v5348 = vrot.slane %v5346, 4
        %v5349 = vrot.slane %v5230, 5
        %v5350 = vsel %vm1582, %v5348, %v5349
        %v5351 = vrot.slane %v5231, 5
        %v5352 = vrot.slane %v5351, 4
        %v5353 = vrot.slane %v5232, 5
        %v5354 = vsel %vm1582, %v5352, %v5353
        %v5355 = vrot.slane %v5353, 4
        %v5356 = vrot.slane %v5233, 5
        %v5357 = vsel %vm1582, %v5355, %v5356
        %v5358 = vrot.slane %v5234, 5
        %v5359 = vrot.slane %v5358, 4
        %v5360 = vrot.slane %v5235, 5
        %v5361 = vsel %vm1582, %v5359, %v5360
        %v5362 = vrot.slane %v5360, 4
        %v5363 = vrot.slane %v5236, 5
        %v5364 = vsel %vm1582, %v5362, %v5363
        %v5365 = vrot.slane %v5237, 5
        %v5366 = vrot.slane %v5365, 4
        %v5367 = vrot.slane %v5238, 5
        %v5368 = vsel %vm1582, %v5366, %v5367
        %v5369 = vrot.slane %v5367, 4
        %v5370 = vrot.slane %v5239, 5
        %v5371 = vsel %vm1582, %v5369, %v5370
        %v5372 = vrot.slane %v5240, 5
        %v5373 = vrot.slane %v5372, 4
        %v5374 = vrot.slane %v5241, 5
        %v5375 = vsel %vm1582, %v5373, %v5374
        %v5376 = vrot.slane %v5374, 4
        %v5377 = vrot.slane %v5242, 5
        %v5378 = vsel %vm1582, %v5376, %v5377
        %v5379 = vrot.slane %v5243, 5
        %v5380 = vrot.slane %v5379, 4
        %v5381 = vrot.slane %v5244, 5
        %v5382 = vsel %vm1582, %v5380, %v5381
        %v5383 = vrot.slane %v5381, 4
        %v5384 = vrot.slane %v5245, 5
        %v5385 = vsel %vm1582, %v5383, %v5384
        %v5386 = vrot.slane %v5246, 5
        %v5387 = vrot.slane %v5386, 4
        %v5388 = vrot.slane %v5247, 5
        %v5389 = vsel %vm1582, %v5387, %v5388
        %v5390 = vrot.slane %v5388, 4
        %v5391 = vrot.slane %v5248, 5
        %v5392 = vsel %vm1582, %v5390, %v5391
        %v5393 = vrot.slane %v5249, 5
        %v5394 = vrot.slane %v5393, 4
        %v5395 = vrot.slane %v5250, 5
        %v5396 = vsel %vm1582, %v5394, %v5395
        %v5397 = vrot.slane %v5395, 4
        %v5398 = vrot.slane %v5251, 5
        %v5399 = vsel %vm1582, %v5397, %v5398
        %v5400 = vrot.slane %v5252, 5
        %v5401 = vrot.slane %v5400, 4
        %v5402 = vrot.slane %v5253, 5
        %v5403 = vsel %vm1582, %v5401, %v5402
        %v5404 = vrot.slane %v5402, 4
        %v5405 = vrot.slane %v5254, 5
        %v5406 = vsel %vm1582, %v5404, %v5405
        %v5407 = vrot.slane %v5255, 5
        %v5408 = vrot.slane %v5407, 4
        %v5409 = vrot.slane %v5256, 5
        %v5410 = vsel %vm1582, %v5408, %v5409
        %v5411 = vrot.slane %v5409, 4
        %v5412 = vrot.slane %v5257, 5
        %v5413 = vsel %vm1582, %v5411, %v5412
        %v5414 = vrot.slane %v5258, 5
        %v5415 = vrot.slane %v5414, 4
        %v5416 = vrot.slane %v5259, 5
        %v5417 = vsel %vm1582, %v5415, %v5416
        %v5418 = vrot.slane %v5416, 4
        %v5419 = vrot.slane %v5260, 5
        %v5420 = vsel %vm1582, %v5418, %v5419
        %v5421 = vld [vmem:[%s167] sm:$0xff]
        %v5422 = vld [vmem:[%s167 + $0x8] sm:$0xff]
        %v5423 = vld [vmem:[%s167 + $0x10] sm:$0xff]
        %v5424 = vld [vmem:[%s167 + $0x18] sm:$0xff]
        %v5425 = vld [vmem:[%s167 + $0x20] sm:$0xff]
        %v5426 = vld [vmem:[%s167 + $0x28] sm:$0xff]
        %v5427 = vld [vmem:[%s167 + $0x30] sm:$0xff]
        %v5428 = vld [vmem:[%s167 + $0x38] sm:$0xff]
        %v5429 = vld [vmem:[%s167 + $0x40] sm:$0xff]
        %v5430 = vld [vmem:[%s167 + $0x48] sm:$0xff]
        %v5431 = vld [vmem:[%s167 + $0x50] sm:$0xff]
        %v5432 = vld [vmem:[%s167 + $0x58] sm:$0xff]
        %v5433 = vld [vmem:[%s167 + $0x60] sm:$0xff]
        %v5434 = vld [vmem:[%s167 + $0x68] sm:$0xff]
        %v5435 = vld [vmem:[%s167 + $0x70] sm:$0xff]
        %v5436 = vld [vmem:[%s167 + $0x78] sm:$0xff]
        %v5437 = vld [vmem:[%s167 + $0x80] sm:$0xff]
        %v5438 = vld [vmem:[%s167 + $0x88] sm:$0xff]
        %v5439 = vld [vmem:[%s167 + $0x90] sm:$0xff]
        %v5440 = vld [vmem:[%s167 + $0x98] sm:$0xff]
        %v5441 = vld [vmem:[%s167 + $0xa0] sm:$0xff]
        %v5442 = vld [vmem:[%s167 + $0xa8] sm:$0xff]
        %v5443 = vld [vmem:[%s167 + $0xb0] sm:$0xff]
        %v5444 = vld [vmem:[%s167 + $0xb8] sm:$0xff]
        %v5445 = vld [vmem:[%s167 + $0xc0] sm:$0xff]
        %v5446 = vld [vmem:[%s167 + $0xc8] sm:$0xff]
        %v5447 = vld [vmem:[%s167 + $0xd0] sm:$0xff]
        %v5448 = vld [vmem:[%s167 + $0xd8] sm:$0xff]
        %v5449 = vld [vmem:[%s167 + $0xe0] sm:$0xff]
        %v5450 = vld [vmem:[%s167 + $0xe8] sm:$0xff]
        %v5451 = vld [vmem:[%s167 + $0xf0] sm:$0xff]
        %v5452 = vld [vmem:[%s167 + $0xf8] sm:$0xff]
        %s5453 = scalar_lea.vmem %s1, 512
        %v5454 = vld [vmem:[%s5453] sm:$0xf]
        %v5455 = vld [vmem:[%s5453 + $0x4] sm:$0xf]
        %v5456 = vld [vmem:[%s5453 + $0x8] sm:$0xf]
        %v5457 = vld [vmem:[%s5453 + $0xc] sm:$0xf]
        %v5458 = vld [vmem:[%s5453 + $0x10] sm:$0xf]
        %v5459 = vld [vmem:[%s5453 + $0x14] sm:$0xf]
        %v5460 = vld [vmem:[%s5453 + $0x18] sm:$0xf]
        %v5461 = vld [vmem:[%s5453 + $0x1c] sm:$0xf]
        %v5462 = vld [vmem:[%s5453 + $0x20] sm:$0xf]
        %v5463 = vld [vmem:[%s5453 + $0x24] sm:$0xf]
        %v5464 = vld [vmem:[%s5453 + $0x28] sm:$0xf]
        %v5465 = vld [vmem:[%s5453 + $0x2c] sm:$0xf]
        %v5466 = vld [vmem:[%s5453 + $0x30] sm:$0xf]
        %v5467 = vld [vmem:[%s5453 + $0x34] sm:$0xf]
        %v5468 = vld [vmem:[%s5453 + $0x38] sm:$0xf]
        %v5469 = vld [vmem:[%s5453 + $0x3c] sm:$0xf]
        %v5470 = vunpack.c.l.b16 %v5312
        %v5471 = vunpack.c.l.b16 %v5315
        %v5472 = vunpack.c.l.b16 %v5319
        %v5473 = vunpack.c.l.b16 %v5322
        %v5474 = vunpack.c.l.b16 %v5326
        %v5475 = vunpack.c.l.b16 %v5329
        %v5476 = vunpack.c.l.b16 %v5333
        %v5477 = vunpack.c.l.b16 %v5336
        %v5478 = vunpack.c.l.b16 %v5340
        %v5479 = vunpack.c.l.b16 %v5343
        %v5480 = vunpack.c.l.b16 %v5347
        %v5481 = vunpack.c.l.b16 %v5350
        %v5482 = vunpack.c.l.b16 %v5354
        %v5483 = vunpack.c.l.b16 %v5357
        %v5484 = vunpack.c.l.b16 %v5361
        %v5485 = vunpack.c.l.b16 %v5364
        %v5486 = vunpack.c.l.b16 %v5368
        %v5487 = vunpack.c.l.b16 %v5371
        %v5488 = vunpack.c.l.b16 %v5375
        %v5489 = vunpack.c.l.b16 %v5378
        %v5490 = vunpack.c.l.b16 %v5382
        %v5491 = vunpack.c.l.b16 %v5385
        %v5492 = vunpack.c.l.b16 %v5389
        %v5493 = vunpack.c.l.b16 %v5392
        %v5494 = vunpack.c.l.b16 %v5396
        %v5495 = vunpack.c.l.b16 %v5399
        %v5496 = vunpack.c.l.b16 %v5403
        %v5497 = vunpack.c.l.b16 %v5406
        %v5498 = vunpack.c.l.b16 %v5410
        %v5499 = vunpack.c.l.b16 %v5413
        %v5500 = vunpack.c.l.b16 %v5417
        %v5501 = vunpack.c.l.b16 %v5420
        %v5502 = vpack.c.b16 %v5471, %v5470
        %v5503 = vpack.c.b16 %v5473, %v5472
        %v5504 = vpack.c.b16 %v5475, %v5474
        %v5505 = vpack.c.b16 %v5477, %v5476
        %v5506 = vpack.c.b16 %v5479, %v5478
        %v5507 = vpack.c.b16 %v5481, %v5480
        %v5508 = vpack.c.b16 %v5483, %v5482
        %v5509 = vpack.c.b16 %v5485, %v5484
        %v5510 = vpack.c.b16 %v5487, %v5486
        %v5511 = vpack.c.b16 %v5489, %v5488
        %v5512 = vpack.c.b16 %v5491, %v5490
        %v5513 = vpack.c.b16 %v5493, %v5492
        %v5514 = vpack.c.b16 %v5495, %v5494
        %v5515 = vpack.c.b16 %v5497, %v5496
        %v5516 = vpack.c.b16 %v5499, %v5498
        %v5517 = vpack.c.b16 %v5501, %v5500
        %v5550 = vunpack.c.l.b16 %v5454
        %v5551 = vunpack.c.l.b16 %v5455
        %v5552 = vunpack.c.l.b16 %v5456
        %v5553 = vunpack.c.l.b16 %v5457
        %v5554 = vunpack.c.l.b16 %v5458
        %v5555 = vunpack.c.l.b16 %v5459
        %v5556 = vunpack.c.l.b16 %v5460
        %v5557 = vunpack.c.l.b16 %v5461
        %v5558 = vunpack.c.l.b16 %v5462
        %v5559 = vunpack.c.l.b16 %v5463
        %v5560 = vunpack.c.l.b16 %v5464
        %v5561 = vunpack.c.l.b16 %v5465
        %v5562 = vunpack.c.l.b16 %v5466
        %v5563 = vunpack.c.l.b16 %v5467
        %v5564 = vunpack.c.l.b16 %v5468
        %v5565 = vunpack.c.l.b16 %v5469
        %v5566 = vpack.c.b16 %v5551, %v5550
        %v5567 = vpack.c.b16 %v5553, %v5552
        %v5568 = vpack.c.b16 %v5555, %v5554
        %v5569 = vpack.c.b16 %v5557, %v5556
        %v5570 = vpack.c.b16 %v5559, %v5558
        %v5571 = vpack.c.b16 %v5561, %v5560
        %v5572 = vpack.c.b16 %v5563, %v5562
        %v5573 = vpack.c.b16 %v5565, %v5564
        %5582 = vmatprep.subr.bf16.mxu0 0
        %5583 = vmatpush1.bf16.msra.mxu0 %v5573
        %5584 = vmatprep.subr.bf16.mxu0 0
        %5585 = vmatpush1.bf16.msra.mxu0 %v5572
        %5586 = vmatprep.subr.bf16.mxu0 0
        %5587 = vmatpush1.bf16.msra.mxu0 %v5571
        %5588 = vmatprep.subr.bf16.mxu0 0
        %5589 = vmatpush1.bf16.msra.mxu0 %v5570
        %5590 = vmatprep.subr.bf16.mxu0 0
        %5591 = vmatpush1.bf16.msra.mxu0 %v5569
        %5592 = vmatprep.subr.bf16.mxu0 0
        %5593 = vmatpush1.bf16.msra.mxu0 %v5568
        %5594 = vmatprep.subr.bf16.mxu0 0
        %5595 = vmatpush1.bf16.msra.mxu0 %v5567
        %5596 = vmatprep.subr.bf16.mxu0 0
        %5597 = vmatpush1.bf16.msra.mxu0 %v5566
        %5598 = vmatprep.subr.bf16.mxu0 0
        %5599 = vmatpush2.bf16.msra.mxu0 0
        %5600 = vmatprep.subr.bf16.mxu0 0
        %5601 = vmatpush2.bf16.msra.mxu0 0
        %5602 = vmatprep.subr.bf16.mxu0 0
        %5603 = vmatpush2.bf16.msra.mxu0 0
        %5604 = vmatprep.subr.bf16.mxu0 0
        %5605 = vmatpush2.bf16.msra.mxu0 0
        %5606 = vmatprep.subr.bf16.mxu0 0
        %5607 = vmatpush2.bf16.msra.mxu0 0
        %5608 = vmatprep.subr.bf16.mxu0 0
        %5609 = vmatpush2.bf16.msra.mxu0 0
        %5610 = vmatprep.subr.bf16.mxu0 0
        %5611 = vmatpush2.bf16.msra.mxu0 0
        %5612 = vmatprep.subr.bf16.mxu0 0
        %5613 = vmatpush2.bf16.msra.mxu0 0
        %5614 = vmatprep.mubr.bf16.mxu0 0
        %5615 = vmatmul.mubr.bf16.gmra.mxu0 %v5502
        %v5616 = vpop.f32.mrf.mxu0
        %v5617 = vadd.f32 0.0, %v5616
        %v5618 = vpop.f32.mrf.mxu0
        %v5619 = vpop.f32.mrf.mxu0
        %v5620 = vadd.f32 0.0, %v5619
        %v5621 = vpop.f32.mrf.mxu0
        %5622 = vmatprep.mubr.bf16.mxu0 0
        %5623 = vmatmul.mubr.bf16.gmra.mxu0 %v5503
        %v5624 = vpop.f32.mrf.mxu0
        %v5625 = vadd.f32 0.0, %v5624
        %v5626 = vpop.f32.mrf.mxu0
        %v5627 = vpop.f32.mrf.mxu0
        %v5628 = vadd.f32 0.0, %v5627
        %v5629 = vpop.f32.mrf.mxu0
        %5630 = vmatprep.mubr.bf16.mxu0 0
        %5631 = vmatmul.mubr.bf16.gmra.mxu0 %v5504
        %v5632 = vpop.f32.mrf.mxu0
        %v5633 = vadd.f32 0.0, %v5632
        %v5634 = vpop.f32.mrf.mxu0
        %v5635 = vpop.f32.mrf.mxu0
        %v5636 = vadd.f32 0.0, %v5635
        %v5637 = vpop.f32.mrf.mxu0
        %5638 = vmatprep.mubr.bf16.mxu0 0
        %5639 = vmatmul.mubr.bf16.gmra.mxu0 %v5505
        %v5640 = vpop.f32.mrf.mxu0
        %v5641 = vadd.f32 0.0, %v5640
        %v5642 = vpop.f32.mrf.mxu0
        %v5643 = vpop.f32.mrf.mxu0
        %v5644 = vadd.f32 0.0, %v5643
        %v5645 = vpop.f32.mrf.mxu0
        %5646 = vmatprep.mubr.bf16.mxu0 0
        %5647 = vmatmul.mubr.bf16.gmra.mxu0 %v5506
        %v5648 = vpop.f32.mrf.mxu0
        %v5649 = vadd.f32 0.0, %v5648
        %v5650 = vpop.f32.mrf.mxu0
        %v5651 = vpop.f32.mrf.mxu0
        %v5652 = vadd.f32 0.0, %v5651
        %v5653 = vpop.f32.mrf.mxu0
        %5654 = vmatprep.mubr.bf16.mxu0 0
        %5655 = vmatmul.mubr.bf16.gmra.mxu0 %v5507
        %v5656 = vpop.f32.mrf.mxu0
        %v5657 = vadd.f32 0.0, %v5656
        %v5658 = vpop.f32.mrf.mxu0
        %v5659 = vpop.f32.mrf.mxu0
        %v5660 = vadd.f32 0.0, %v5659
        %v5661 = vpop.f32.mrf.mxu0
        %5662 = vmatprep.mubr.bf16.mxu0 0
        %5663 = vmatmul.mubr.bf16.gmra.mxu0 %v5508
        %v5664 = vpop.f32.mrf.mxu0
        %v5665 = vadd.f32 0.0, %v5664
        %v5666 = vpop.f32.mrf.mxu0
        %v5667 = vpop.f32.mrf.mxu0
        %v5668 = vadd.f32 0.0, %v5667
        %v5669 = vpop.f32.mrf.mxu0
        %5670 = vmatprep.mubr.bf16.mxu0 0
        %5671 = vmatmul.mubr.bf16.gmra.mxu0 %v5509
        %v5672 = vpop.f32.mrf.mxu0
        %v5673 = vadd.f32 0.0, %v5672
        %v5674 = vpop.f32.mrf.mxu0
        %v5675 = vpop.f32.mrf.mxu0
        %v5676 = vadd.f32 0.0, %v5675
        %v5677 = vpop.f32.mrf.mxu0
        %5678 = vmatprep.mubr.bf16.mxu0 0
        %5679 = vmatmul.mubr.bf16.gmra.mxu0 %v5510
        %v5680 = vpop.f32.mrf.mxu0
        %v5681 = vadd.f32 0.0, %v5680
        %v5682 = vpop.f32.mrf.mxu0
        %v5683 = vpop.f32.mrf.mxu0
        %v5684 = vadd.f32 0.0, %v5683
        %v5685 = vpop.f32.mrf.mxu0
        %5686 = vmatprep.mubr.bf16.mxu0 0
        %5687 = vmatmul.mubr.bf16.gmra.mxu0 %v5511
        %v5688 = vpop.f32.mrf.mxu0
        %v5689 = vadd.f32 0.0, %v5688
        %v5690 = vpop.f32.mrf.mxu0
        %v5691 = vpop.f32.mrf.mxu0
        %v5692 = vadd.f32 0.0, %v5691
        %v5693 = vpop.f32.mrf.mxu0
        %5694 = vmatprep.mubr.bf16.mxu0 0
        %5695 = vmatmul.mubr.bf16.gmra.mxu0 %v5512
        %v5696 = vpop.f32.mrf.mxu0
        %v5697 = vadd.f32 0.0, %v5696
        %v5698 = vpop.f32.mrf.mxu0
        %v5699 = vpop.f32.mrf.mxu0
        %v5700 = vadd.f32 0.0, %v5699
        %v5701 = vpop.f32.mrf.mxu0
        %5702 = vmatprep.mubr.bf16.mxu0 0
        %5703 = vmatmul.mubr.bf16.gmra.mxu0 %v5513
        %v5704 = vpop.f32.mrf.mxu0
        %v5705 = vadd.f32 0.0, %v5704
        %v5706 = vpop.f32.mrf.mxu0
        %v5707 = vpop.f32.mrf.mxu0
        %v5708 = vadd.f32 0.0, %v5707
        %v5709 = vpop.f32.mrf.mxu0
        %5710 = vmatprep.mubr.bf16.mxu0 0
        %5711 = vmatmul.mubr.bf16.gmra.mxu0 %v5514
        %v5712 = vpop.f32.mrf.mxu0
        %v5713 = vadd.f32 0.0, %v5712
        %v5714 = vpop.f32.mrf.mxu0
        %v5715 = vpop.f32.mrf.mxu0
        %v5716 = vadd.f32 0.0, %v5715
        %v5717 = vpop.f32.mrf.mxu0
        %5718 = vmatprep.mubr.bf16.mxu0 0
        %5719 = vmatmul.mubr.bf16.gmra.mxu0 %v5515
        %v5720 = vpop.f32.mrf.mxu0
        %v5721 = vadd.f32 0.0, %v5720
        %v5722 = vpop.f32.mrf.mxu0
        %v5723 = vpop.f32.mrf.mxu0
        %v5724 = vadd.f32 0.0, %v5723
        %v5725 = vpop.f32.mrf.mxu0
        %5726 = vmatprep.mubr.bf16.mxu0 0
        %5727 = vmatmul.mubr.bf16.gmra.mxu0 %v5516
        %v5728 = vpop.f32.mrf.mxu0
        %v5729 = vadd.f32 0.0, %v5728
        %v5730 = vpop.f32.mrf.mxu0
        %v5731 = vpop.f32.mrf.mxu0
        %v5732 = vadd.f32 0.0, %v5731
        %v5733 = vpop.f32.mrf.mxu0
        %5734 = vmatprep.mubr.bf16.mxu0 0
        %5735 = vmatmul.mubr.bf16.gmra.mxu0 %v5517
        %v5736 = vpop.f32.mrf.mxu0
        %v5737 = vadd.f32 0.0, %v5736
        %v5738 = vpop.f32.mrf.mxu0
        %v5739 = vpop.f32.mrf.mxu0
        %v5740 = vadd.f32 0.0, %v5739
        %v5741 = vpop.f32.mrf.mxu0
        %5742 = vdwg.mxu0
        %v5743 = vadd.f32 %v5421, %v5617
        %v5744 = vadd.f32 %v5422, %v5620
        %v5745 = vadd.f32 %v5423, %v5625
        %v5746 = vadd.f32 %v5424, %v5628
        %v5747 = vadd.f32 %v5425, %v5633
        %v5748 = vadd.f32 %v5426, %v5636
        %v5749 = vadd.f32 %v5427, %v5641
        %v5750 = vadd.f32 %v5428, %v5644
        %v5751 = vadd.f32 %v5429, %v5649
        %v5752 = vadd.f32 %v5430, %v5652
        %v5753 = vadd.f32 %v5431, %v5657
        %v5754 = vadd.f32 %v5432, %v5660
        %v5755 = vadd.f32 %v5433, %v5665
        %v5756 = vadd.f32 %v5434, %v5668
        %v5757 = vadd.f32 %v5435, %v5673
        %v5758 = vadd.f32 %v5436, %v5676
        %v5759 = vadd.f32 %v5437, %v5681
        %v5760 = vadd.f32 %v5438, %v5684
        %v5761 = vadd.f32 %v5439, %v5689
        %v5762 = vadd.f32 %v5440, %v5692
        %v5763 = vadd.f32 %v5441, %v5697
        %v5764 = vadd.f32 %v5442, %v5700
        %v5765 = vadd.f32 %v5443, %v5705
        %v5766 = vadd.f32 %v5444, %v5708
        %v5767 = vadd.f32 %v5445, %v5713
        %v5768 = vadd.f32 %v5446, %v5716
        %v5769 = vadd.f32 %v5447, %v5721
        %v5770 = vadd.f32 %v5448, %v5724
        %v5771 = vadd.f32 %v5449, %v5729
        %v5772 = vadd.f32 %v5450, %v5732
        %v5773 = vadd.f32 %v5451, %v5737
        %v5774 = vadd.f32 %v5452, %v5740
        %5775 = vst [vmem:[%s167] sm:$0xff] %v5743
        %5776 = vst [vmem:[%s167 + $0x8] sm:$0xff] %v5744
        %5777 = vst [vmem:[%s167 + $0x10] sm:$0xff] %v5745
        %5778 = vst [vmem:[%s167 + $0x18] sm:$0xff] %v5746
        %5779 = vst [vmem:[%s167 + $0x20] sm:$0xff] %v5747
        %5780 = vst [vmem:[%s167 + $0x28] sm:$0xff] %v5748
        %5781 = vst [vmem:[%s167 + $0x30] sm:$0xff] %v5749
        %5782 = vst [vmem:[%s167 + $0x38] sm:$0xff] %v5750
        %5783 = vst [vmem:[%s167 + $0x40] sm:$0xff] %v5751
        %5784 = vst [vmem:[%s167 + $0x48] sm:$0xff] %v5752
        %5785 = vst [vmem:[%s167 + $0x50] sm:$0xff] %v5753
        %5786 = vst [vmem:[%s167 + $0x58] sm:$0xff] %v5754
        %5787 = vst [vmem:[%s167 + $0x60] sm:$0xff] %v5755
        %5788 = vst [vmem:[%s167 + $0x68] sm:$0xff] %v5756
        %5789 = vst [vmem:[%s167 + $0x70] sm:$0xff] %v5757
        %5790 = vst [vmem:[%s167 + $0x78] sm:$0xff] %v5758
        %5791 = vst [vmem:[%s167 + $0x80] sm:$0xff] %v5759
        %5792 = vst [vmem:[%s167 + $0x88] sm:$0xff] %v5760
        %5793 = vst [vmem:[%s167 + $0x90] sm:$0xff] %v5761
        %5794 = vst [vmem:[%s167 + $0x98] sm:$0xff] %v5762
        %5795 = vst [vmem:[%s167 + $0xa0] sm:$0xff] %v5763
        %5796 = vst [vmem:[%s167 + $0xa8] sm:$0xff] %v5764
        %5797 = vst [vmem:[%s167 + $0xb0] sm:$0xff] %v5765
        %5798 = vst [vmem:[%s167 + $0xb8] sm:$0xff] %v5766
        %5799 = vst [vmem:[%s167 + $0xc0] sm:$0xff] %v5767
        %5800 = vst [vmem:[%s167 + $0xc8] sm:$0xff] %v5768
        %5801 = vst [vmem:[%s167 + $0xd0] sm:$0xff] %v5769
        %5802 = vst [vmem:[%s167 + $0xd8] sm:$0xff] %v5770
        %5803 = vst [vmem:[%s167 + $0xe0] sm:$0xff] %v5771
        %5804 = vst [vmem:[%s167 + $0xe8] sm:$0xff] %v5772
        %5805 = vst [vmem:[%s167 + $0xf0] sm:$0xff] %v5773
        %5806 = vst [vmem:[%s167 + $0xf8] sm:$0xff] %v5774
        %v5807 = vld [vmem:[%s167] sm:$0xff]
        %v5808 = vld [vmem:[%s167 + $0x8] sm:$0xff]
        %v5809 = vld [vmem:[%s167 + $0x10] sm:$0xff]
        %v5810 = vld [vmem:[%s167 + $0x18] sm:$0xff]
        %v5811 = vld [vmem:[%s167 + $0x20] sm:$0xff]
        %v5812 = vld [vmem:[%s167 + $0x28] sm:$0xff]
        %v5813 = vld [vmem:[%s167 + $0x30] sm:$0xff]
        %v5814 = vld [vmem:[%s167 + $0x38] sm:$0xff]
        %v5815 = vld [vmem:[%s167 + $0x40] sm:$0xff]
        %v5816 = vld [vmem:[%s167 + $0x48] sm:$0xff]
        %v5817 = vld [vmem:[%s167 + $0x50] sm:$0xff]
        %v5818 = vld [vmem:[%s167 + $0x58] sm:$0xff]
        %v5819 = vld [vmem:[%s167 + $0x60] sm:$0xff]
        %v5820 = vld [vmem:[%s167 + $0x68] sm:$0xff]
        %v5821 = vld [vmem:[%s167 + $0x70] sm:$0xff]
        %v5822 = vld [vmem:[%s167 + $0x78] sm:$0xff]
        %v5823 = vld [vmem:[%s167 + $0x80] sm:$0xff]
        %v5824 = vld [vmem:[%s167 + $0x88] sm:$0xff]
        %v5825 = vld [vmem:[%s167 + $0x90] sm:$0xff]
        %v5826 = vld [vmem:[%s167 + $0x98] sm:$0xff]
        %v5827 = vld [vmem:[%s167 + $0xa0] sm:$0xff]
        %v5828 = vld [vmem:[%s167 + $0xa8] sm:$0xff]
        %v5829 = vld [vmem:[%s167 + $0xb0] sm:$0xff]
        %v5830 = vld [vmem:[%s167 + $0xb8] sm:$0xff]
        %v5831 = vld [vmem:[%s167 + $0xc0] sm:$0xff]
        %v5832 = vld [vmem:[%s167 + $0xc8] sm:$0xff]
        %v5833 = vld [vmem:[%s167 + $0xd0] sm:$0xff]
        %v5834 = vld [vmem:[%s167 + $0xd8] sm:$0xff]
        %v5835 = vld [vmem:[%s167 + $0xe0] sm:$0xff]
        %v5836 = vld [vmem:[%s167 + $0xe8] sm:$0xff]
        %v5837 = vld [vmem:[%s167 + $0xf0] sm:$0xff]
        %v5838 = vld [vmem:[%s167 + $0xf8] sm:$0xff]
        %v5839 = vadd.f32 %v5807, %v5808
        %v5840 = vadd.f32 %v5839, %v5809
        %v5841 = vadd.f32 %v5840, %v5810
        %v5842 = vadd.f32 %v5841, %v5811
        %v5843 = vadd.f32 %v5842, %v5812
        %v5844 = vadd.f32 %v5843, %v5813
        %v5845 = vadd.f32 %v5844, %v5814
        %v5846 = vadd.f32 %v5845, %v5815
        %v5847 = vadd.f32 %v5846, %v5816
        %v5848 = vadd.f32 %v5847, %v5817
        %v5849 = vadd.f32 %v5848, %v5818
        %v5850 = vadd.f32 %v5849, %v5819
        %v5851 = vadd.f32 %v5850, %v5820
        %v5852 = vadd.f32 %v5851, %v5821
        %v5853 = vadd.f32 %v5852, %v5822
        %v5854 = vadd.f32 %v5853, %v5823
        %v5855 = vadd.f32 %v5854, %v5824
        %v5856 = vadd.f32 %v5855, %v5825
        %v5857 = vadd.f32 %v5856, %v5826
        %v5858 = vadd.f32 %v5857, %v5827
        %v5859 = vadd.f32 %v5858, %v5828
        %v5860 = vadd.f32 %v5859, %v5829
        %v5861 = vadd.f32 %v5860, %v5830
        %v5862 = vadd.f32 %v5861, %v5831
        %v5863 = vadd.f32 %v5862, %v5832
        %v5864 = vadd.f32 %v5863, %v5833
        %v5865 = vadd.f32 %v5864, %v5834
        %v5866 = vadd.f32 %v5865, %v5835
        %v5867 = vadd.f32 %v5866, %v5836
        %v5868 = vadd.f32 %v5867, %v5837
        %v5869 = vadd.f32 %v5868, %v5838
        %v5870 = vrot.slane %v5869, 4
        %v5871 = vadd.f32 %v5869, %v5870
        %v5872 = vrot.slane %v5871, 2
        %v5873 = vadd.f32 %v5871, %v5872
        %v5874 = vrot.slane %v5873, 1
        %v5875 = vadd.f32 %v5873, %v5874
        %5876 = vst [vmem:[%s174] sm:$0x1] %v5875
        %v5877 = vmul.f32 %v5807, %v5807
        %v5878 = vmul.f32 %v5808, %v5808
        %v5879 = vmul.f32 %v5809, %v5809
        %v5880 = vmul.f32 %v5810, %v5810
        %v5881 = vmul.f32 %v5811, %v5811
        %v5882 = vmul.f32 %v5812, %v5812
        %v5883 = vmul.f32 %v5813, %v5813
        %v5884 = vmul.f32 %v5814, %v5814
        %v5885 = vmul.f32 %v5815, %v5815
        %v5886 = vmul.f32 %v5816, %v5816
        %v5887 = vmul.f32 %v5817, %v5817
        %v5888 = vmul.f32 %v5818, %v5818
        %v5889 = vmul.f32 %v5819, %v5819
        %v5890 = vmul.f32 %v5820, %v5820
        %v5891 = vmul.f32 %v5821, %v5821
        %v5892 = vmul.f32 %v5822, %v5822
        %v5893 = vmul.f32 %v5823, %v5823
        %v5894 = vmul.f32 %v5824, %v5824
        %v5895 = vmul.f32 %v5825, %v5825
        %v5896 = vmul.f32 %v5826, %v5826
        %v5897 = vmul.f32 %v5827, %v5827
        %v5898 = vmul.f32 %v5828, %v5828
        %v5899 = vmul.f32 %v5829, %v5829
        %v5900 = vmul.f32 %v5830, %v5830
        %v5901 = vmul.f32 %v5831, %v5831
        %v5902 = vmul.f32 %v5832, %v5832
        %v5903 = vmul.f32 %v5833, %v5833
        %v5904 = vmul.f32 %v5834, %v5834
        %v5905 = vmul.f32 %v5835, %v5835
        %v5906 = vmul.f32 %v5836, %v5836
        %v5907 = vmul.f32 %v5837, %v5837
        %v5908 = vmul.f32 %v5838, %v5838
        %v5909 = vadd.f32 %v5877, %v5878
        %v5910 = vadd.f32 %v5909, %v5879
        %v5911 = vadd.f32 %v5910, %v5880
        %v5912 = vadd.f32 %v5911, %v5881
        %v5913 = vadd.f32 %v5912, %v5882
        %v5914 = vadd.f32 %v5913, %v5883
        %v5915 = vadd.f32 %v5914, %v5884
        %v5916 = vadd.f32 %v5915, %v5885
        %v5917 = vadd.f32 %v5916, %v5886
        %v5918 = vadd.f32 %v5917, %v5887
        %v5919 = vadd.f32 %v5918, %v5888
        %v5920 = vadd.f32 %v5919, %v5889
        %v5921 = vadd.f32 %v5920, %v5890
        %v5922 = vadd.f32 %v5921, %v5891
        %v5923 = vadd.f32 %v5922, %v5892
        %v5924 = vadd.f32 %v5923, %v5893
        %v5925 = vadd.f32 %v5924, %v5894
        %v5926 = vadd.f32 %v5925, %v5895
        %v5927 = vadd.f32 %v5926, %v5896
        %v5928 = vadd.f32 %v5927, %v5897
        %v5929 = vadd.f32 %v5928, %v5898
        %v5930 = vadd.f32 %v5929, %v5899
        %v5931 = vadd.f32 %v5930, %v5900
        %v5932 = vadd.f32 %v5931, %v5901
        %v5933 = vadd.f32 %v5932, %v5902
        %v5934 = vadd.f32 %v5933, %v5903
        %v5935 = vadd.f32 %v5934, %v5904
        %v5936 = vadd.f32 %v5935, %v5905
        %v5937 = vadd.f32 %v5936, %v5906
        %v5938 = vadd.f32 %v5937, %v5907
        %v5939 = vadd.f32 %v5938, %v5908
        %v5940 = vrot.slane %v5939, 4
        %v5941 = vadd.f32 %v5939, %v5940
        %v5942 = vrot.slane %v5941, 2
        %v5943 = vadd.f32 %v5941, %v5942
        %v5944 = vrot.slane %v5943, 1
        %v5945 = vadd.f32 %v5943, %v5944
        %5946 = vst [vmem:[%s174 + $0x1] sm:$0x1] %v5945
        %s5947 = sand.u32 %s76, 1
        %s5948 = scalar_lea.sflag [#allocation3], %s5947
        %s5949 = sand.u32 %s76, 1
        %s5950 = smul.addr %s5949, 256
        %s5951 = scalar_lea.vmem [#allocation2], %s5950
        %s5952 = sand.u32 %s102, 1
        %s5953 = scalar_lea.sflag [#allocation5], %s5952
        %s5954 = sand.u32 %s102, 1
        %s5955 = smul.addr %s5954, 2
        %s5956 = scalar_lea.vmem [#allocation4], %s5955
        // Predicated region
        $region29: #{tpu_custom_call.1} parent=27 // pred_check
          %p5957 = pneg %p86
        $region30: #{tpu_custom_call.1} parent=27 // pred_check_branch
          %5959 = sbr.rel (%p5957) target = $region32
        $region31: #{tpu_custom_call.1} parent=27 // pred_region
          %s5960 = smul.u32 32, %s21
          %s5962 = ssub.s32 4096, 4096
          %5963 = vsyncadd %s5948, %s5962
          %s5964 = smul.addr %s5960, 128
          %s5965 = scalar_lea.hbm %s2, %s5964
          %s5966 = sshll.u32 %s5951, 4
          %s5967 = int_to_ptr.vmem [resolvable:$true] %s5966
          %5972 = dma.vmem_to_hbm [thread:$0]  %s5967, 4096, %s5965, %s5948, 128, 128, 8
        $region32: #{tpu_custom_call.1} parent=27 // pred_fallthru
          _
        // Predicated region
        $region33: #{tpu_custom_call.1} parent=27 // pred_check
          %p5973 = pneg %p112
        $region34: #{tpu_custom_call.1} parent=27 // pred_check_branch
          %5975 = sbr.rel (%p5973) target = $region36
        $region35: #{tpu_custom_call.1} parent=27 // pred_region
          %s5977 = ssub.s32 32, 32
          %5978 = vsyncadd %s5953, %s5977
          %s5979 = smul.addr %s21, 32
          %s5980 = scalar_lea.hbm %s3, %s5979
          %s5982 = sshll.u32 %s5956, 4
          %s5983 = int_to_ptr.vmem [resolvable:$true] %s5982
          %5985 = dma.vmem_to_hbm [thread:$0]  %s5983, 32, %s5980, %s5953
        $region36: #{tpu_custom_call.1} parent=27 // pred_fallthru
          _
      $region28: #{tpu_custom_call.1} parent=5 // pred_fallthru
        _
      %p5986 = scmp.le.s32.totalorder 2, %s16
      // Predicated region
      $region37: #{tpu_custom_call.1} parent=5 // pred_check
        %p5987 = pneg %p5986
      $region38: #{tpu_custom_call.1} parent=5 // pred_check_branch
        %5989 = sbr.rel (%p5987) target = $region40
      $region39: #{tpu_custom_call.1} parent=5 // pred_region
        %s5990 = ssub.s32 %s16, 2
        // Predicated region
        $region41: #{tpu_custom_call.1} parent=39 // pred_check
          %p5991 = pneg %p92
        $region42: #{tpu_custom_call.1} parent=39 // pred_check_branch
          %5993 = sbr.rel (%p5991) target = $region44
        $region43: #{tpu_custom_call.1} parent=39 // pred_region
          %s5994 = sand.u32 %s77, 1
          %s5995 = scalar_lea.sflag [#allocation3], %s5994
          %s5996 = sand.u32 %s77, 1
          %s5997 = smul.addr %s5996, 256
          %s5998 = scalar_lea.vmem [#allocation2], %s5997
          %5999 = dma.done %s5995, 4096
        $region44: #{tpu_custom_call.1} parent=39 // pred_fallthru
          _
        // Predicated region
        $region45: #{tpu_custom_call.1} parent=39 // pred_check
          %p6000 = pneg %p118
        $region46: #{tpu_custom_call.1} parent=39 // pred_check_branch
          %6002 = sbr.rel (%p6000) target = $region48
        $region47: #{tpu_custom_call.1} parent=39 // pred_region
          %s6003 = sand.u32 %s103, 1
          %s6004 = scalar_lea.sflag [#allocation5], %s6003
          %s6005 = sand.u32 %s103, 1
          %s6006 = smul.addr %s6005, 2
          %s6007 = scalar_lea.vmem [#allocation4], %s6006
          %6008 = dma.done %s6004, 32
        $region48: #{tpu_custom_call.1} parent=39 // pred_fallthru
          _
      $region40: #{tpu_custom_call.1} parent=5 // pred_fallthru
        _
    $region6: #{tpu_custom_call.1} parent=1 // loop_footer
      %s20 = sadd.s32 1, %s16
    $region7: #{tpu_custom_call.1} parent=1 // loop_footer_branch
      %15 = sbr.rel target = $region3
    $region8: #{tpu_custom_call.1} parent=1 // loop_exit
      _
    %6009 = vsyncpa [#allocation3], 1
    %s6010 = scalar_lea.sflag [#allocation3], 1
    %6011 = vsyncpa %s6010, 1
    %6012 = vsyncpa [#allocation5], 1
    %s6013 = scalar_lea.sflag [#allocation5], 1
    %6014 = vsyncpa %s6013, 1

</llo_original>
